<compile_context>
chip_gen: v7x
topology: tpu7x:2x2x1
jax: 0.10.0
libtpu: 0.0.40
codegen_flags: <defaults>
</compile_context>

<pallas_src>
import functools

import jax
import jax.numpy as jnp
import numpy as np
from jax.experimental import pallas as pl
from jax.experimental.pallas import tpu as pltpu

_SUBGRIDS = ((0, 0), (0, 1), (1, 0), (1, 1))   # output parity classes (a, b)
_LANE_PAD = 128                                # lane padding for the tiny 4x4 stage


# ----------------------------------------------------------------------------
# In-kernel helpers (traced inside the single fused kernel).
# ----------------------------------------------------------------------------

def _bn_relu(y, gamma, beta, eps, count):
    """Training-mode BatchNorm2d + ReLU with single-sweep statistics.

    `y` is channel-major (C, L); `count` is the number of VALID lanes per
    channel (lane padding holds exact zeros so it never perturbs the sums).
    var = E[y^2] - mean^2 -> one pass over the data instead of two.
    """
    inv = 1.0 / count
    mean = jnp.sum(y, axis=-1, keepdims=True) * inv
    ex2 = jnp.sum(y * y, axis=-1, keepdims=True) * inv
    var = ex2 - mean * mean
    scale = gamma * jax.lax.rsqrt(var + eps)
    shift = beta - mean * scale
    return jnp.maximum(y * scale + shift, 0.0)


def _windows_to_slab(a_in, mask_ref, row_w, slab_ref, mask_center):
    """Stage the 9 shifted windows of a_in (Cin, M) into slab_ref (9*Cin, M).

    window[(dh,dw)][ci, (n,i,j)] = a_in[ci, (n, i+dh, j+dw)] (0 outside the
    image).  A spatial shift (dh, dw) is a constant lane shift of dh*row_w+dw
    (pltpu.roll -> XLU slot, off the VPU/MXU critical path); wrapped /
    out-of-image / pad lanes are zeroed by the precomputed mask.  Each window
    is written straight to the VMEM slab so at most one is live in vregs.
    """
    cin, m = a_in.shape
    for dh in (-1, 0, 1):
        for dw in (-1, 0, 1):
            k = (dh + 1) * 3 + (dw + 1)
            s = dh * row_w + dw
            rolled = a_in if s == 0 else pltpu.roll(a_in, shift=(-s) % m, axis=1)
            if s == 0 and not mask_center:
                win = rolled            # centre window is exact when M has no padding
            else:
                win = rolled * mask_ref[dh + 1, dw + 1]
            slab_ref[pl.ds(k * cin, cin), :] = win


def _upsample(a_in, w_ref, mask_ref, slab_ref, row_w, mask_center):
    """Sub-pixel ConvTranspose2d(K=4, stride=2, padding=1) as ONE merged GEMM.

    Output pixel (2q+a, 2r+b) only touches input rows q+dh (dh in D_a) and cols
    r+dw (dw in D_b) with kernel tap (a+1-2dh, b+1-2dw), D_0={-1,0}, D_1={0,+1}.
    All four parities and their taps are stacked into one (4*Coutp, 9*Cin)
    weight (unused taps are zero), so the layer is a single MXU contraction of
    depth 9*Cin over the staged window slab.
    Returns (4*Coutp, M): row p*Coutp+co is parity p=2a+b of channel co.
    """
    _windows_to_slab(a_in, mask_ref, row_w, slab_ref, mask_center)
    return jnp.dot(w_ref[...], slab_ref[...], preferred_element_type=jnp.float32)


def _parity_to_lanes(y_stacked):
    """(4*C, M) parity-on-sublanes -> (C, 4*M) parity-on-lanes (tile-aligned)."""
    c = y_stacked.shape[0] // 4
    return jnp.concatenate(
        [y_stacked[p * c:(p + 1) * c, :] for p in range(4)], axis=1)


# ----------------------------------------------------------------------------
# The fused generator kernel (everything resident in VMEM, one launch).
# ----------------------------------------------------------------------------

def _generator_kernel(zf_ref, w1f_ref, g1_ref, b1_ref,
                      w2_ref, m2_ref, p2_ref, g2_ref, b2_ref,
                      w3_ref, m3_ref, p3_ref, g3_ref, b3_ref,
                      w4_ref, m4_ref,
                      o_ref,
                      slab2_ref, slab3_ref, slab4_ref,
                      *, eps, batch):
    f32 = jnp.float32
    bf16 = jnp.bfloat16

    # --- layer 1: ConvTranspose2d(nz, C1, 4, 1, 0) on a 1x1 input + BN + ReLU.
    # One GEMM (C1, 16*nz) @ (16*nz, 128): the wrapper pre-expanded z so the
    # (kernel-pixel, ci) contraction only hits each output lane's own kernel
    # pixel.  Lanes >= batch*16 are zero padding (re-masked at layer 2).
    a1 = jnp.dot(w1f_ref[...], zf_ref[...], preferred_element_type=f32)     # (C1, 128)
    a1 = _bn_relu(a1, g1_ref[...], b1_ref[...], eps, float(batch * 16))

    # --- layer 2: 4x4 -> 8x8 sub-pixel ConvTranspose2d + BN + ReLU.
    y2 = _upsample(a1, w2_ref, m2_ref, slab2_ref, row_w=4, mask_center=True)
    y2 = _bn_relu(_parity_to_lanes(y2), g2_ref[...], b2_ref[...],
                  eps, float(batch * 64))                                   # (C2, 4*128)
    # Parity sub-grids -> next layer's (C, N*H*W) lane order: one GEMM against
    # the stacked 0/1 scatter matrix (exact in bf16; bf16 halves MXU passes).
    a2 = jnp.dot(y2.astype(bf16), p2_ref[...], preferred_element_type=f32)  # (C2, N*64)

    # --- layer 3: 8x8 -> 16x16 sub-pixel ConvTranspose2d + BN + ReLU.
    y3 = _upsample(a2, w3_ref, m3_ref, slab3_ref, row_w=8, mask_center=False)
    y3 = _bn_relu(_parity_to_lanes(y3), g3_ref[...], b3_ref[...],
                  eps, float(batch * 256))                                  # (C3, 4*128)
    a3 = jnp.dot(y3.astype(bf16), p3_ref[...], preferred_element_type=f32)  # (C3, N*256)

    # --- layer 4: 16x16 -> 32x32 sub-pixel ConvTranspose2d + Tanh.
    # Output channels are zero-padded to 8 sublanes so every final store is an
    # unmasked, lane-dense (8, N*256) slab.
    y4 = _upsample(a3, w4_ref, m4_ref, slab4_ref, row_w=16, mask_center=False)
    img = jnp.tanh(y4)                                                      # (4*8, N*256)
    for p, (a, b) in enumerate(_SUBGRIDS):
        o_ref[a, b] = img[p * 8:(p + 1) * 8, :].astype(o_ref.dtype)


# ----------------------------------------------------------------------------
# One-time host-side constant construction (hoisted out of the forward pass).
# ----------------------------------------------------------------------------

def _flat(n, h, w, i, j):
    return (n * h + i) * w + j


def _layer1_weight(w1):
    """(C1, 16*nz): column s*nz+ci holds w1[ci, co, s//4, s%4]."""
    w1 = np.asarray(w1, np.float32)
    nz, c1 = w1.shape[0], w1.shape[1]
    return np.transpose(w1.reshape(nz, c1, 16), (1, 2, 0)).reshape(c1, 16 * nz)


def _stack_subpixel_taps(w, cout_pad):
    """(4*cout_pad, 9*cin) merged-tap weight for ConvTranspose2d(4, 2, 1).

    Row p*cout_pad+co, column ((dh+1)*3+(dw+1))*cin+ci holds
    w[ci, co, a+1-2dh, b+1-2dw] when dh in D_a and dw in D_b (else 0), with
    p = 2a+b, D_0={-1,0}, D_1={0,+1}.  Rows co >= Cout are zero padding.
    """
    w = np.asarray(w, np.float32)
    cin, cout = w.shape[0], w.shape[1]
    ws = np.zeros((4 * cout_pad, 9 * cin), np.float32)
    for p, (a, b) in enumerate(_SUBGRIDS):
        for dh in ((-1, 0) if a == 0 else (0, 1)):
            for dw in ((-1, 0) if b == 0 else (0, 1)):
                kh, kw = a + 1 - 2 * dh, b + 1 - 2 * dw
                k = (dh + 1) * 3 + (dw + 1)
                ws[p * cout_pad:p * cout_pad + cout,
                   k * cin:(k + 1) * cin] = w[:, :, kh, kw].T
    return ws


def _make_window_masks(batch, h, w, m_pad):
    """mask[dh+1, dw+1, 0, (n,i,j)] = 1 iff (i+dh, j+dw) is inside the image
    (zero on any lane padding beyond batch*h*w)."""
    mask = np.zeros((3, 3, 1, m_pad), np.float32)
    for dh in (-1, 0, 1):
        for dw in (-1, 0, 1):
            for n in range(batch):
                for i in range(h):
                    for j in range(w):
                        if 0 <= i + dh < h and 0 <= j + dw < w:
                            mask[dh + 1, dw + 1, 0, _flat(n, h, w, i, j)] = 1.0
    return mask


def _make_interleave_stacked(batch, h_in, w_in, m_pad):
    """P[p*m_pad + (n,q,r), (n,2q+a,2r+b)] = 1 with p = 2a+b (0/1, bf16-exact)."""
    h_out, w_out = 2 * h_in, 2 * w_in
    p = np.zeros((4 * m_pad, batch * h_out * w_out), np.float32)
    for pi, (a, b) in enumerate(_SUBGRIDS):
        for n in range(batch):
            for q in range(h_in):
                for r in range(w_in):
                    p[pi * m_pad + _flat(n, h_in, w_in, q, r),
                      _flat(n, h_out, w_out, 2 * q + a, 2 * r + b)] = 1.0
    return p


def precompute_generator_consts(params, batch):
    """Kernel-layout weights + mask/interleave constants (built exactly once)."""
    (w1, g1, b1), (w2, g2, b2), (w3, g3, b3), (w4,) = params
    col = lambda v: jnp.asarray(v, jnp.float32).reshape(-1, 1)
    m2, m3 = batch * 64, batch * 256
    return (
        jnp.asarray(_layer1_weight(w1)),                               # (C1, 16*nz)
        col(g1), col(b1),
        jnp.asarray(_stack_subpixel_taps(w2, int(w2.shape[1]))),       # (4*C2, 9*C1)
        jnp.asarray(_make_window_masks(batch, 4, 4, _LANE_PAD)),       # (3,3,1,128)
        jnp.asarray(_make_interleave_stacked(batch, 4, 4, _LANE_PAD),
                    dtype=jnp.bfloat16),                               # (4*128, N*64)
        col(g2), col(b2),
        jnp.asarray(_stack_subpixel_taps(w3, int(w3.shape[1]))),       # (4*C3, 9*C2)
        jnp.asarray(_make_window_masks(batch, 8, 8, m2)),              # (3,3,1,N*64)
        jnp.asarray(_make_interleave_stacked(batch, 8, 8, m2),
                    dtype=jnp.bfloat16),                               # (4*N*64, N*256)
        col(g3), col(b3),
        jnp.asarray(_stack_subpixel_taps(w4, 8)),                      # (32, 9*ngf), nc padded to 8
        jnp.asarray(_make_window_masks(batch, 16, 16, m3)),            # (3,3,1,N*256)
    )


# ----------------------------------------------------------------------------
# Forward pass: one pallas_call + a single NCHW fix-up at the very end.
# ----------------------------------------------------------------------------

def generator_forward(z, consts, *, batch, nz, nc):
    """z: (N, nz, 1, 1) -> image: (N, nc, 32, 32), one fused Pallas kernel."""
    assert batch * 16 <= _LANE_PAD and (batch * 64) % 128 == 0
    # Tiny layout-only expansion so layer 1 is a single dense GEMM:
    #   zf[s*nz + ci, n*16 + s'] = z[n, ci] * delta(s, s'); lanes padded to 128.
    z_cm = jnp.transpose(z.reshape(batch, nz)).astype(jnp.float32)     # (nz, N)
    zf = jnp.einsum("cn,st->scnt", z_cm, jnp.eye(16, dtype=jnp.float32))
    zf = zf.reshape(16 * nz, 16 * batch)
    zf = jnp.pad(zf, ((0, 0), (0, _LANE_PAD - 16 * batch)))

    w2s, w3s, w4s = consts[3], consts[8], consts[13]
    m2, m3 = batch * 64, batch * 256
    out = pl.pallas_call(
        functools.partial(_generator_kernel, eps=1e-5, batch=batch),
        out_shape=jax.ShapeDtypeStruct((2, 2, 8, m3), jnp.float32),
        in_specs=[pl.BlockSpec(memory_space=pltpu.MemorySpace.VMEM)]
        * (1 + len(consts)),
        out_specs=pl.BlockSpec(memory_space=pltpu.MemorySpace.VMEM),
        scratch_shapes=[
            pltpu.VMEM((w2s.shape[1], _LANE_PAD), jnp.float32),   # layer-2 window slab
            pltpu.VMEM((w3s.shape[1], m2), jnp.float32),          # layer-3 window slab
            pltpu.VMEM((w4s.shape[1], m3), jnp.float32),          # layer-4 window slab
        ],
        compiler_params=pltpu.CompilerParams(vmem_limit_bytes=32 * 1024 * 1024),
    )(zf, *consts)
    # Single layout fix-up back to NCHW:
    # out[a, b, co, (n, q, r)] == image[n, co, 2q + a, 2r + b]  (co < nc valid).
    o = out[:, :, :nc, :].reshape(2, 2, nc, batch, 16, 16)
    return o.transpose(3, 2, 4, 0, 5, 1).reshape(batch, nc, 32, 32)


# ----------------------------------------------------------------------------
# Pure-XLA reference (PyTorch ConvTranspose2d / training-mode BatchNorm2d).
# ----------------------------------------------------------------------------

def _reference_forward(z, params, eps=1e-5):
    (w1, g1, b1), (w2, g2, b2), (w3, g3, b3), (w4,) = params

    def convt(x, w, stride, pad):
        k = w.shape[2]
        w_conv = jnp.transpose(w, (1, 0, 2, 3))[:, :, ::-1, ::-1]
        return jax.lax.conv_general_dilated(
            x, w_conv, window_strides=(1, 1),
            padding=[(k - 1 - pad, k - 1 - pad)] * 2,
            lhs_dilation=(stride, stride),
            dimension_numbers=("NCHW", "OIHW", "NCHW"),
            precision=jax.lax.Precision.HIGHEST)

    def bn_relu(x, g, b):
        mu = jnp.mean(x, axis=(0, 2, 3), keepdims=True)
        var = jnp.mean(jnp.square(x - mu), axis=(0, 2, 3), keepdims=True)
        xn = (x - mu) * jax.lax.rsqrt(var + eps)
        return jnp.maximum(
            xn * g.reshape(1, -1, 1, 1) + b.reshape(1, -1, 1, 1), 0.0)

    h = bn_relu(convt(z, w1, 1, 0), g1, b1)
    h = bn_relu(convt(h, w2, 2, 1), g2, b2)
    h = bn_relu(convt(h, w3, 2, 1), g3, b3)
    return jnp.tanh(convt(h, w4, 2, 1))


# ----------------------------------------------------------------------------
# main
# ----------------------------------------------------------------------------

if __name__ == "__main__":
    nz, ngf, nc, batch = 16, 8, 3, 2

    key = jax.random.PRNGKey(0)
    kz, k1, k2, k3, k4, kg1, kg2, kg3 = jax.random.split(key, 8)

    # DCGAN-style init: conv weights ~ N(0, 0.02), BN gamma ~ N(1, 0.02), beta=0.
    w1 = 0.02 * jax.random.normal(k1, (nz, ngf * 4, 4, 4), jnp.float32)
    w2 = 0.02 * jax.random.normal(k2, (ngf * 4, ngf * 2, 4, 4), jnp.float32)
    w3 = 0.02 * jax.random.normal(k3, (ngf * 2, ngf, 4, 4), jnp.float32)
    w4 = 0.02 * jax.random.normal(k4, (ngf, nc, 4, 4), jnp.float32)
    params = (
        (w1, 1.0 + 0.02 * jax.random.normal(kg1, (ngf * 4,), jnp.float32),
         jnp.zeros((ngf * 4,), jnp.float32)),
        (w2, 1.0 + 0.02 * jax.random.normal(kg2, (ngf * 2,), jnp.float32),
         jnp.zeros((ngf * 2,), jnp.float32)),
        (w3, 1.0 + 0.02 * jax.random.normal(kg3, (ngf,), jnp.float32),
         jnp.zeros((ngf,), jnp.float32)),
        (w4,),
    )
    z = jax.random.normal(kz, (batch, nz, 1, 1), jnp.float32)

    consts = precompute_generator_consts(params, batch)       # hoisted, one-time
    fwd = jax.jit(functools.partial(generator_forward, batch=batch, nz=nz, nc=nc))

    out = jax.block_until_ready(fwd(z, consts))

    assert out.shape == (batch, nc, 32, 32), out.shape
    assert bool(jnp.all(jnp.isfinite(out)))
    assert bool(jnp.all(jnp.abs(out) <= 1.0))                 # tanh output range

    ref = jax.block_until_ready(jax.jit(_reference_forward)(z, params))
    np.testing.assert_allclose(np.asarray(out), np.asarray(ref),
                               rtol=2e-2, atol=3e-3)
    print("KERNEL_OK")
</pallas_src>

<mosaic_0001>
module attributes {stable_mosaic.version = 11 : i64} {
  func.func @_generator_kernel(%arg0: memref<256x128xf32, #tpu.memory_space<vmem>>, %arg1: memref<32x256xf32, #tpu.memory_space<vmem>>, %arg2: memref<32x1xf32, #tpu.memory_space<vmem>>, %arg3: memref<32x1xf32, #tpu.memory_space<vmem>>, %arg4: memref<64x288xf32, #tpu.memory_space<vmem>>, %arg5: memref<3x3x1x128xf32, #tpu.memory_space<vmem>>, %arg6: memref<512x128xbf16, #tpu.memory_space<vmem>>, %arg7: memref<16x1xf32, #tpu.memory_space<vmem>>, %arg8: memref<16x1xf32, #tpu.memory_space<vmem>>, %arg9: memref<32x144xf32, #tpu.memory_space<vmem>>, %arg10: memref<3x3x1x128xf32, #tpu.memory_space<vmem>>, %arg11: memref<512x512xbf16, #tpu.memory_space<vmem>>, %arg12: memref<8x1xf32, #tpu.memory_space<vmem>>, %arg13: memref<8x1xf32, #tpu.memory_space<vmem>>, %arg14: memref<32x72xf32, #tpu.memory_space<vmem>>, %arg15: memref<3x3x1x512xf32, #tpu.memory_space<vmem>>, %arg16: memref<2x2x8x512xf32, #tpu.memory_space<vmem>>, %arg17: memref<288x128xf32, #tpu.memory_space<vmem>>, %arg18: memref<144x128xf32, #tpu.memory_space<vmem>>, %arg19: memref<72x512xf32, #tpu.memory_space<vmem>>) attributes {dimension_semantics = [], scalar_prefetch = 0 : i64, scratch_operands = 3 : i64, tpu.core_type = #tpu.core_type<tc>} {
    %c0 = arith.constant 0 : index
    %c0_0 = arith.constant 0 : index
    %0 = vector.load %arg1[%c0, %c0_0] : memref<32x256xf32, #tpu.memory_space<vmem>>, vector<32x256xf32>
    %c0_1 = arith.constant 0 : index
    %c0_2 = arith.constant 0 : index
    %1 = vector.load %arg0[%c0_1, %c0_2] : memref<256x128xf32, #tpu.memory_space<vmem>>, vector<256x128xf32>
    %cst = arith.constant dense<0.000000e+00> : vector<32x128xf32>
    %2 = tpu.matmul %0, %1, %cst {dimension_numbers = #tpu.dot_dimension_numbers<[1], [0], [0], [1], [0, 0, 1, 1], [], []>} : vector<32x256xf32>, vector<256x128xf32>, vector<32x128xf32> -> vector<32x128xf32>
    %c0_3 = arith.constant 0 : index
    %c0_4 = arith.constant 0 : index
    %3 = vector.load %arg2[%c0_3, %c0_4] : memref<32x1xf32, #tpu.memory_space<vmem>>, vector<32x1xf32>
    %c0_5 = arith.constant 0 : index
    %c0_6 = arith.constant 0 : index
    %4 = vector.load %arg3[%c0_5, %c0_6] : memref<32x1xf32, #tpu.memory_space<vmem>>, vector<32x1xf32>
    %cst_7 = arith.constant dense<0.000000e+00> : vector<32xf32>
    %5 = vector.multi_reduction <add>, %2, %cst_7 [1] : vector<32x128xf32> to vector<32xf32>
    %6 = vector.shape_cast %5 : vector<32xf32> to vector<32x1xf32>
    %cst_8 = arith.constant 3.125000e-02 : f32
    %7 = vector.broadcast %cst_8 : f32 to vector<32x1xf32>
    %8 = arith.mulf %6, %7 : vector<32x1xf32>
    %9 = arith.mulf %2, %2 : vector<32x128xf32>
    %cst_9 = arith.constant dense<0.000000e+00> : vector<32xf32>
    %10 = vector.multi_reduction <add>, %9, %cst_9 [1] : vector<32x128xf32> to vector<32xf32>
    %11 = vector.shape_cast %10 : vector<32xf32> to vector<32x1xf32>
    %cst_10 = arith.constant 3.125000e-02 : f32
    %12 = vector.broadcast %cst_10 : f32 to vector<32x1xf32>
    %13 = arith.mulf %11, %12 : vector<32x1xf32>
    %14 = arith.mulf %8, %8 : vector<32x1xf32>
    %15 = arith.subf %13, %14 : vector<32x1xf32>
    %cst_11 = arith.constant 9.99999974E-6 : f32
    %16 = vector.broadcast %cst_11 : f32 to vector<32x1xf32>
    %17 = arith.addf %15, %16 : vector<32x1xf32>
    %18 = math.rsqrt %17 : vector<32x1xf32>
    %19 = arith.mulf %3, %18 : vector<32x1xf32>
    %20 = arith.mulf %8, %19 : vector<32x1xf32>
    %21 = arith.subf %4, %20 : vector<32x1xf32>
    %22 = vector.broadcast %19 : vector<32x1xf32> to vector<32x128xf32>
    %23 = arith.mulf %2, %22 : vector<32x128xf32>
    %24 = vector.broadcast %21 : vector<32x1xf32> to vector<32x128xf32>
    %25 = arith.addf %23, %24 : vector<32x128xf32>
    %cst_12 = arith.constant 0.000000e+00 : f32
    %26 = vector.broadcast %cst_12 : f32 to vector<32x128xf32>
    %27 = arith.maximumf %25, %26 : vector<32x128xf32>
    %c5_i32 = arith.constant 5 : i32
    %28 = tpu.dynamic_rotate %27 by %c5_i32 dim 1 : vector<32x128xf32>, i32 -> vector<32x128xf32>
    %c0_13 = arith.constant 0 : index
    %c0_14 = arith.constant 0 : index
    %c0_15 = arith.constant 0 : index
    %c0_16 = arith.constant 0 : index
    %29 = vector.load %arg5[%c0_13, %c0_14, %c0_15, %c0_16] : memref<3x3x1x128xf32, #tpu.memory_space<vmem>>, vector<1x1x1x128xf32>
    %30 = vector.shape_cast %29 : vector<1x1x1x128xf32> to vector<1x128xf32>
    %31 = vector.broadcast %30 : vector<1x128xf32> to vector<32x128xf32>
    %32 = arith.mulf %28, %31 : vector<32x128xf32>
    %c0_17 = arith.constant 0 : index
    %c0_18 = arith.constant 0 : index
    %33 = vector.load %arg17[%c0_17, %c0_18] : memref<288x128xf32, #tpu.memory_space<vmem>>, vector<32x128xf32>
    tpu.vector_store %arg17[%c0_17, %c0_18], %32 {strides = array<i32>} : memref<288x128xf32, #tpu.memory_space<vmem>>, vector<32x128xf32>,
    %c4_i32 = arith.constant 4 : i32
    %34 = tpu.dynamic_rotate %27 by %c4_i32 dim 1 : vector<32x128xf32>, i32 -> vector<32x128xf32>
    %c0_19 = arith.constant 0 : index
    %c1 = arith.constant 1 : index
    %c0_20 = arith.constant 0 : index
    %c0_21 = arith.constant 0 : index
    %35 = vector.load %arg5[%c0_19, %c1, %c0_20, %c0_21] : memref<3x3x1x128xf32, #tpu.memory_space<vmem>>, vector<1x1x1x128xf32>
    %36 = vector.shape_cast %35 : vector<1x1x1x128xf32> to vector<1x128xf32>
    %37 = vector.broadcast %36 : vector<1x128xf32> to vector<32x128xf32>
    %38 = arith.mulf %34, %37 : vector<32x128xf32>
    %c32 = arith.constant 32 : index
    %c0_22 = arith.constant 0 : index
    %39 = vector.load %arg17[%c32, %c0_22] : memref<288x128xf32, #tpu.memory_space<vmem>>, vector<32x128xf32>
    tpu.vector_store %arg17[%c32, %c0_22], %38 {strides = array<i32>} : memref<288x128xf32, #tpu.memory_space<vmem>>, vector<32x128xf32>,
    %c3_i32 = arith.constant 3 : i32
    %40 = tpu.dynamic_rotate %27 by %c3_i32 dim 1 : vector<32x128xf32>, i32 -> vector<32x128xf32>
    %c0_23 = arith.constant 0 : index
    %c2 = arith.constant 2 : index
    %c0_24 = arith.constant 0 : index
    %c0_25 = arith.constant 0 : index
    %41 = vector.load %arg5[%c0_23, %c2, %c0_24, %c0_25] : memref<3x3x1x128xf32, #tpu.memory_space<vmem>>, vector<1x1x1x128xf32>
    %42 = vector.shape_cast %41 : vector<1x1x1x128xf32> to vector<1x128xf32>
    %43 = vector.broadcast %42 : vector<1x128xf32> to vector<32x128xf32>
    %44 = arith.mulf %40, %43 : vector<32x128xf32>
    %c64 = arith.constant 64 : index
    %c0_26 = arith.constant 0 : index
    %45 = vector.load %arg17[%c64, %c0_26] : memref<288x128xf32, #tpu.memory_space<vmem>>, vector<32x128xf32>
    tpu.vector_store %arg17[%c64, %c0_26], %44 {strides = array<i32>} : memref<288x128xf32, #tpu.memory_space<vmem>>, vector<32x128xf32>,
    %c1_i32 = arith.constant 1 : i32
    %46 = tpu.dynamic_rotate %27 by %c1_i32 dim 1 : vector<32x128xf32>, i32 -> vector<32x128xf32>
    %c1_27 = arith.constant 1 : index
    %c0_28 = arith.constant 0 : index
    %c0_29 = arith.constant 0 : index
    %c0_30 = arith.constant 0 : index
    %47 = vector.load %arg5[%c1_27, %c0_28, %c0_29, %c0_30] : memref<3x3x1x128xf32, #tpu.memory_space<vmem>>, vector<1x1x1x128xf32>
    %48 = vector.shape_cast %47 : vector<1x1x1x128xf32> to vector<1x128xf32>
    %49 = vector.broadcast %48 : vector<1x128xf32> to vector<32x128xf32>
    %50 = arith.mulf %46, %49 : vector<32x128xf32>
    %c96 = arith.constant 96 : index
    %c0_31 = arith.constant 0 : index
    %51 = vector.load %arg17[%c96, %c0_31] : memref<288x128xf32, #tpu.memory_space<vmem>>, vector<32x128xf32>
    tpu.vector_store %arg17[%c96, %c0_31], %50 {strides = array<i32>} : memref<288x128xf32, #tpu.memory_space<vmem>>, vector<32x128xf32>,
    %c1_32 = arith.constant 1 : index
    %c1_33 = arith.constant 1 : index
    %c0_34 = arith.constant 0 : index
    %c0_35 = arith.constant 0 : index
    %52 = vector.load %arg5[%c1_32, %c1_33, %c0_34, %c0_35] : memref<3x3x1x128xf32, #tpu.memory_space<vmem>>, vector<1x1x1x128xf32>
    %53 = vector.shape_cast %52 : vector<1x1x1x128xf32> to vector<1x128xf32>
    %54 = vector.broadcast %53 : vector<1x128xf32> to vector<32x128xf32>
    %55 = arith.mulf %27, %54 : vector<32x128xf32>
    %c128 = arith.constant 128 : index
    %c0_36 = arith.constant 0 : index
    %56 = vector.load %arg17[%c128, %c0_36] : memref<288x128xf32, #tpu.memory_space<vmem>>, vector<32x128xf32>
    tpu.vector_store %arg17[%c128, %c0_36], %55 {strides = array<i32>} : memref<288x128xf32, #tpu.memory_space<vmem>>, vector<32x128xf32>,
    %c127_i32 = arith.constant 127 : i32
    %57 = tpu.dynamic_rotate %27 by %c127_i32 dim 1 : vector<32x128xf32>, i32 -> vector<32x128xf32>
    %c1_37 = arith.constant 1 : index
    %c2_38 = arith.constant 2 : index
    %c0_39 = arith.constant 0 : index
    %c0_40 = arith.constant 0 : index
    %58 = vector.load %arg5[%c1_37, %c2_38, %c0_39, %c0_40] : memref<3x3x1x128xf32, #tpu.memory_space<vmem>>, vector<1x1x1x128xf32>
    %59 = vector.shape_cast %58 : vector<1x1x1x128xf32> to vector<1x128xf32>
    %60 = vector.broadcast %59 : vector<1x128xf32> to vector<32x128xf32>
    %61 = arith.mulf %57, %60 : vector<32x128xf32>
    %c160 = arith.constant 160 : index
    %c0_41 = arith.constant 0 : index
    %62 = vector.load %arg17[%c160, %c0_41] : memref<288x128xf32, #tpu.memory_space<vmem>>, vector<32x128xf32>
    tpu.vector_store %arg17[%c160, %c0_41], %61 {strides = array<i32>} : memref<288x128xf32, #tpu.memory_space<vmem>>, vector<32x128xf32>,
    %c125_i32 = arith.constant 125 : i32
    %63 = tpu.dynamic_rotate %27 by %c125_i32 dim 1 : vector<32x128xf32>, i32 -> vector<32x128xf32>
    %c2_42 = arith.constant 2 : index
    %c0_43 = arith.constant 0 : index
    %c0_44 = arith.constant 0 : index
    %c0_45 = arith.constant 0 : index
    %64 = vector.load %arg5[%c2_42, %c0_43, %c0_44, %c0_45] : memref<3x3x1x128xf32, #tpu.memory_space<vmem>>, vector<1x1x1x128xf32>
    %65 = vector.shape_cast %64 : vector<1x1x1x128xf32> to vector<1x128xf32>
    %66 = vector.broadcast %65 : vector<1x128xf32> to vector<32x128xf32>
    %67 = arith.mulf %63, %66 : vector<32x128xf32>
    %c192 = arith.constant 192 : index
    %c0_46 = arith.constant 0 : index
    %68 = vector.load %arg17[%c192, %c0_46] : memref<288x128xf32, #tpu.memory_space<vmem>>, vector<32x128xf32>
    tpu.vector_store %arg17[%c192, %c0_46], %67 {strides = array<i32>} : memref<288x128xf32, #tpu.memory_space<vmem>>, vector<32x128xf32>,
    %c124_i32 = arith.constant 124 : i32
    %69 = tpu.dynamic_rotate %27 by %c124_i32 dim 1 : vector<32x128xf32>, i32 -> vector<32x128xf32>
    %c2_47 = arith.constant 2 : index
    %c1_48 = arith.constant 1 : index
    %c0_49 = arith.constant 0 : index
    %c0_50 = arith.constant 0 : index
    %70 = vector.load %arg5[%c2_47, %c1_48, %c0_49, %c0_50] : memref<3x3x1x128xf32, #tpu.memory_space<vmem>>, vector<1x1x1x128xf32>
    %71 = vector.shape_cast %70 : vector<1x1x1x128xf32> to vector<1x128xf32>
    %72 = vector.broadcast %71 : vector<1x128xf32> to vector<32x128xf32>
    %73 = arith.mulf %69, %72 : vector<32x128xf32>
    %c224 = arith.constant 224 : index
    %c0_51 = arith.constant 0 : index
    %74 = vector.load %arg17[%c224, %c0_51] : memref<288x128xf32, #tpu.memory_space<vmem>>, vector<32x128xf32>
    tpu.vector_store %arg17[%c224, %c0_51], %73 {strides = array<i32>} : memref<288x128xf32, #tpu.memory_space<vmem>>, vector<32x128xf32>,
    %c123_i32 = arith.constant 123 : i32
    %75 = tpu.dynamic_rotate %27 by %c123_i32 dim 1 : vector<32x128xf32>, i32 -> vector<32x128xf32>
    %c2_52 = arith.constant 2 : index
    %c2_53 = arith.constant 2 : index
    %c0_54 = arith.constant 0 : index
    %c0_55 = arith.constant 0 : index
    %76 = vector.load %arg5[%c2_52, %c2_53, %c0_54, %c0_55] : memref<3x3x1x128xf32, #tpu.memory_space<vmem>>, vector<1x1x1x128xf32>
    %77 = vector.shape_cast %76 : vector<1x1x1x128xf32> to vector<1x128xf32>
    %78 = vector.broadcast %77 : vector<1x128xf32> to vector<32x128xf32>
    %79 = arith.mulf %75, %78 : vector<32x128xf32>
    %c256 = arith.constant 256 : index
    %c0_56 = arith.constant 0 : index
    %80 = vector.load %arg17[%c256, %c0_56] : memref<288x128xf32, #tpu.memory_space<vmem>>, vector<32x128xf32>
    tpu.vector_store %arg17[%c256, %c0_56], %79 {strides = array<i32>} : memref<288x128xf32, #tpu.memory_space<vmem>>, vector<32x128xf32>,
    %c0_57 = arith.constant 0 : index
    %c0_58 = arith.constant 0 : index
    %81 = vector.load %arg4[%c0_57, %c0_58] : memref<64x288xf32, #tpu.memory_space<vmem>>, vector<64x288xf32>
    %c0_59 = arith.constant 0 : index
    %c0_60 = arith.constant 0 : index
    %82 = vector.load %arg17[%c0_59, %c0_60] : memref<288x128xf32, #tpu.memory_space<vmem>>, vector<288x128xf32>
    %cst_61 = arith.constant dense<0.000000e+00> : vector<64x128xf32>
    %83 = tpu.matmul %81, %82, %cst_61 {dimension_numbers = #tpu.dot_dimension_numbers<[1], [0], [0], [1], [0, 0, 1, 1], [], []>} : vector<64x288xf32>, vector<288x128xf32>, vector<64x128xf32> -> vector<64x128xf32>
    %84 = vector.extract_strided_slice %83 {offsets = [0, 0], sizes = [16, 128], strides = [1, 1]} : vector<64x128xf32> to vector<16x128xf32>
    %85 = vector.extract_strided_slice %83 {offsets = [16, 0], sizes = [16, 128], strides = [1, 1]} : vector<64x128xf32> to vector<16x128xf32>
    %86 = vector.extract_strided_slice %83 {offsets = [32, 0], sizes = [16, 128], strides = [1, 1]} : vector<64x128xf32> to vector<16x128xf32>
    %87 = vector.extract_strided_slice %83 {offsets = [48, 0], sizes = [16, 128], strides = [1, 1]} : vector<64x128xf32> to vector<16x128xf32>
    %88 = tpu.concatenate %84, %85, %86, %87 in 1 : vector<16x128xf32>, vector<16x128xf32>, vector<16x128xf32>, vector<16x128xf32> -> vector<16x512xf32>
    %c0_62 = arith.constant 0 : index
    %c0_63 = arith.constant 0 : index
    %89 = vector.load %arg7[%c0_62, %c0_63] : memref<16x1xf32, #tpu.memory_space<vmem>>, vector<16x1xf32>
    %c0_64 = arith.constant 0 : index
    %c0_65 = arith.constant 0 : index
    %90 = vector.load %arg8[%c0_64, %c0_65] : memref<16x1xf32, #tpu.memory_space<vmem>>, vector<16x1xf32>
    %cst_66 = arith.constant dense<0.000000e+00> : vector<16xf32>
    %91 = vector.multi_reduction <add>, %88, %cst_66 [1] : vector<16x512xf32> to vector<16xf32>
    %92 = vector.shape_cast %91 : vector<16xf32> to vector<16x1xf32>
    %cst_67 = arith.constant 7.812500e-03 : f32
    %93 = vector.broadcast %cst_67 : f32 to vector<16x1xf32>
    %94 = arith.mulf %92, %93 : vector<16x1xf32>
    %95 = arith.mulf %88, %88 : vector<16x512xf32>
    %cst_68 = arith.constant dense<0.000000e+00> : vector<16xf32>
    %96 = vector.multi_reduction <add>, %95, %cst_68 [1] : vector<16x512xf32> to vector<16xf32>
    %97 = vector.shape_cast %96 : vector<16xf32> to vector<16x1xf32>
    %cst_69 = arith.constant 7.812500e-03 : f32
    %98 = vector.broadcast %cst_69 : f32 to vector<16x1xf32>
    %99 = arith.mulf %97, %98 : vector<16x1xf32>
    %100 = arith.mulf %94, %94 : vector<16x1xf32>
    %101 = arith.subf %99, %100 : vector<16x1xf32>
    %cst_70 = arith.constant 9.99999974E-6 : f32
    %102 = vector.broadcast %cst_70 : f32 to vector<16x1xf32>
    %103 = arith.addf %101, %102 : vector<16x1xf32>
    %104 = math.rsqrt %103 : vector<16x1xf32>
    %105 = arith.mulf %89, %104 : vector<16x1xf32>
    %106 = arith.mulf %94, %105 : vector<16x1xf32>
    %107 = arith.subf %90, %106 : vector<16x1xf32>
    %108 = vector.broadcast %105 : vector<16x1xf32> to vector<16x512xf32>
    %109 = arith.mulf %88, %108 : vector<16x512xf32>
    %110 = vector.broadcast %107 : vector<16x1xf32> to vector<16x512xf32>
    %111 = arith.addf %109, %110 : vector<16x512xf32>
    %cst_71 = arith.constant 0.000000e+00 : f32
    %112 = vector.broadcast %cst_71 : f32 to vector<16x512xf32>
    %113 = arith.maximumf %111, %112 : vector<16x512xf32>
    %114 = arith.truncf %113 : vector<16x512xf32> to vector<16x512xbf16>
    %c0_72 = arith.constant 0 : index
    %c0_73 = arith.constant 0 : index
    %115 = vector.load %arg6[%c0_72, %c0_73] : memref<512x128xbf16, #tpu.memory_space<vmem>>, vector<512x128xbf16>
    %cst_74 = arith.constant dense<0.000000e+00> : vector<16x128xf32>
    %116 = tpu.matmul %114, %115, %cst_74 {dimension_numbers = #tpu.dot_dimension_numbers<[1], [0], [0], [1], [0, 0, 1, 1], [], []>} : vector<16x512xbf16>, vector<512x128xbf16>, vector<16x128xf32> -> vector<16x128xf32>
    %c9_i32 = arith.constant 9 : i32
    %117 = tpu.dynamic_rotate %116 by %c9_i32 dim 1 : vector<16x128xf32>, i32 -> vector<16x128xf32>
    %c0_75 = arith.constant 0 : index
    %c0_76 = arith.constant 0 : index
    %c0_77 = arith.constant 0 : index
    %c0_78 = arith.constant 0 : index
    %118 = vector.load %arg10[%c0_75, %c0_76, %c0_77, %c0_78] : memref<3x3x1x128xf32, #tpu.memory_space<vmem>>, vector<1x1x1x128xf32>
    %119 = vector.shape_cast %118 : vector<1x1x1x128xf32> to vector<1x128xf32>
    %120 = vector.broadcast %119 : vector<1x128xf32> to vector<16x128xf32>
    %121 = arith.mulf %117, %120 : vector<16x128xf32>
    %c0_79 = arith.constant 0 : index
    %c0_80 = arith.constant 0 : index
    %122 = vector.load %arg18[%c0_79, %c0_80] : memref<144x128xf32, #tpu.memory_space<vmem>>, vector<16x128xf32>
    tpu.vector_store %arg18[%c0_79, %c0_80], %121 {strides = array<i32>} : memref<144x128xf32, #tpu.memory_space<vmem>>, vector<16x128xf32>,
    %c8_i32 = arith.constant 8 : i32
    %123 = tpu.dynamic_rotate %116 by %c8_i32 dim 1 : vector<16x128xf32>, i32 -> vector<16x128xf32>
    %c0_81 = arith.constant 0 : index
    %c1_82 = arith.constant 1 : index
    %c0_83 = arith.constant 0 : index
    %c0_84 = arith.constant 0 : index
    %124 = vector.load %arg10[%c0_81, %c1_82, %c0_83, %c0_84] : memref<3x3x1x128xf32, #tpu.memory_space<vmem>>, vector<1x1x1x128xf32>
    %125 = vector.shape_cast %124 : vector<1x1x1x128xf32> to vector<1x128xf32>
    %126 = vector.broadcast %125 : vector<1x128xf32> to vector<16x128xf32>
    %127 = arith.mulf %123, %126 : vector<16x128xf32>
    %c16 = arith.constant 16 : index
    %c0_85 = arith.constant 0 : index
    %128 = vector.load %arg18[%c16, %c0_85] : memref<144x128xf32, #tpu.memory_space<vmem>>, vector<16x128xf32>
    tpu.vector_store %arg18[%c16, %c0_85], %127 {strides = array<i32>} : memref<144x128xf32, #tpu.memory_space<vmem>>, vector<16x128xf32>,
    %c7_i32 = arith.constant 7 : i32
    %129 = tpu.dynamic_rotate %116 by %c7_i32 dim 1 : vector<16x128xf32>, i32 -> vector<16x128xf32>
    %c0_86 = arith.constant 0 : index
    %c2_87 = arith.constant 2 : index
    %c0_88 = arith.constant 0 : index
    %c0_89 = arith.constant 0 : index
    %130 = vector.load %arg10[%c0_86, %c2_87, %c0_88, %c0_89] : memref<3x3x1x128xf32, #tpu.memory_space<vmem>>, vector<1x1x1x128xf32>
    %131 = vector.shape_cast %130 : vector<1x1x1x128xf32> to vector<1x128xf32>
    %132 = vector.broadcast %131 : vector<1x128xf32> to vector<16x128xf32>
    %133 = arith.mulf %129, %132 : vector<16x128xf32>
    %c32_90 = arith.constant 32 : index
    %c0_91 = arith.constant 0 : index
    %134 = vector.load %arg18[%c32_90, %c0_91] : memref<144x128xf32, #tpu.memory_space<vmem>>, vector<16x128xf32>
    tpu.vector_store %arg18[%c32_90, %c0_91], %133 {strides = array<i32>} : memref<144x128xf32, #tpu.memory_space<vmem>>, vector<16x128xf32>,
    %c1_i32_92 = arith.constant 1 : i32
    %135 = tpu.dynamic_rotate %116 by %c1_i32_92 dim 1 : vector<16x128xf32>, i32 -> vector<16x128xf32>
    %c1_93 = arith.constant 1 : index
    %c0_94 = arith.constant 0 : index
    %c0_95 = arith.constant 0 : index
    %c0_96 = arith.constant 0 : index
    %136 = vector.load %arg10[%c1_93, %c0_94, %c0_95, %c0_96] : memref<3x3x1x128xf32, #tpu.memory_space<vmem>>, vector<1x1x1x128xf32>
    %137 = vector.shape_cast %136 : vector<1x1x1x128xf32> to vector<1x128xf32>
    %138 = vector.broadcast %137 : vector<1x128xf32> to vector<16x128xf32>
    %139 = arith.mulf %135, %138 : vector<16x128xf32>
    %c48 = arith.constant 48 : index
    %c0_97 = arith.constant 0 : index
    %140 = vector.load %arg18[%c48, %c0_97] : memref<144x128xf32, #tpu.memory_space<vmem>>, vector<16x128xf32>
    tpu.vector_store %arg18[%c48, %c0_97], %139 {strides = array<i32>} : memref<144x128xf32, #tpu.memory_space<vmem>>, vector<16x128xf32>,
    %c64_98 = arith.constant 64 : index
    %c0_99 = arith.constant 0 : index
    %141 = vector.load %arg18[%c64_98, %c0_99] : memref<144x128xf32, #tpu.memory_space<vmem>>, vector<16x128xf32>
    tpu.vector_store %arg18[%c64_98, %c0_99], %116 {strides = array<i32>} : memref<144x128xf32, #tpu.memory_space<vmem>>, vector<16x128xf32>,
    %c127_i32_100 = arith.constant 127 : i32
    %142 = tpu.dynamic_rotate %116 by %c127_i32_100 dim 1 : vector<16x128xf32>, i32 -> vector<16x128xf32>
    %c1_101 = arith.constant 1 : index
    %c2_102 = arith.constant 2 : index
    %c0_103 = arith.constant 0 : index
    %c0_104 = arith.constant 0 : index
    %143 = vector.load %arg10[%c1_101, %c2_102, %c0_103, %c0_104] : memref<3x3x1x128xf32, #tpu.memory_space<vmem>>, vector<1x1x1x128xf32>
    %144 = vector.shape_cast %143 : vector<1x1x1x128xf32> to vector<1x128xf32>
    %145 = vector.broadcast %144 : vector<1x128xf32> to vector<16x128xf32>
    %146 = arith.mulf %142, %145 : vector<16x128xf32>
    %c80 = arith.constant 80 : index
    %c0_105 = arith.constant 0 : index
    %147 = vector.load %arg18[%c80, %c0_105] : memref<144x128xf32, #tpu.memory_space<vmem>>, vector<16x128xf32>
    tpu.vector_store %arg18[%c80, %c0_105], %146 {strides = array<i32>} : memref<144x128xf32, #tpu.memory_space<vmem>>, vector<16x128xf32>,
    %c121_i32 = arith.constant 121 : i32
    %148 = tpu.dynamic_rotate %116 by %c121_i32 dim 1 : vector<16x128xf32>, i32 -> vector<16x128xf32>
    %c2_106 = arith.constant 2 : index
    %c0_107 = arith.constant 0 : index
    %c0_108 = arith.constant 0 : index
    %c0_109 = arith.constant 0 : index
    %149 = vector.load %arg10[%c2_106, %c0_107, %c0_108, %c0_109] : memref<3x3x1x128xf32, #tpu.memory_space<vmem>>, vector<1x1x1x128xf32>
    %150 = vector.shape_cast %149 : vector<1x1x1x128xf32> to vector<1x128xf32>
    %151 = vector.broadcast %150 : vector<1x128xf32> to vector<16x128xf32>
    %152 = arith.mulf %148, %151 : vector<16x128xf32>
    %c96_110 = arith.constant 96 : index
    %c0_111 = arith.constant 0 : index
    %153 = vector.load %arg18[%c96_110, %c0_111] : memref<144x128xf32, #tpu.memory_space<vmem>>, vector<16x128xf32>
    tpu.vector_store %arg18[%c96_110, %c0_111], %152 {strides = array<i32>} : memref<144x128xf32, #tpu.memory_space<vmem>>, vector<16x128xf32>,
    %c120_i32 = arith.constant 120 : i32
    %154 = tpu.dynamic_rotate %116 by %c120_i32 dim 1 : vector<16x128xf32>, i32 -> vector<16x128xf32>
    %c2_112 = arith.constant 2 : index
    %c1_113 = arith.constant 1 : index
    %c0_114 = arith.constant 0 : index
    %c0_115 = arith.constant 0 : index
    %155 = vector.load %arg10[%c2_112, %c1_113, %c0_114, %c0_115] : memref<3x3x1x128xf32, #tpu.memory_space<vmem>>, vector<1x1x1x128xf32>
    %156 = vector.shape_cast %155 : vector<1x1x1x128xf32> to vector<1x128xf32>
    %157 = vector.broadcast %156 : vector<1x128xf32> to vector<16x128xf32>
    %158 = arith.mulf %154, %157 : vector<16x128xf32>
    %c112 = arith.constant 112 : index
    %c0_116 = arith.constant 0 : index
    %159 = vector.load %arg18[%c112, %c0_116] : memref<144x128xf32, #tpu.memory_space<vmem>>, vector<16x128xf32>
    tpu.vector_store %arg18[%c112, %c0_116], %158 {strides = array<i32>} : memref<144x128xf32, #tpu.memory_space<vmem>>, vector<16x128xf32>,
    %c119_i32 = arith.constant 119 : i32
    %160 = tpu.dynamic_rotate %116 by %c119_i32 dim 1 : vector<16x128xf32>, i32 -> vector<16x128xf32>
    %c2_117 = arith.constant 2 : index
    %c2_118 = arith.constant 2 : index
    %c0_119 = arith.constant 0 : index
    %c0_120 = arith.constant 0 : index
    %161 = vector.load %arg10[%c2_117, %c2_118, %c0_119, %c0_120] : memref<3x3x1x128xf32, #tpu.memory_space<vmem>>, vector<1x1x1x128xf32>
    %162 = vector.shape_cast %161 : vector<1x1x1x128xf32> to vector<1x128xf32>
    %163 = vector.broadcast %162 : vector<1x128xf32> to vector<16x128xf32>
    %164 = arith.mulf %160, %163 : vector<16x128xf32>
    %c128_121 = arith.constant 128 : index
    %c0_122 = arith.constant 0 : index
    %165 = vector.load %arg18[%c128_121, %c0_122] : memref<144x128xf32, #tpu.memory_space<vmem>>, vector<16x128xf32>
    tpu.vector_store %arg18[%c128_121, %c0_122], %164 {strides = array<i32>} : memref<144x128xf32, #tpu.memory_space<vmem>>, vector<16x128xf32>,
    %c0_123 = arith.constant 0 : index
    %c0_124 = arith.constant 0 : index
    %166 = vector.load %arg9[%c0_123, %c0_124] : memref<32x144xf32, #tpu.memory_space<vmem>>, vector<32x144xf32>
    %c0_125 = arith.constant 0 : index
    %c0_126 = arith.constant 0 : index
    %167 = vector.load %arg18[%c0_125, %c0_126] : memref<144x128xf32, #tpu.memory_space<vmem>>, vector<144x128xf32>
    %cst_127 = arith.constant dense<0.000000e+00> : vector<32x128xf32>
    %168 = tpu.matmul %166, %167, %cst_127 {dimension_numbers = #tpu.dot_dimension_numbers<[1], [0], [0], [1], [0, 0, 1, 1], [], []>} : vector<32x144xf32>, vector<144x128xf32>, vector<32x128xf32> -> vector<32x128xf32>
    %169 = vector.extract_strided_slice %168 {offsets = [0, 0], sizes = [8, 128], strides = [1, 1]} : vector<32x128xf32> to vector<8x128xf32>
    %170 = vector.extract_strided_slice %168 {offsets = [8, 0], sizes = [8, 128], strides = [1, 1]} : vector<32x128xf32> to vector<8x128xf32>
    %171 = vector.extract_strided_slice %168 {offsets = [16, 0], sizes = [8, 128], strides = [1, 1]} : vector<32x128xf32> to vector<8x128xf32>
    %172 = vector.extract_strided_slice %168 {offsets = [24, 0], sizes = [8, 128], strides = [1, 1]} : vector<32x128xf32> to vector<8x128xf32>
    %173 = tpu.concatenate %169, %170, %171, %172 in 1 : vector<8x128xf32>, vector<8x128xf32>, vector<8x128xf32>, vector<8x128xf32> -> vector<8x512xf32>
    %c0_128 = arith.constant 0 : index
    %c0_129 = arith.constant 0 : index
    %174 = vector.load %arg12[%c0_128, %c0_129] : memref<8x1xf32, #tpu.memory_space<vmem>>, vector<8x1xf32>
    %c0_130 = arith.constant 0 : index
    %c0_131 = arith.constant 0 : index
    %175 = vector.load %arg13[%c0_130, %c0_131] : memref<8x1xf32, #tpu.memory_space<vmem>>, vector<8x1xf32>
    %cst_132 = arith.constant dense<0.000000e+00> : vector<8xf32>
    %176 = vector.multi_reduction <add>, %173, %cst_132 [1] : vector<8x512xf32> to vector<8xf32>
    %177 = vector.shape_cast %176 : vector<8xf32> to vector<8x1xf32>
    %cst_133 = arith.constant 0.001953125 : f32
    %178 = vector.broadcast %cst_133 : f32 to vector<8x1xf32>
    %179 = arith.mulf %177, %178 : vector<8x1xf32>
    %180 = arith.mulf %173, %173 : vector<8x512xf32>
    %cst_134 = arith.constant dense<0.000000e+00> : vector<8xf32>
    %181 = vector.multi_reduction <add>, %180, %cst_134 [1] : vector<8x512xf32> to vector<8xf32>
    %182 = vector.shape_cast %181 : vector<8xf32> to vector<8x1xf32>
    %cst_135 = arith.constant 0.001953125 : f32
    %183 = vector.broadcast %cst_135 : f32 to vector<8x1xf32>
    %184 = arith.mulf %182, %183 : vector<8x1xf32>
    %185 = arith.mulf %179, %179 : vector<8x1xf32>
    %186 = arith.subf %184, %185 : vector<8x1xf32>
    %cst_136 = arith.constant 9.99999974E-6 : f32
    %187 = vector.broadcast %cst_136 : f32 to vector<8x1xf32>
    %188 = arith.addf %186, %187 : vector<8x1xf32>
    %189 = math.rsqrt %188 : vector<8x1xf32>
    %190 = arith.mulf %174, %189 : vector<8x1xf32>
    %191 = arith.mulf %179, %190 : vector<8x1xf32>
    %192 = arith.subf %175, %191 : vector<8x1xf32>
    %193 = vector.broadcast %190 : vector<8x1xf32> to vector<8x512xf32>
    %194 = arith.mulf %173, %193 : vector<8x512xf32>
    %195 = vector.broadcast %192 : vector<8x1xf32> to vector<8x512xf32>
    %196 = arith.addf %194, %195 : vector<8x512xf32>
    %cst_137 = arith.constant 0.000000e+00 : f32
    %197 = vector.broadcast %cst_137 : f32 to vector<8x512xf32>
    %198 = arith.maximumf %196, %197 : vector<8x512xf32>
    %199 = arith.truncf %198 : vector<8x512xf32> to vector<8x512xbf16>
    %c0_138 = arith.constant 0 : index
    %c0_139 = arith.constant 0 : index
    %200 = vector.load %arg11[%c0_138, %c0_139] : memref<512x512xbf16, #tpu.memory_space<vmem>>, vector<512x512xbf16>
    %cst_140 = arith.constant dense<0.000000e+00> : vector<8x512xf32>
    %201 = tpu.matmul %199, %200, %cst_140 {dimension_numbers = #tpu.dot_dimension_numbers<[1], [0], [0], [1], [0, 0, 1, 1], [], []>} : vector<8x512xbf16>, vector<512x512xbf16>, vector<8x512xf32> -> vector<8x512xf32>
    %c17_i32 = arith.constant 17 : i32
    %202 = tpu.dynamic_rotate %201 by %c17_i32 dim 1 : vector<8x512xf32>, i32 -> vector<8x512xf32>
    %c0_141 = arith.constant 0 : index
    %c0_142 = arith.constant 0 : index
    %c0_143 = arith.constant 0 : index
    %c0_144 = arith.constant 0 : index
    %203 = vector.load %arg15[%c0_141, %c0_142, %c0_143, %c0_144] : memref<3x3x1x512xf32, #tpu.memory_space<vmem>>, vector<1x1x1x512xf32>
    %204 = vector.shape_cast %203 : vector<1x1x1x512xf32> to vector<1x512xf32>
    %205 = vector.broadcast %204 : vector<1x512xf32> to vector<8x512xf32>
    %206 = arith.mulf %202, %205 : vector<8x512xf32>
    %c0_145 = arith.constant 0 : index
    %c0_146 = arith.constant 0 : index
    %207 = vector.load %arg19[%c0_145, %c0_146] : memref<72x512xf32, #tpu.memory_space<vmem>>, vector<8x512xf32>
    tpu.vector_store %arg19[%c0_145, %c0_146], %206 {strides = array<i32>} : memref<72x512xf32, #tpu.memory_space<vmem>>, vector<8x512xf32>,
    %c16_i32 = arith.constant 16 : i32
    %208 = tpu.dynamic_rotate %201 by %c16_i32 dim 1 : vector<8x512xf32>, i32 -> vector<8x512xf32>
    %c0_147 = arith.constant 0 : index
    %c1_148 = arith.constant 1 : index
    %c0_149 = arith.constant 0 : index
    %c0_150 = arith.constant 0 : index
    %209 = vector.load %arg15[%c0_147, %c1_148, %c0_149, %c0_150] : memref<3x3x1x512xf32, #tpu.memory_space<vmem>>, vector<1x1x1x512xf32>
    %210 = vector.shape_cast %209 : vector<1x1x1x512xf32> to vector<1x512xf32>
    %211 = vector.broadcast %210 : vector<1x512xf32> to vector<8x512xf32>
    %212 = arith.mulf %208, %211 : vector<8x512xf32>
    %c8 = arith.constant 8 : index
    %c0_151 = arith.constant 0 : index
    %213 = vector.load %arg19[%c8, %c0_151] : memref<72x512xf32, #tpu.memory_space<vmem>>, vector<8x512xf32>
    tpu.vector_store %arg19[%c8, %c0_151], %212 {strides = array<i32>} : memref<72x512xf32, #tpu.memory_space<vmem>>, vector<8x512xf32>,
    %c15_i32 = arith.constant 15 : i32
    %214 = tpu.dynamic_rotate %201 by %c15_i32 dim 1 : vector<8x512xf32>, i32 -> vector<8x512xf32>
    %c0_152 = arith.constant 0 : index
    %c2_153 = arith.constant 2 : index
    %c0_154 = arith.constant 0 : index
    %c0_155 = arith.constant 0 : index
    %215 = vector.load %arg15[%c0_152, %c2_153, %c0_154, %c0_155] : memref<3x3x1x512xf32, #tpu.memory_space<vmem>>, vector<1x1x1x512xf32>
    %216 = vector.shape_cast %215 : vector<1x1x1x512xf32> to vector<1x512xf32>
    %217 = vector.broadcast %216 : vector<1x512xf32> to vector<8x512xf32>
    %218 = arith.mulf %214, %217 : vector<8x512xf32>
    %c16_156 = arith.constant 16 : index
    %c0_157 = arith.constant 0 : index
    %219 = vector.load %arg19[%c16_156, %c0_157] : memref<72x512xf32, #tpu.memory_space<vmem>>, vector<8x512xf32>
    tpu.vector_store %arg19[%c16_156, %c0_157], %218 {strides = array<i32>} : memref<72x512xf32, #tpu.memory_space<vmem>>, vector<8x512xf32>,
    %c1_i32_158 = arith.constant 1 : i32
    %220 = tpu.dynamic_rotate %201 by %c1_i32_158 dim 1 : vector<8x512xf32>, i32 -> vector<8x512xf32>
    %c1_159 = arith.constant 1 : index
    %c0_160 = arith.constant 0 : index
    %c0_161 = arith.constant 0 : index
    %c0_162 = arith.constant 0 : index
    %221 = vector.load %arg15[%c1_159, %c0_160, %c0_161, %c0_162] : memref<3x3x1x512xf32, #tpu.memory_space<vmem>>, vector<1x1x1x512xf32>
    %222 = vector.shape_cast %221 : vector<1x1x1x512xf32> to vector<1x512xf32>
    %223 = vector.broadcast %222 : vector<1x512xf32> to vector<8x512xf32>
    %224 = arith.mulf %220, %223 : vector<8x512xf32>
    %c24 = arith.constant 24 : index
    %c0_163 = arith.constant 0 : index
    %225 = vector.load %arg19[%c24, %c0_163] : memref<72x512xf32, #tpu.memory_space<vmem>>, vector<8x512xf32>
    tpu.vector_store %arg19[%c24, %c0_163], %224 {strides = array<i32>} : memref<72x512xf32, #tpu.memory_space<vmem>>, vector<8x512xf32>,
    %c32_164 = arith.constant 32 : index
    %c0_165 = arith.constant 0 : index
    %226 = vector.load %arg19[%c32_164, %c0_165] : memref<72x512xf32, #tpu.memory_space<vmem>>, vector<8x512xf32>
    tpu.vector_store %arg19[%c32_164, %c0_165], %201 {strides = array<i32>} : memref<72x512xf32, #tpu.memory_space<vmem>>, vector<8x512xf32>,
    %c511_i32 = arith.constant 511 : i32
    %227 = tpu.dynamic_rotate %201 by %c511_i32 dim 1 : vector<8x512xf32>, i32 -> vector<8x512xf32>
    %c1_166 = arith.constant 1 : index
    %c2_167 = arith.constant 2 : index
    %c0_168 = arith.constant 0 : index
    %c0_169 = arith.constant 0 : index
    %228 = vector.load %arg15[%c1_166, %c2_167, %c0_168, %c0_169] : memref<3x3x1x512xf32, #tpu.memory_space<vmem>>, vector<1x1x1x512xf32>
    %229 = vector.shape_cast %228 : vector<1x1x1x512xf32> to vector<1x512xf32>
    %230 = vector.broadcast %229 : vector<1x512xf32> to vector<8x512xf32>
    %231 = arith.mulf %227, %230 : vector<8x512xf32>
    %c40 = arith.constant 40 : index
    %c0_170 = arith.constant 0 : index
    %232 = vector.load %arg19[%c40, %c0_170] : memref<72x512xf32, #tpu.memory_space<vmem>>, vector<8x512xf32>
    tpu.vector_store %arg19[%c40, %c0_170], %231 {strides = array<i32>} : memref<72x512xf32, #tpu.memory_space<vmem>>, vector<8x512xf32>,
    %c497_i32 = arith.constant 497 : i32
    %233 = tpu.dynamic_rotate %201 by %c497_i32 dim 1 : vector<8x512xf32>, i32 -> vector<8x512xf32>
    %c2_171 = arith.constant 2 : index
    %c0_172 = arith.constant 0 : index
    %c0_173 = arith.constant 0 : index
    %c0_174 = arith.constant 0 : index
    %234 = vector.load %arg15[%c2_171, %c0_172, %c0_173, %c0_174] : memref<3x3x1x512xf32, #tpu.memory_space<vmem>>, vector<1x1x1x512xf32>
    %235 = vector.shape_cast %234 : vector<1x1x1x512xf32> to vector<1x512xf32>
    %236 = vector.broadcast %235 : vector<1x512xf32> to vector<8x512xf32>
    %237 = arith.mulf %233, %236 : vector<8x512xf32>
    %c48_175 = arith.constant 48 : index
    %c0_176 = arith.constant 0 : index
    %238 = vector.load %arg19[%c48_175, %c0_176] : memref<72x512xf32, #tpu.memory_space<vmem>>, vector<8x512xf32>
    tpu.vector_store %arg19[%c48_175, %c0_176], %237 {strides = array<i32>} : memref<72x512xf32, #tpu.memory_space<vmem>>, vector<8x512xf32>,
    %c496_i32 = arith.constant 496 : i32
    %239 = tpu.dynamic_rotate %201 by %c496_i32 dim 1 : vector<8x512xf32>, i32 -> vector<8x512xf32>
    %c2_177 = arith.constant 2 : index
    %c1_178 = arith.constant 1 : index
    %c0_179 = arith.constant 0 : index
    %c0_180 = arith.constant 0 : index
    %240 = vector.load %arg15[%c2_177, %c1_178, %c0_179, %c0_180] : memref<3x3x1x512xf32, #tpu.memory_space<vmem>>, vector<1x1x1x512xf32>
    %241 = vector.shape_cast %240 : vector<1x1x1x512xf32> to vector<1x512xf32>
    %242 = vector.broadcast %241 : vector<1x512xf32> to vector<8x512xf32>
    %243 = arith.mulf %239, %242 : vector<8x512xf32>
    %c56 = arith.constant 56 : index
    %c0_181 = arith.constant 0 : index
    %244 = vector.load %arg19[%c56, %c0_181] : memref<72x512xf32, #tpu.memory_space<vmem>>, vector<8x512xf32>
    tpu.vector_store %arg19[%c56, %c0_181], %243 {strides = array<i32>} : memref<72x512xf32, #tpu.memory_space<vmem>>, vector<8x512xf32>,
    %c495_i32 = arith.constant 495 : i32
    %245 = tpu.dynamic_rotate %201 by %c495_i32 dim 1 : vector<8x512xf32>, i32 -> vector<8x512xf32>
    %c2_182 = arith.constant 2 : index
    %c2_183 = arith.constant 2 : index
    %c0_184 = arith.constant 0 : index
    %c0_185 = arith.constant 0 : index
    %246 = vector.load %arg15[%c2_182, %c2_183, %c0_184, %c0_185] : memref<3x3x1x512xf32, #tpu.memory_space<vmem>>, vector<1x1x1x512xf32>
    %247 = vector.shape_cast %246 : vector<1x1x1x512xf32> to vector<1x512xf32>
    %248 = vector.broadcast %247 : vector<1x512xf32> to vector<8x512xf32>
    %249 = arith.mulf %245, %248 : vector<8x512xf32>
    %c64_186 = arith.constant 64 : index
    %c0_187 = arith.constant 0 : index
    %250 = vector.load %arg19[%c64_186, %c0_187] : memref<72x512xf32, #tpu.memory_space<vmem>>, vector<8x512xf32>
    tpu.vector_store %arg19[%c64_186, %c0_187], %249 {strides = array<i32>} : memref<72x512xf32, #tpu.memory_space<vmem>>, vector<8x512xf32>,
    %c0_188 = arith.constant 0 : index
    %c0_189 = arith.constant 0 : index
    %251 = vector.load %arg14[%c0_188, %c0_189] : memref<32x72xf32, #tpu.memory_space<vmem>>, vector<32x72xf32>
    %c0_190 = arith.constant 0 : index
    %c0_191 = arith.constant 0 : index
    %252 = vector.load %arg19[%c0_190, %c0_191] : memref<72x512xf32, #tpu.memory_space<vmem>>, vector<72x512xf32>
    %cst_192 = arith.constant dense<0.000000e+00> : vector<32x512xf32>
    %253 = tpu.matmul %251, %252, %cst_192 {dimension_numbers = #tpu.dot_dimension_numbers<[1], [0], [0], [1], [0, 0, 1, 1], [], []>} : vector<32x72xf32>, vector<72x512xf32>, vector<32x512xf32> -> vector<32x512xf32>
    %254 = math.tanh %253 : vector<32x512xf32>
    %255 = vector.extract_strided_slice %254 {offsets = [0, 0], sizes = [8, 512], strides = [1, 1]} : vector<32x512xf32> to vector<8x512xf32>
    %c0_193 = arith.constant 0 : index
    %c0_194 = arith.constant 0 : index
    %c0_195 = arith.constant 0 : index
    %c0_196 = arith.constant 0 : index
    %256 = vector.load %arg16[%c0_193, %c0_194, %c0_195, %c0_196] : memref<2x2x8x512xf32, #tpu.memory_space<vmem>>, vector<1x1x8x512xf32>
    %257 = vector.shape_cast %256 : vector<1x1x8x512xf32> to vector<8x512xf32>
    %258 = vector.shape_cast %255 : vector<8x512xf32> to vector<1x1x8x512xf32>
    tpu.vector_store %arg16[%c0_193, %c0_194, %c0_195, %c0_196], %258 {strides = array<i32>} : memref<2x2x8x512xf32, #tpu.memory_space<vmem>>, vector<1x1x8x512xf32>,
    %259 = vector.extract_strided_slice %254 {offsets = [8, 0], sizes = [8, 512], strides = [1, 1]} : vector<32x512xf32> to vector<8x512xf32>
    %c0_197 = arith.constant 0 : index
    %c1_198 = arith.constant 1 : index
    %c0_199 = arith.constant 0 : index
    %c0_200 = arith.constant 0 : index
    %260 = vector.load %arg16[%c0_197, %c1_198, %c0_199, %c0_200] : memref<2x2x8x512xf32, #tpu.memory_space<vmem>>, vector<1x1x8x512xf32>
    %261 = vector.shape_cast %260 : vector<1x1x8x512xf32> to vector<8x512xf32>
    %262 = vector.shape_cast %259 : vector<8x512xf32> to vector<1x1x8x512xf32>
    tpu.vector_store %arg16[%c0_197, %c1_198, %c0_199, %c0_200], %262 {strides = array<i32>} : memref<2x2x8x512xf32, #tpu.memory_space<vmem>>, vector<1x1x8x512xf32>,
    %263 = vector.extract_strided_slice %254 {offsets = [16, 0], sizes = [8, 512], strides = [1, 1]} : vector<32x512xf32> to vector<8x512xf32>
    %c1_201 = arith.constant 1 : index
    %c0_202 = arith.constant 0 : index
    %c0_203 = arith.constant 0 : index
    %c0_204 = arith.constant 0 : index
    %264 = vector.load %arg16[%c1_201, %c0_202, %c0_203, %c0_204] : memref<2x2x8x512xf32, #tpu.memory_space<vmem>>, vector<1x1x8x512xf32>
    %265 = vector.shape_cast %264 : vector<1x1x8x512xf32> to vector<8x512xf32>
    %266 = vector.shape_cast %263 : vector<8x512xf32> to vector<1x1x8x512xf32>
    tpu.vector_store %arg16[%c1_201, %c0_202, %c0_203, %c0_204], %266 {strides = array<i32>} : memref<2x2x8x512xf32, #tpu.memory_space<vmem>>, vector<1x1x8x512xf32>,
    %267 = vector.extract_strided_slice %254 {offsets = [24, 0], sizes = [8, 512], strides = [1, 1]} : vector<32x512xf32> to vector<8x512xf32>
    %c1_205 = arith.constant 1 : index
    %c1_206 = arith.constant 1 : index
    %c0_207 = arith.constant 0 : index
    %c0_208 = arith.constant 0 : index
    %268 = vector.load %arg16[%c1_205, %c1_206, %c0_207, %c0_208] : memref<2x2x8x512xf32, #tpu.memory_space<vmem>>, vector<1x1x8x512xf32>
    %269 = vector.shape_cast %268 : vector<1x1x8x512xf32> to vector<8x512xf32>
    %270 = vector.shape_cast %267 : vector<8x512xf32> to vector<1x1x8x512xf32>
    tpu.vector_store %arg16[%c1_205, %c1_206, %c0_207, %c0_208], %270 {strides = array<i32>} : memref<2x2x8x512xf32, #tpu.memory_space<vmem>>, vector<1x1x8x512xf32>,
    return
  }
}

</mosaic_0001>

<llo_original>
// kernel: generator_forward.1
$region0: #{generator_forward.1}
  #allocation0 [shape = 'u32[]', space=smem, size = 0x4, offset = 0x4, fixed_abs, tag = 'smem constant byte address 0x4 - core index']
  #allocation1 [shape = 'u32[144,128]{1,0:T(1,128)}', space=vmem, size = 0x12000, scoped, tag = 'internal scratch']
  #allocation2 [shape = 'f32[288,128]{1,0:T(8,128)}', space=vmem, size = 0x24000, scoped, tag = 'scratch operand']
  #allocation3 [shape = 'f32[144,128]{1,0:T(8,128)}', space=vmem, size = 0x12000, scoped, tag = 'scratch operand']
  #allocation4 [shape = 'f32[72,512]{1,0:T(8,128)}', space=vmem, size = 0x24000, scoped, tag = 'scratch operand']
  %s0 = inlined_call_operand.vmem [shape: f32[256,128], index: 0, kind: input, shape index: {}]
  %s1 = inlined_call_operand.hbm [shape: f32[32,256], index: 1, kind: input, shape index: {}]
  %s2 = inlined_call_operand.vmem [shape: f32[32,1], index: 2, kind: input, shape index: {}]
  %s3 = inlined_call_operand.vmem [shape: f32[32,1], index: 3, kind: input, shape index: {}]
  %s4 = inlined_call_operand.hbm [shape: f32[64,288], index: 4, kind: input, shape index: {}]
  %s5 = inlined_call_operand.hbm [shape: f32[3,3,1,128], index: 5, kind: input, shape index: {}]
  %s6 = inlined_call_operand.hbm [shape: bf16[512,128], index: 6, kind: input, shape index: {}]
  %s7 = inlined_call_operand.vmem [shape: f32[16,1], index: 7, kind: input, shape index: {}]
  %s8 = inlined_call_operand.vmem [shape: f32[16,1], index: 8, kind: input, shape index: {}]
  %s9 = inlined_call_operand.hbm [shape: f32[32,144], index: 9, kind: input, shape index: {}]
  %s10 = inlined_call_operand.hbm [shape: f32[3,3,1,128], index: 10, kind: input, shape index: {}]
  %s11 = inlined_call_operand.hbm [shape: bf16[512,512], index: 11, kind: input, shape index: {}]
  %s12 = inlined_call_operand.vmem [shape: f32[8,1], index: 12, kind: input, shape index: {}]
  %s13 = inlined_call_operand.vmem [shape: f32[8,1], index: 13, kind: input, shape index: {}]
  %s14 = inlined_call_operand.hbm [shape: f32[32,72], index: 14, kind: input, shape index: {}]
  %s15 = inlined_call_operand.hbm [shape: f32[3,3,1,512], index: 15, kind: input, shape index: {}]
  %s16 = inlined_call_operand.vmem [shape: f32[2,2,8,512], index: 16, kind: output, shape index: {}]
  %s17 = sld [smem:[#allocation0]]
  $region110: #{generator_forward.1} parent=0
    _
  %s19 = ssub.s32 1, %s17
  %s20 = scalar_select 0, %s19, %s17
  $region1: #{generator_forward.1} parent=0
    #allocation5 [shape = 'u8[32768]{0}', space=vmem, size = 0x8000, scoped, tag = 'input window, operand 1, single buffered']
    #allocation6 [shape = 's32[1]{0}', space=sflag, size = 0x4, scoped, tag = 'scoped memory for generator_forward.1']
    #allocation7 [shape = 'u8[98304]{0}', space=vmem, size = 0x18000, scoped, tag = 'input window, operand 4, single buffered']
    #allocation8 [shape = 's32[1]{0}', space=sflag, size = 0x4, scoped, tag = 'scoped memory for generator_forward.1']
    #allocation9 [shape = 'u8[4608]{0}', space=vmem, size = 0x1400, scoped, tag = 'input window, operand 5, single buffered']
    #allocation10 [shape = 'u8[131072]{0}', space=vmem, size = 0x20000, scoped, tag = 'input window, operand 6, single buffered']
    #allocation11 [shape = 's32[1]{0}', space=sflag, size = 0x4, scoped, tag = 'scoped memory for generator_forward.1']
    #allocation12 [shape = 'u8[32768]{0}', space=vmem, size = 0x8000, scoped, tag = 'input window, operand 9, single buffered']
    #allocation13 [shape = 'u8[4608]{0}', space=vmem, size = 0x1400, scoped, tag = 'input window, operand 10, single buffered']
    #allocation14 [shape = 's32[1]{0}', space=sflag, size = 0x4, scoped, tag = 'scoped memory for generator_forward.1']
    #allocation15 [shape = 'u8[524288]{0}', space=vmem, size = 0x80000, scoped, tag = 'input window, operand 11, single buffered']
    #allocation16 [shape = 'u8[16384]{0}', space=vmem, size = 0x4000, scoped, tag = 'input window, operand 14, single buffered']
    #allocation17 [shape = 's32[1]{0}', space=sflag, size = 0x4, scoped, tag = 'scoped memory for generator_forward.1']
    #allocation18 [shape = 'u8[18432]{0}', space=vmem, size = 0x4800, scoped, tag = 'input window, operand 15, single buffered']
    %21 = vsyncpa [#allocation6], 0
    %22 = vsyncpa [#allocation8], 0
    %23 = vsyncpa [#allocation11], 0
    %24 = vsyncpa [#allocation14], 0
    %25 = vsyncpa [#allocation17], 0
    // Predicated region
    $region2: #{generator_forward.1} parent=1 // pred_check
      _
    $region3: #{generator_forward.1} parent=1 // pred_check_branch
      %27 = sbr.rel (0) target = $region5
    $region4: #{generator_forward.1} parent=1 // pred_region
      _
    $region5: #{generator_forward.1} parent=1 // pred_fallthru
      _
    // Predicated region
    $region6: #{generator_forward.1} parent=1 // pred_check
      _
    $region7: #{generator_forward.1} parent=1 // pred_check_branch
      %29 = sbr.rel (0) target = $region9
    $region8: #{generator_forward.1} parent=1 // pred_region
      %s31 = ssub.s32 1024, 1024
      %32 = vsyncadd [#allocation6], %s31
      %s33 = sshll.u32 [#allocation5], 4
      %s34 = int_to_ptr.vmem [resolvable:$true] %s33
      %39 = dma.hbm_to_vmem [thread:$0]  %s1, 1024, %s34, [#allocation6], 256, 256, 16
    $region9: #{generator_forward.1} parent=1 // pred_fallthru
      _
    // Predicated region
    $region10: #{generator_forward.1} parent=1 // pred_check
      _
    $region11: #{generator_forward.1} parent=1 // pred_check_branch
      %41 = sbr.rel (0) target = $region13
    $region12: #{generator_forward.1} parent=1 // pred_region
      _
    $region13: #{generator_forward.1} parent=1 // pred_fallthru
      _
    // Predicated region
    $region14: #{generator_forward.1} parent=1 // pred_check
      _
    $region15: #{generator_forward.1} parent=1 // pred_check_branch
      %43 = sbr.rel (0) target = $region17
    $region16: #{generator_forward.1} parent=1 // pred_region
      _
    $region17: #{generator_forward.1} parent=1 // pred_fallthru
      _
    // Predicated region
    $region18: #{generator_forward.1} parent=1 // pred_check
      _
    $region19: #{generator_forward.1} parent=1 // pred_check_branch
      %45 = sbr.rel (0) target = $region21
    $region20: #{generator_forward.1} parent=1 // pred_region
      %s47 = ssub.s32 3072, 3072
      %48 = vsyncadd [#allocation8], %s47
      %s49 = sshll.u32 [#allocation7], 4
      %s50 = int_to_ptr.vmem [resolvable:$true] %s49
      %55 = dma.hbm_to_vmem [thread:$0]  %s4, 3072, %s50, [#allocation8], 384, 384, 24
    $region21: #{generator_forward.1} parent=1 // pred_fallthru
      _
    // Predicated region
    $region22: #{generator_forward.1} parent=1 // pred_check
      _
    $region23: #{generator_forward.1} parent=1 // pred_check_branch
      %57 = sbr.rel (0) target = $region25
    $region24: #{generator_forward.1} parent=1 // pred_region
      %s59 = ssub.s32 144, 144
      %60 = vsyncadd [#allocation8], %s59
      %s61 = sshll.u32 [#allocation9], 4
      %s62 = int_to_ptr.vmem [resolvable:$true] %s61
      %67 = dma.hbm_to_vmem [thread:$0]  %s5, 144, %s62, [#allocation8], 16, 16, 1
    $region25: #{generator_forward.1} parent=1 // pred_fallthru
      _
    // Predicated region
    $region26: #{generator_forward.1} parent=1 // pred_check
      _
    $region27: #{generator_forward.1} parent=1 // pred_check_branch
      %69 = sbr.rel (0) target = $region29
    $region28: #{generator_forward.1} parent=1 // pred_region
      %s71 = ssub.s32 4096, 4096
      %72 = vsyncadd [#allocation11], %s71
      %s73 = sshll.u32 [#allocation10], 4
      %s74 = int_to_ptr.vmem [resolvable:$true] %s73
      %79 = dma.hbm_to_vmem [thread:$0]  %s6, 4096, %s74, [#allocation11], 64, 64, 4
    $region29: #{generator_forward.1} parent=1 // pred_fallthru
      _
    // Predicated region
    $region30: #{generator_forward.1} parent=1 // pred_check
      _
    $region31: #{generator_forward.1} parent=1 // pred_check_branch
      %81 = sbr.rel (0) target = $region33
    $region32: #{generator_forward.1} parent=1 // pred_region
      _
    $region33: #{generator_forward.1} parent=1 // pred_fallthru
      _
    // Predicated region
    $region34: #{generator_forward.1} parent=1 // pred_check
      _
    $region35: #{generator_forward.1} parent=1 // pred_check_branch
      %83 = sbr.rel (0) target = $region37
    $region36: #{generator_forward.1} parent=1 // pred_region
      _
    $region37: #{generator_forward.1} parent=1 // pred_fallthru
      _
    // Predicated region
    $region38: #{generator_forward.1} parent=1 // pred_check
      _
    $region39: #{generator_forward.1} parent=1 // pred_check_branch
      %85 = sbr.rel (0) target = $region41
    $region40: #{generator_forward.1} parent=1 // pred_region
      %s87 = ssub.s32 1024, 1024
      %88 = vsyncadd [#allocation11], %s87
      %s89 = sshll.u32 [#allocation12], 4
      %s90 = int_to_ptr.vmem [resolvable:$true] %s89
      %95 = dma.hbm_to_vmem [thread:$0]  %s9, 1024, %s90, [#allocation11], 256, 256, 16
    $region41: #{generator_forward.1} parent=1 // pred_fallthru
      _
    // Predicated region
    $region42: #{generator_forward.1} parent=1 // pred_check
      _
    $region43: #{generator_forward.1} parent=1 // pred_check_branch
      %97 = sbr.rel (0) target = $region45
    $region44: #{generator_forward.1} parent=1 // pred_region
      %s99 = ssub.s32 144, 144
      %100 = vsyncadd [#allocation14], %s99
      %s101 = sshll.u32 [#allocation13], 4
      %s102 = int_to_ptr.vmem [resolvable:$true] %s101
      %107 = dma.hbm_to_vmem [thread:$0]  %s10, 144, %s102, [#allocation14], 16, 16, 1
    $region45: #{generator_forward.1} parent=1 // pred_fallthru
      _
    // Predicated region
    $region46: #{generator_forward.1} parent=1 // pred_check
      _
    $region47: #{generator_forward.1} parent=1 // pred_check_branch
      %109 = sbr.rel (0) target = $region49
    $region48: #{generator_forward.1} parent=1 // pred_region
      %s111 = ssub.s32 16384, 16384
      %112 = vsyncadd [#allocation14], %s111
      %s113 = sshll.u32 [#allocation15], 4
      %s114 = int_to_ptr.vmem [resolvable:$true] %s113
      %119 = dma.hbm_to_vmem [thread:$0]  %s11, 16384, %s114, [#allocation14], 256, 256, 16
    $region49: #{generator_forward.1} parent=1 // pred_fallthru
      _
    // Predicated region
    $region50: #{generator_forward.1} parent=1 // pred_check
      _
    $region51: #{generator_forward.1} parent=1 // pred_check_branch
      %121 = sbr.rel (0) target = $region53
    $region52: #{generator_forward.1} parent=1 // pred_region
      _
    $region53: #{generator_forward.1} parent=1 // pred_fallthru
      _
    // Predicated region
    $region54: #{generator_forward.1} parent=1 // pred_check
      _
    $region55: #{generator_forward.1} parent=1 // pred_check_branch
      %123 = sbr.rel (0) target = $region57
    $region56: #{generator_forward.1} parent=1 // pred_region
      _
    $region57: #{generator_forward.1} parent=1 // pred_fallthru
      _
    // Predicated region
    $region58: #{generator_forward.1} parent=1 // pred_check
      _
    $region59: #{generator_forward.1} parent=1 // pred_check_branch
      %125 = sbr.rel (0) target = $region61
    $region60: #{generator_forward.1} parent=1 // pred_region
      %s127 = ssub.s32 512, 512
      %128 = vsyncadd [#allocation17], %s127
      %s129 = sshll.u32 [#allocation16], 4
      %s130 = int_to_ptr.vmem [resolvable:$true] %s129
      %135 = dma.hbm_to_vmem [thread:$0]  %s14, 512, %s130, [#allocation17], 128, 128, 8
    $region61: #{generator_forward.1} parent=1 // pred_fallthru
      _
    // Predicated region
    $region62: #{generator_forward.1} parent=1 // pred_check
      _
    $region63: #{generator_forward.1} parent=1 // pred_check_branch
      %137 = sbr.rel (0) target = $region65
    $region64: #{generator_forward.1} parent=1 // pred_region
      %s139 = ssub.s32 576, 576
      %140 = vsyncadd [#allocation17], %s139
      %s141 = sshll.u32 [#allocation18], 4
      %s142 = int_to_ptr.vmem [resolvable:$true] %s141
      %147 = dma.hbm_to_vmem [thread:$0]  %s15, 576, %s142, [#allocation17], 64, 64, 4
    $region65: #{generator_forward.1} parent=1 // pred_fallthru
      _
    // Predicated region
    $region66: #{generator_forward.1} parent=1 // pred_check
      _
    $region67: #{generator_forward.1} parent=1 // pred_check_branch
      %149 = sbr.rel (0) target = $region69
    $region68: #{generator_forward.1} parent=1 // pred_region
      %150 = dma.done [#allocation6], 1024
    $region69: #{generator_forward.1} parent=1 // pred_fallthru
      _
    // Predicated region
    $region70: #{generator_forward.1} parent=1 // pred_check
      _
    $region71: #{generator_forward.1} parent=1 // pred_check_branch
      %152 = sbr.rel (0) target = $region73
    $region72: #{generator_forward.1} parent=1 // pred_region
      %153 = dma.done [#allocation8], 3072
    $region73: #{generator_forward.1} parent=1 // pred_fallthru
      _
    // Predicated region
    $region74: #{generator_forward.1} parent=1 // pred_check
      _
    $region75: #{generator_forward.1} parent=1 // pred_check_branch
      %155 = sbr.rel (0) target = $region77
    $region76: #{generator_forward.1} parent=1 // pred_region
      %156 = dma.done [#allocation8], 144
    $region77: #{generator_forward.1} parent=1 // pred_fallthru
      _
    // Predicated region
    $region78: #{generator_forward.1} parent=1 // pred_check
      _
    $region79: #{generator_forward.1} parent=1 // pred_check_branch
      %158 = sbr.rel (0) target = $region81
    $region80: #{generator_forward.1} parent=1 // pred_region
      %159 = dma.done [#allocation11], 4096
    $region81: #{generator_forward.1} parent=1 // pred_fallthru
      _
    // Predicated region
    $region82: #{generator_forward.1} parent=1 // pred_check
      _
    $region83: #{generator_forward.1} parent=1 // pred_check_branch
      %161 = sbr.rel (0) target = $region85
    $region84: #{generator_forward.1} parent=1 // pred_region
      %162 = dma.done [#allocation11], 1024
    $region85: #{generator_forward.1} parent=1 // pred_fallthru
      _
    // Predicated region
    $region86: #{generator_forward.1} parent=1 // pred_check
      _
    $region87: #{generator_forward.1} parent=1 // pred_check_branch
      %164 = sbr.rel (0) target = $region89
    $region88: #{generator_forward.1} parent=1 // pred_region
      %165 = dma.done [#allocation14], 144
    $region89: #{generator_forward.1} parent=1 // pred_fallthru
      _
    // Predicated region
    $region90: #{generator_forward.1} parent=1 // pred_check
      _
    $region91: #{generator_forward.1} parent=1 // pred_check_branch
      %167 = sbr.rel (0) target = $region93
    $region92: #{generator_forward.1} parent=1 // pred_region
      %168 = dma.done [#allocation14], 16384
    $region93: #{generator_forward.1} parent=1 // pred_fallthru
      _
    // Predicated region
    $region94: #{generator_forward.1} parent=1 // pred_check
      _
    $region95: #{generator_forward.1} parent=1 // pred_check_branch
      %170 = sbr.rel (0) target = $region97
    $region96: #{generator_forward.1} parent=1 // pred_region
      %171 = dma.done [#allocation17], 512
    $region97: #{generator_forward.1} parent=1 // pred_fallthru
      _
    // Predicated region
    $region98: #{generator_forward.1} parent=1 // pred_check
      _
    $region99: #{generator_forward.1} parent=1 // pred_check_branch
      %173 = sbr.rel (0) target = $region101
    $region100: #{generator_forward.1} parent=1 // pred_region
      %174 = dma.done [#allocation17], 576
    $region101: #{generator_forward.1} parent=1 // pred_fallthru
      _
    %v176 = vld [vmem:[#allocation5] sm:$0xff]
    %v177 = vld [vmem:[#allocation5 + $0x8] sm:$0xff]
    %v178 = vld [vmem:[#allocation5 + $0x10] sm:$0xff]
    %v179 = vld [vmem:[#allocation5 + $0x18] sm:$0xff]
    %v180 = vld [vmem:[#allocation5 + $0x20] sm:$0xff]
    %v181 = vld [vmem:[#allocation5 + $0x28] sm:$0xff]
    %v182 = vld [vmem:[#allocation5 + $0x30] sm:$0xff]
    %v183 = vld [vmem:[#allocation5 + $0x38] sm:$0xff]
    %v184 = vld [vmem:[%s0] sm:$0xff]
    %v185 = vld [vmem:[%s0 + $0x8] sm:$0xff]
    %v186 = vld [vmem:[%s0 + $0x10] sm:$0xff]
    %v187 = vld [vmem:[%s0 + $0x18] sm:$0xff]
    %v188 = vld [vmem:[%s0 + $0x20] sm:$0xff]
    %v189 = vld [vmem:[%s0 + $0x28] sm:$0xff]
    %v190 = vld [vmem:[%s0 + $0x30] sm:$0xff]
    %v191 = vld [vmem:[%s0 + $0x38] sm:$0xff]
    %v192 = vld [vmem:[%s0 + $0x40] sm:$0xff]
    %v193 = vld [vmem:[%s0 + $0x48] sm:$0xff]
    %v194 = vld [vmem:[%s0 + $0x50] sm:$0xff]
    %v195 = vld [vmem:[%s0 + $0x58] sm:$0xff]
    %v196 = vld [vmem:[%s0 + $0x60] sm:$0xff]
    %v197 = vld [vmem:[%s0 + $0x68] sm:$0xff]
    %v198 = vld [vmem:[%s0 + $0x70] sm:$0xff]
    %v199 = vld [vmem:[%s0 + $0x78] sm:$0xff]
    %v200 = vld [vmem:[%s0 + $0x80] sm:$0xff]
    %v201 = vld [vmem:[%s0 + $0x88] sm:$0xff]
    %v202 = vld [vmem:[%s0 + $0x90] sm:$0xff]
    %v203 = vld [vmem:[%s0 + $0x98] sm:$0xff]
    %v204 = vld [vmem:[%s0 + $0xa0] sm:$0xff]
    %v205 = vld [vmem:[%s0 + $0xa8] sm:$0xff]
    %v206 = vld [vmem:[%s0 + $0xb0] sm:$0xff]
    %v207 = vld [vmem:[%s0 + $0xb8] sm:$0xff]
    %v208 = vld [vmem:[%s0 + $0xc0] sm:$0xff]
    %v209 = vld [vmem:[%s0 + $0xc8] sm:$0xff]
    %v210 = vld [vmem:[%s0 + $0xd0] sm:$0xff]
    %v211 = vld [vmem:[%s0 + $0xd8] sm:$0xff]
    %v212 = vld [vmem:[%s0 + $0xe0] sm:$0xff]
    %v213 = vld [vmem:[%s0 + $0xe8] sm:$0xff]
    %v214 = vld [vmem:[%s0 + $0xf0] sm:$0xff]
    %v215 = vld [vmem:[%s0 + $0xf8] sm:$0xff]
    %216 = vmatprep.subr.mxu0 0.0
    %217 = vmatpush1.msra.mxu0 %v184
    %218 = vmatprep.subr.mxu0 0.0
    %219 = vmatpush1.msra.mxu0 %v185
    %220 = vmatprep.subr.mxu0 0.0
    %221 = vmatpush1.msra.mxu0 %v186
    %222 = vmatprep.subr.mxu0 0.0
    %223 = vmatpush1.msra.mxu0 %v187
    %224 = vmatprep.subr.mxu0 0.0
    %225 = vmatpush1.msra.mxu0 %v188
    %226 = vmatprep.subr.mxu0 0.0
    %227 = vmatpush1.msra.mxu0 %v189
    %228 = vmatprep.subr.mxu0 0.0
    %229 = vmatpush1.msra.mxu0 %v190
    %230 = vmatprep.subr.mxu0 0.0
    %231 = vmatpush1.msra.mxu0 %v191
    %232 = vmatprep.subr.mxu0 0.0
    %233 = vmatpush1.msra.mxu0 %v192
    %234 = vmatprep.subr.mxu0 0.0
    %235 = vmatpush1.msra.mxu0 %v193
    %236 = vmatprep.subr.mxu0 0.0
    %237 = vmatpush1.msra.mxu0 %v194
    %238 = vmatprep.subr.mxu0 0.0
    %239 = vmatpush1.msra.mxu0 %v195
    %240 = vmatprep.subr.mxu0 0.0
    %241 = vmatpush1.msra.mxu0 %v196
    %242 = vmatprep.subr.mxu0 0.0
    %243 = vmatpush1.msra.mxu0 %v197
    %244 = vmatprep.subr.mxu0 0.0
    %245 = vmatpush1.msra.mxu0 %v198
    %246 = vmatprep.subr.mxu0 0.0
    %247 = vmatpush1.msra.mxu0 %v199
    %248 = vmatprep.subr.mxu0 0.0
    %249 = vmatpush1.msra.mxu0 %v200
    %250 = vmatprep.subr.mxu0 0.0
    %251 = vmatpush1.msra.mxu0 %v201
    %252 = vmatprep.subr.mxu0 0.0
    %253 = vmatpush1.msra.mxu0 %v202
    %254 = vmatprep.subr.mxu0 0.0
    %255 = vmatpush1.msra.mxu0 %v203
    %256 = vmatprep.subr.mxu0 0.0
    %257 = vmatpush1.msra.mxu0 %v204
    %258 = vmatprep.subr.mxu0 0.0
    %259 = vmatpush1.msra.mxu0 %v205
    %260 = vmatprep.subr.mxu0 0.0
    %261 = vmatpush1.msra.mxu0 %v206
    %262 = vmatprep.subr.mxu0 0.0
    %263 = vmatpush1.msra.mxu0 %v207
    %264 = vmatprep.subr.mxu0 0.0
    %265 = vmatpush1.msra.mxu0 %v208
    %266 = vmatprep.subr.mxu0 0.0
    %267 = vmatpush1.msra.mxu0 %v209
    %268 = vmatprep.subr.mxu0 0.0
    %269 = vmatpush1.msra.mxu0 %v210
    %270 = vmatprep.subr.mxu0 0.0
    %271 = vmatpush1.msra.mxu0 %v211
    %272 = vmatprep.subr.mxu0 0.0
    %273 = vmatpush1.msra.mxu0 %v212
    %274 = vmatprep.subr.mxu0 0.0
    %275 = vmatpush1.msra.mxu0 %v213
    %276 = vmatprep.subr.mxu0 0.0
    %277 = vmatpush1.msra.mxu0 %v214
    %278 = vmatprep.subr.mxu0 0.0
    %279 = vmatpush1.msra.mxu0 %v215
    %280 = vmatprep.mubr.f32.mxu0 %v177
    %281 = vmatmul.mubr.f32.gmra.mrb[0].mxu0 %v176
    %v282 = vpop.f32.mrb[0].mxu0
    %v283 = vadd.f32 0.0, %v282
    %v284 = vpop.f32.mrb[0].mxu0
    %285 = vmatprep.mubr.f32.mxu0 %v179
    %286 = vmatmul.mubr.f32.gmra.mrb[0].mxu0 %v178
    %v287 = vpop.f32.mrb[0].mxu0
    %v288 = vadd.f32 0.0, %v287
    %v289 = vpop.f32.mrb[0].mxu0
    %290 = vmatprep.mubr.f32.mxu0 %v181
    %291 = vmatmul.mubr.f32.gmra.mrb[0].mxu0 %v180
    %v292 = vpop.f32.mrb[0].mxu0
    %v293 = vadd.f32 0.0, %v292
    %v294 = vpop.f32.mrb[0].mxu0
    %295 = vmatprep.mubr.f32.mxu0 %v183
    %296 = vmatmul.mubr.f32.gmra.mrb[0].mxu0 %v182
    %v297 = vpop.f32.mrb[0].mxu0
    %v298 = vadd.f32 0.0, %v297
    %v299 = vpop.f32.mrb[0].mxu0
    %300 = vdwg.mxu0
    %v301 = vld [vmem:[%s2] sm:$0xff]
    %v302 = vld [vmem:[%s2 + $0x8] sm:$0xff]
    %v303 = vld [vmem:[%s2 + $0x10] sm:$0xff]
    %v304 = vld [vmem:[%s2 + $0x18] sm:$0xff]
    %v305 = vld [vmem:[%s3] sm:$0xff]
    %v306 = vld [vmem:[%s3 + $0x8] sm:$0xff]
    %v307 = vld [vmem:[%s3 + $0x10] sm:$0xff]
    %v308 = vld [vmem:[%s3 + $0x18] sm:$0xff]
    %309 = vadd.xlane.f32.xlu0 %v283
    %v310 = vpop.xlane.xlu0 %309
    %311 = vadd.xlane.f32.xlu0 %v288
    %v312 = vpop.xlane.xlu0 %311
    %313 = vadd.xlane.f32.xlu0 %v293
    %v314 = vpop.xlane.xlu0 %313
    %315 = vadd.xlane.f32.xlu0 %v298
    %v316 = vpop.xlane.xlu0 %315
    %v317 = vmul.f32 %v310, 0.03125
    %v318 = vmul.f32 %v312, 0.03125
    %v319 = vmul.f32 %v314, 0.03125
    %v320 = vmul.f32 %v316, 0.03125
    %v321 = vmul.f32 %v283, %v283
    %v322 = vmul.f32 %v288, %v288
    %v323 = vmul.f32 %v293, %v293
    %v324 = vmul.f32 %v298, %v298
    %325 = vadd.xlane.f32.xlu0 %v321
    %v326 = vpop.xlane.xlu0 %325
    %327 = vadd.xlane.f32.xlu0 %v322
    %v328 = vpop.xlane.xlu0 %327
    %329 = vadd.xlane.f32.xlu0 %v323
    %v330 = vpop.xlane.xlu0 %329
    %331 = vadd.xlane.f32.xlu0 %v324
    %v332 = vpop.xlane.xlu0 %331
    %v333 = vmul.f32 %v326, 0.03125
    %v334 = vmul.f32 %v328, 0.03125
    %v335 = vmul.f32 %v330, 0.03125
    %v336 = vmul.f32 %v332, 0.03125
    %v337 = vmul.f32 %v317, %v317
    %v338 = vmul.f32 %v318, %v318
    %v339 = vmul.f32 %v319, %v319
    %v340 = vmul.f32 %v320, %v320
    %v341 = vsub.f32 %v333, %v337
    %v342 = vsub.f32 %v334, %v338
    %v343 = vsub.f32 %v335, %v339
    %v344 = vsub.f32 %v336, %v340
    %v345 = vadd.f32 %v341, 1e-05
    %v346 = vadd.f32 %v342, 1e-05
    %v347 = vadd.f32 %v343, 1e-05
    %v348 = vadd.f32 %v344, 1e-05
    %v349 = vrsqrt.pop %v345
    %v350 = vrsqrt.pop %v346
    %v351 = vrsqrt.pop %v347
    %v352 = vrsqrt.pop %v348
    %v353 = vmul.f32 %v301, %v349
    %v354 = vmul.f32 %v302, %v350
    %v355 = vmul.f32 %v303, %v351
    %v356 = vmul.f32 %v304, %v352
    %v357 = vmul.f32 %v317, %v353
    %v358 = vmul.f32 %v318, %v354
    %v359 = vmul.f32 %v319, %v355
    %v360 = vmul.f32 %v320, %v356
    %v361 = vsub.f32 %v305, %v357
    %v362 = vsub.f32 %v306, %v358
    %v363 = vsub.f32 %v307, %v359
    %v364 = vsub.f32 %v308, %v360
    %366 = vset.pattern.permute.xlu0 0
    %367 = vperm.xlu0 %366, %v353
    %v368 = vpop.permute.xlu0 %367
    %371 = vset.pattern.permute.xlu0 0
    %372 = vperm.xlu0 %371, %v354
    %v373 = vpop.permute.xlu0 %372
    %376 = vset.pattern.permute.xlu0 0
    %377 = vperm.xlu0 %376, %v355
    %v378 = vpop.permute.xlu0 %377
    %381 = vset.pattern.permute.xlu0 0
    %382 = vperm.xlu0 %381, %v356
    %v383 = vpop.permute.xlu0 %382
    %v385 = vmul.f32 %v283, %v368
    %v386 = vmul.f32 %v288, %v373
    %v387 = vmul.f32 %v293, %v378
    %v388 = vmul.f32 %v298, %v383
    %390 = vset.pattern.permute.xlu0 0
    %391 = vperm.xlu0 %390, %v361
    %v392 = vpop.permute.xlu0 %391
    %395 = vset.pattern.permute.xlu0 0
    %396 = vperm.xlu0 %395, %v362
    %v397 = vpop.permute.xlu0 %396
    %400 = vset.pattern.permute.xlu0 0
    %401 = vperm.xlu0 %400, %v363
    %v402 = vpop.permute.xlu0 %401
    %405 = vset.pattern.permute.xlu0 0
    %406 = vperm.xlu0 %405, %v364
    %v407 = vpop.permute.xlu0 %406
    %v409 = vadd.f32 %v385, %v392
    %v410 = vadd.f32 %v386, %v397
    %v411 = vadd.f32 %v387, %v402
    %v412 = vadd.f32 %v388, %v407
    %v413 = vmax.f32 %v409, 0.0
    %v414 = vmax.f32 %v410, 0.0
    %v415 = vmax.f32 %v411, 0.0
    %v416 = vmax.f32 %v412, 0.0
    %417 = vrot.lane.b32.xlu0 %v413, 5
    %v418 = vpop.permute.xlu0 %417
    %419 = vrot.lane.b32.xlu0 %v414, 5
    %v420 = vpop.permute.xlu0 %419
    %421 = vrot.lane.b32.xlu0 %v415, 5
    %v422 = vpop.permute.xlu0 %421
    %423 = vrot.lane.b32.xlu0 %v416, 5
    %v424 = vpop.permute.xlu0 %423
    %v425 = vld [vmem:[#allocation9] sm:$0x1]
    %v427 = vlaneseq
    %v428 = vshrl.u32 %v427, 7
    %v429 = vsub.s32 0, %v428
    %v430 = vrot.slane %v425, %v429
    %v432 = vmul.f32 %v418, %v430
    %v433 = vmul.f32 %v420, %v430
    %v434 = vmul.f32 %v422, %v430
    %v435 = vmul.f32 %v424, %v430
    %436 = vst [vmem:[#allocation2] sm:$0xff] %v432
    %437 = vst [vmem:[#allocation2 + $0x8] sm:$0xff] %v433
    %438 = vst [vmem:[#allocation2 + $0x10] sm:$0xff] %v434
    %439 = vst [vmem:[#allocation2 + $0x18] sm:$0xff] %v435
    %440 = vrot.lane.b32.xlu0 %v413, 4
    %v441 = vpop.permute.xlu0 %440
    %442 = vrot.lane.b32.xlu0 %v414, 4
    %v443 = vpop.permute.xlu0 %442
    %444 = vrot.lane.b32.xlu0 %v415, 4
    %v445 = vpop.permute.xlu0 %444
    %446 = vrot.lane.b32.xlu0 %v416, 4
    %v447 = vpop.permute.xlu0 %446
    %s448 = scalar_lea.vmem [#allocation9], 1
    %v449 = vld [vmem:[%s448] sm:$0x1]
    %v451 = vlaneseq
    %v452 = vshrl.u32 %v451, 7
    %v453 = vsub.s32 0, %v452
    %v454 = vrot.slane %v449, %v453
    %v456 = vmul.f32 %v441, %v454
    %v457 = vmul.f32 %v443, %v454
    %v458 = vmul.f32 %v445, %v454
    %v459 = vmul.f32 %v447, %v454
    %460 = vst [vmem:[#allocation2 + $0x20] sm:$0xff] %v456
    %461 = vst [vmem:[#allocation2 + $0x28] sm:$0xff] %v457
    %462 = vst [vmem:[#allocation2 + $0x30] sm:$0xff] %v458
    %463 = vst [vmem:[#allocation2 + $0x38] sm:$0xff] %v459
    %464 = vrot.lane.b32.xlu0 %v413, 3
    %v465 = vpop.permute.xlu0 %464
    %466 = vrot.lane.b32.xlu0 %v414, 3
    %v467 = vpop.permute.xlu0 %466
    %468 = vrot.lane.b32.xlu0 %v415, 3
    %v469 = vpop.permute.xlu0 %468
    %470 = vrot.lane.b32.xlu0 %v416, 3
    %v471 = vpop.permute.xlu0 %470
    %s472 = scalar_lea.vmem [#allocation9], 2
    %v473 = vld [vmem:[%s472] sm:$0x1]
    %v475 = vlaneseq
    %v476 = vshrl.u32 %v475, 7
    %v477 = vsub.s32 0, %v476
    %v478 = vrot.slane %v473, %v477
    %v480 = vmul.f32 %v465, %v478
    %v481 = vmul.f32 %v467, %v478
    %v482 = vmul.f32 %v469, %v478
    %v483 = vmul.f32 %v471, %v478
    %484 = vst [vmem:[#allocation2 + $0x40] sm:$0xff] %v480
    %485 = vst [vmem:[#allocation2 + $0x48] sm:$0xff] %v481
    %486 = vst [vmem:[#allocation2 + $0x50] sm:$0xff] %v482
    %487 = vst [vmem:[#allocation2 + $0x58] sm:$0xff] %v483
    %488 = vrot.lane.b32.xlu0 %v413, 1
    %v489 = vpop.permute.xlu0 %488
    %490 = vrot.lane.b32.xlu0 %v414, 1
    %v491 = vpop.permute.xlu0 %490
    %492 = vrot.lane.b32.xlu0 %v415, 1
    %v493 = vpop.permute.xlu0 %492
    %494 = vrot.lane.b32.xlu0 %v416, 1
    %v495 = vpop.permute.xlu0 %494
    %s496 = scalar_lea.vmem [#allocation9], 3
    %v497 = vld [vmem:[%s496] sm:$0x1]
    %v499 = vlaneseq
    %v500 = vshrl.u32 %v499, 7
    %v501 = vsub.s32 0, %v500
    %v502 = vrot.slane %v497, %v501
    %v504 = vmul.f32 %v489, %v502
    %v505 = vmul.f32 %v491, %v502
    %v506 = vmul.f32 %v493, %v502
    %v507 = vmul.f32 %v495, %v502
    %508 = vst [vmem:[#allocation2 + $0x60] sm:$0xff] %v504
    %509 = vst [vmem:[#allocation2 + $0x68] sm:$0xff] %v505
    %510 = vst [vmem:[#allocation2 + $0x70] sm:$0xff] %v506
    %511 = vst [vmem:[#allocation2 + $0x78] sm:$0xff] %v507
    %s512 = scalar_lea.vmem [#allocation9], 4
    %v513 = vld [vmem:[%s512] sm:$0x1]
    %v515 = vlaneseq
    %v516 = vshrl.u32 %v515, 7
    %v517 = vsub.s32 0, %v516
    %v518 = vrot.slane %v513, %v517
    %v520 = vmul.f32 %v413, %v518
    %v521 = vmul.f32 %v414, %v518
    %v522 = vmul.f32 %v415, %v518
    %v523 = vmul.f32 %v416, %v518
    %524 = vst [vmem:[#allocation2 + $0x80] sm:$0xff] %v520
    %525 = vst [vmem:[#allocation2 + $0x88] sm:$0xff] %v521
    %526 = vst [vmem:[#allocation2 + $0x90] sm:$0xff] %v522
    %527 = vst [vmem:[#allocation2 + $0x98] sm:$0xff] %v523
    %528 = vrot.lane.b32.xlu0 %v413, 127
    %v529 = vpop.permute.xlu0 %528
    %530 = vrot.lane.b32.xlu0 %v414, 127
    %v531 = vpop.permute.xlu0 %530
    %532 = vrot.lane.b32.xlu0 %v415, 127
    %v533 = vpop.permute.xlu0 %532
    %534 = vrot.lane.b32.xlu0 %v416, 127
    %v535 = vpop.permute.xlu0 %534
    %s536 = scalar_lea.vmem [#allocation9], 5
    %v537 = vld [vmem:[%s536] sm:$0x1]
    %v539 = vlaneseq
    %v540 = vshrl.u32 %v539, 7
    %v541 = vsub.s32 0, %v540
    %v542 = vrot.slane %v537, %v541
    %v544 = vmul.f32 %v529, %v542
    %v545 = vmul.f32 %v531, %v542
    %v546 = vmul.f32 %v533, %v542
    %v547 = vmul.f32 %v535, %v542
    %548 = vst [vmem:[#allocation2 + $0xa0] sm:$0xff] %v544
    %549 = vst [vmem:[#allocation2 + $0xa8] sm:$0xff] %v545
    %550 = vst [vmem:[#allocation2 + $0xb0] sm:$0xff] %v546
    %551 = vst [vmem:[#allocation2 + $0xb8] sm:$0xff] %v547
    %552 = vrot.lane.b32.xlu0 %v413, 125
    %v553 = vpop.permute.xlu0 %552
    %554 = vrot.lane.b32.xlu0 %v414, 125
    %v555 = vpop.permute.xlu0 %554
    %556 = vrot.lane.b32.xlu0 %v415, 125
    %v557 = vpop.permute.xlu0 %556
    %558 = vrot.lane.b32.xlu0 %v416, 125
    %v559 = vpop.permute.xlu0 %558
    %s560 = scalar_lea.vmem [#allocation9], 6
    %v561 = vld [vmem:[%s560] sm:$0x1]
    %v563 = vlaneseq
    %v564 = vshrl.u32 %v563, 7
    %v565 = vsub.s32 0, %v564
    %v566 = vrot.slane %v561, %v565
    %v568 = vmul.f32 %v553, %v566
    %v569 = vmul.f32 %v555, %v566
    %v570 = vmul.f32 %v557, %v566
    %v571 = vmul.f32 %v559, %v566
    %572 = vst [vmem:[#allocation2 + $0xc0] sm:$0xff] %v568
    %573 = vst [vmem:[#allocation2 + $0xc8] sm:$0xff] %v569
    %574 = vst [vmem:[#allocation2 + $0xd0] sm:$0xff] %v570
    %575 = vst [vmem:[#allocation2 + $0xd8] sm:$0xff] %v571
    %576 = vrot.lane.b32.xlu0 %v413, 124
    %v577 = vpop.permute.xlu0 %576
    %578 = vrot.lane.b32.xlu0 %v414, 124
    %v579 = vpop.permute.xlu0 %578
    %580 = vrot.lane.b32.xlu0 %v415, 124
    %v581 = vpop.permute.xlu0 %580
    %582 = vrot.lane.b32.xlu0 %v416, 124
    %v583 = vpop.permute.xlu0 %582
    %s584 = scalar_lea.vmem [#allocation9], 7
    %v585 = vld [vmem:[%s584] sm:$0x1]
    %v587 = vlaneseq
    %v588 = vshrl.u32 %v587, 7
    %v589 = vsub.s32 0, %v588
    %v590 = vrot.slane %v585, %v589
    %v592 = vmul.f32 %v577, %v590
    %v593 = vmul.f32 %v579, %v590
    %v594 = vmul.f32 %v581, %v590
    %v595 = vmul.f32 %v583, %v590
    %596 = vst [vmem:[#allocation2 + $0xe0] sm:$0xff] %v592
    %597 = vst [vmem:[#allocation2 + $0xe8] sm:$0xff] %v593
    %598 = vst [vmem:[#allocation2 + $0xf0] sm:$0xff] %v594
    %599 = vst [vmem:[#allocation2 + $0xf8] sm:$0xff] %v595
    %600 = vrot.lane.b32.xlu0 %v413, 123
    %v601 = vpop.permute.xlu0 %600
    %602 = vrot.lane.b32.xlu0 %v414, 123
    %v603 = vpop.permute.xlu0 %602
    %604 = vrot.lane.b32.xlu0 %v415, 123
    %v605 = vpop.permute.xlu0 %604
    %606 = vrot.lane.b32.xlu0 %v416, 123
    %v607 = vpop.permute.xlu0 %606
    %s608 = scalar_lea.vmem [#allocation9], 8
    %v609 = vld [vmem:[%s608] sm:$0x1]
    %v611 = vlaneseq
    %v612 = vshrl.u32 %v611, 7
    %v613 = vsub.s32 0, %v612
    %v614 = vrot.slane %v609, %v613
    %v616 = vmul.f32 %v601, %v614
    %v617 = vmul.f32 %v603, %v614
    %v618 = vmul.f32 %v605, %v614
    %v619 = vmul.f32 %v607, %v614
    %620 = vst [vmem:[#allocation2 + $0x100] sm:$0xff] %v616
    %621 = vst [vmem:[#allocation2 + $0x108] sm:$0xff] %v617
    %622 = vst [vmem:[#allocation2 + $0x110] sm:$0xff] %v618
    %623 = vst [vmem:[#allocation2 + $0x118] sm:$0xff] %v619
    %v624 = vld [vmem:[#allocation7] sm:$0xff]
    %v625 = vld [vmem:[#allocation7 + $0x8] sm:$0xff]
    %v626 = vld [vmem:[#allocation7 + $0x10] sm:$0xff]
    %v627 = vld [vmem:[#allocation7 + $0x18] sm:$0xff]
    %v628 = vld [vmem:[#allocation7 + $0x20] sm:$0xff]
    %v629 = vld [vmem:[#allocation7 + $0x28] sm:$0xff]
    %v630 = vld [vmem:[#allocation7 + $0x30] sm:$0xff]
    %v631 = vld [vmem:[#allocation7 + $0x38] sm:$0xff]
    %v632 = vld [vmem:[#allocation7 + $0x40] sm:$0xff]
    %v633 = vld [vmem:[#allocation7 + $0x48] sm:$0xff]
    %v634 = vld [vmem:[#allocation7 + $0x50] sm:$0xff]
    %v635 = vld [vmem:[#allocation7 + $0x58] sm:$0xff]
    %v636 = vld [vmem:[#allocation7 + $0x60] sm:$0xff]
    %v637 = vld [vmem:[#allocation7 + $0x68] sm:$0xff]
    %v638 = vld [vmem:[#allocation7 + $0x70] sm:$0xff]
    %v639 = vld [vmem:[#allocation7 + $0x78] sm:$0xff]
    %v640 = vld [vmem:[#allocation7 + $0x80] sm:$0xff]
    %v641 = vld [vmem:[#allocation7 + $0x88] sm:$0xff]
    %v642 = vld [vmem:[#allocation7 + $0x90] sm:$0xff]
    %v643 = vld [vmem:[#allocation7 + $0x98] sm:$0xff]
    %v644 = vld [vmem:[#allocation7 + $0xa0] sm:$0xff]
    %v645 = vld [vmem:[#allocation7 + $0xa8] sm:$0xff]
    %v646 = vld [vmem:[#allocation7 + $0xb0] sm:$0xff]
    %v647 = vld [vmem:[#allocation7 + $0xb8] sm:$0xff]
    %v648 = vld [vmem:[#allocation2] sm:$0xff]
    %v649 = vld [vmem:[#allocation2 + $0x8] sm:$0xff]
    %v650 = vld [vmem:[#allocation2 + $0x10] sm:$0xff]
    %v651 = vld [vmem:[#allocation2 + $0x18] sm:$0xff]
    %v652 = vld [vmem:[#allocation2 + $0x20] sm:$0xff]
    %v653 = vld [vmem:[#allocation2 + $0x28] sm:$0xff]
    %v654 = vld [vmem:[#allocation2 + $0x30] sm:$0xff]
    %v655 = vld [vmem:[#allocation2 + $0x38] sm:$0xff]
    %v656 = vld [vmem:[#allocation2 + $0x40] sm:$0xff]
    %v657 = vld [vmem:[#allocation2 + $0x48] sm:$0xff]
    %v658 = vld [vmem:[#allocation2 + $0x50] sm:$0xff]
    %v659 = vld [vmem:[#allocation2 + $0x58] sm:$0xff]
    %v660 = vld [vmem:[#allocation2 + $0x60] sm:$0xff]
    %v661 = vld [vmem:[#allocation2 + $0x68] sm:$0xff]
    %v662 = vld [vmem:[#allocation2 + $0x70] sm:$0xff]
    %v663 = vld [vmem:[#allocation2 + $0x78] sm:$0xff]
    %v664 = vld [vmem:[#allocation2 + $0x80] sm:$0xff]
    %v665 = vld [vmem:[#allocation2 + $0x88] sm:$0xff]
    %v666 = vld [vmem:[#allocation2 + $0x90] sm:$0xff]
    %v667 = vld [vmem:[#allocation2 + $0x98] sm:$0xff]
    %v668 = vld [vmem:[#allocation2 + $0xa0] sm:$0xff]
    %v669 = vld [vmem:[#allocation2 + $0xa8] sm:$0xff]
    %v670 = vld [vmem:[#allocation2 + $0xb0] sm:$0xff]
    %v671 = vld [vmem:[#allocation2 + $0xb8] sm:$0xff]
    %v672 = vld [vmem:[#allocation2 + $0xc0] sm:$0xff]
    %v673 = vld [vmem:[#allocation2 + $0xc8] sm:$0xff]
    %v674 = vld [vmem:[#allocation2 + $0xd0] sm:$0xff]
    %v675 = vld [vmem:[#allocation2 + $0xd8] sm:$0xff]
    %v676 = vld [vmem:[#allocation2 + $0xe0] sm:$0xff]
    %v677 = vld [vmem:[#allocation2 + $0xe8] sm:$0xff]
    %v678 = vld [vmem:[#allocation2 + $0xf0] sm:$0xff]
    %v679 = vld [vmem:[#allocation2 + $0xf8] sm:$0xff]
    %v680 = vld [vmem:[#allocation2 + $0x100] sm:$0xff]
    %v681 = vld [vmem:[#allocation2 + $0x108] sm:$0xff]
    %v682 = vld [vmem:[#allocation2 + $0x110] sm:$0xff]
    %v683 = vld [vmem:[#allocation2 + $0x118] sm:$0xff]
    %vm684 = vcmask 261120
    %v686 = vsel %vm684, %v626, 0
    %v689 = vsel %vm684, %v629, 0
    %v692 = vsel %vm684, %v632, 0
    %v695 = vsel %vm684, %v635, 0
    %v698 = vsel %vm684, %v638, 0
    %v701 = vsel %vm684, %v641, 0
    %v704 = vsel %vm684, %v644, 0
    %v707 = vsel %vm684, %v647, 0
    %709 = vmatprep.subr.mxu0 0.0
    %710 = vmatpush1.msra.mxu0 %v648
    %711 = vmatprep.subr.mxu0 0.0
    %712 = vmatpush1.msra.mxu0 %v649
    %713 = vmatprep.subr.mxu0 0.0
    %714 = vmatpush1.msra.mxu0 %v650
    %715 = vmatprep.subr.mxu0 0.0
    %716 = vmatpush1.msra.mxu0 %v651
    %717 = vmatprep.subr.mxu0 0.0
    %718 = vmatpush1.msra.mxu0 %v652
    %719 = vmatprep.subr.mxu0 0.0
    %720 = vmatpush1.msra.mxu0 %v653
    %721 = vmatprep.subr.mxu0 0.0
    %722 = vmatpush1.msra.mxu0 %v654
    %723 = vmatprep.subr.mxu0 0.0
    %724 = vmatpush1.msra.mxu0 %v655
    %725 = vmatprep.subr.mxu0 0.0
    %726 = vmatpush1.msra.mxu0 %v656
    %727 = vmatprep.subr.mxu0 0.0
    %728 = vmatpush1.msra.mxu0 %v657
    %729 = vmatprep.subr.mxu0 0.0
    %730 = vmatpush1.msra.mxu0 %v658
    %731 = vmatprep.subr.mxu0 0.0
    %732 = vmatpush1.msra.mxu0 %v659
    %733 = vmatprep.subr.mxu0 0.0
    %734 = vmatpush1.msra.mxu0 %v660
    %735 = vmatprep.subr.mxu0 0.0
    %736 = vmatpush1.msra.mxu0 %v661
    %737 = vmatprep.subr.mxu0 0.0
    %738 = vmatpush1.msra.mxu0 %v662
    %739 = vmatprep.subr.mxu0 0.0
    %740 = vmatpush1.msra.mxu0 %v663
    %741 = vmatprep.subr.mxu0 0.0
    %742 = vmatpush1.msra.mxu0 %v664
    %743 = vmatprep.subr.mxu0 0.0
    %744 = vmatpush1.msra.mxu0 %v665
    %745 = vmatprep.subr.mxu0 0.0
    %746 = vmatpush1.msra.mxu0 %v666
    %747 = vmatprep.subr.mxu0 0.0
    %748 = vmatpush1.msra.mxu0 %v667
    %749 = vmatprep.subr.mxu0 0.0
    %750 = vmatpush1.msra.mxu0 %v668
    %751 = vmatprep.subr.mxu0 0.0
    %752 = vmatpush1.msra.mxu0 %v669
    %753 = vmatprep.subr.mxu0 0.0
    %754 = vmatpush1.msra.mxu0 %v670
    %755 = vmatprep.subr.mxu0 0.0
    %756 = vmatpush1.msra.mxu0 %v671
    %757 = vmatprep.subr.mxu0 0.0
    %758 = vmatpush1.msra.mxu0 %v672
    %759 = vmatprep.subr.mxu0 0.0
    %760 = vmatpush1.msra.mxu0 %v673
    %761 = vmatprep.subr.mxu0 0.0
    %762 = vmatpush1.msra.mxu0 %v674
    %763 = vmatprep.subr.mxu0 0.0
    %764 = vmatpush1.msra.mxu0 %v675
    %765 = vmatprep.subr.mxu0 0.0
    %766 = vmatpush1.msra.mxu0 %v676
    %767 = vmatprep.subr.mxu0 0.0
    %768 = vmatpush1.msra.mxu0 %v677
    %769 = vmatprep.subr.mxu0 0.0
    %770 = vmatpush1.msra.mxu0 %v678
    %771 = vmatprep.subr.mxu0 0.0
    %772 = vmatpush1.msra.mxu0 %v679
    %773 = vmatprep.mubr.f32.mxu0 %v625
    %774 = vmatmul.mubr.f32.gmra.mrb[0].mxu0 %v624
    %v775 = vpop.f32.mrb[0].mxu0
    %v776 = vadd.f32 0.0, %v775
    %v777 = vpop.f32.mrb[0].mxu0
    %778 = vmatprep.mubr.f32.mxu0 %v628
    %779 = vmatmul.mubr.f32.gmra.mrb[0].mxu0 %v627
    %v780 = vpop.f32.mrb[0].mxu0
    %v781 = vadd.f32 0.0, %v780
    %v782 = vpop.f32.mrb[0].mxu0
    %783 = vmatprep.mubr.f32.mxu0 %v631
    %784 = vmatmul.mubr.f32.gmra.mrb[0].mxu0 %v630
    %v785 = vpop.f32.mrb[0].mxu0
    %v786 = vadd.f32 0.0, %v785
    %v787 = vpop.f32.mrb[0].mxu0
    %788 = vmatprep.mubr.f32.mxu0 %v634
    %789 = vmatmul.mubr.f32.gmra.mrb[0].mxu0 %v633
    %v790 = vpop.f32.mrb[0].mxu0
    %v791 = vadd.f32 0.0, %v790
    %v792 = vpop.f32.mrb[0].mxu0
    %793 = vmatprep.mubr.f32.mxu0 %v637
    %794 = vmatmul.mubr.f32.gmra.mrb[0].mxu0 %v636
    %v795 = vpop.f32.mrb[0].mxu0
    %v796 = vadd.f32 0.0, %v795
    %v797 = vpop.f32.mrb[0].mxu0
    %798 = vmatprep.mubr.f32.mxu0 %v640
    %799 = vmatmul.mubr.f32.gmra.mrb[0].mxu0 %v639
    %v800 = vpop.f32.mrb[0].mxu0
    %v801 = vadd.f32 0.0, %v800
    %v802 = vpop.f32.mrb[0].mxu0
    %803 = vmatprep.mubr.f32.mxu0 %v643
    %804 = vmatmul.mubr.f32.gmra.mrb[0].mxu0 %v642
    %v805 = vpop.f32.mrb[0].mxu0
    %v806 = vadd.f32 0.0, %v805
    %v807 = vpop.f32.mrb[0].mxu0
    %808 = vmatprep.mubr.f32.mxu0 %v646
    %809 = vmatmul.mubr.f32.gmra.mrb[0].mxu0 %v645
    %v810 = vpop.f32.mrb[0].mxu0
    %v811 = vadd.f32 0.0, %v810
    %v812 = vpop.f32.mrb[0].mxu0
    %813 = vdwg.mxu0
    %814 = vmatprep.subr.mxu0 0.0
    %815 = vmatpush1.msra.mxu0 %v680
    %816 = vmatprep.subr.mxu0 0.0
    %817 = vmatpush1.msra.mxu0 %v681
    %818 = vmatprep.subr.mxu0 0.0
    %819 = vmatpush1.msra.mxu0 %v682
    %820 = vmatprep.subr.mxu0 0.0
    %821 = vmatpush1.msra.mxu0 %v683
    %822 = vmatprep.subr.mxu0 0.0
    %823 = vmatpush1.msra.mxu0 0.0
    %824 = vmatprep.subr.mxu0 0.0
    %825 = vmatpush1.msra.mxu0 0.0
    %826 = vmatprep.subr.mxu0 0.0
    %827 = vmatpush1.msra.mxu0 0.0
    %828 = vmatprep.subr.mxu0 0.0
    %829 = vmatpush1.msra.mxu0 0.0
    %830 = vmatprep.subr.mxu0 0.0
    %831 = vmatpush1.msra.mxu0 0.0
    %832 = vmatprep.subr.mxu0 0.0
    %833 = vmatpush1.msra.mxu0 0.0
    %834 = vmatprep.subr.mxu0 0.0
    %835 = vmatpush1.msra.mxu0 0.0
    %836 = vmatprep.subr.mxu0 0.0
    %837 = vmatpush1.msra.mxu0 0.0
    %838 = vmatprep.subr.mxu0 0.0
    %839 = vmatpush1.msra.mxu0 0.0
    %840 = vmatprep.subr.mxu0 0.0
    %841 = vmatpush1.msra.mxu0 0.0
    %842 = vmatprep.subr.mxu0 0.0
    %843 = vmatpush1.msra.mxu0 0.0
    %844 = vmatprep.subr.mxu0 0.0
    %845 = vmatpush1.msra.mxu0 0.0
    %846 = vmatprep.subr.mxu0 0.0
    %847 = vmatpush1.msra.mxu0 0.0
    %848 = vmatprep.subr.mxu0 0.0
    %849 = vmatpush1.msra.mxu0 0.0
    %850 = vmatprep.subr.mxu0 0.0
    %851 = vmatpush1.msra.mxu0 0.0
    %852 = vmatprep.subr.mxu0 0.0
    %853 = vmatpush1.msra.mxu0 0.0
    %854 = vmatprep.subr.mxu0 0.0
    %855 = vmatpush1.msra.mxu0 0.0
    %856 = vmatprep.subr.mxu0 0.0
    %857 = vmatpush1.msra.mxu0 0.0
    %858 = vmatprep.subr.mxu0 0.0
    %859 = vmatpush1.msra.mxu0 0.0
    %860 = vmatprep.subr.mxu0 0.0
    %861 = vmatpush1.msra.mxu0 0.0
    %862 = vmatprep.subr.mxu0 0.0
    %863 = vmatpush1.msra.mxu0 0.0
    %864 = vmatprep.subr.mxu0 0.0
    %865 = vmatpush1.msra.mxu0 0.0
    %866 = vmatprep.subr.mxu0 0.0
    %867 = vmatpush1.msra.mxu0 0.0
    %868 = vmatprep.subr.mxu0 0.0
    %869 = vmatpush1.msra.mxu0 0.0
    %870 = vmatprep.subr.mxu0 0.0
    %871 = vmatpush1.msra.mxu0 0.0
    %872 = vmatprep.subr.mxu0 0.0
    %873 = vmatpush1.msra.mxu0 0.0
    %874 = vmatprep.subr.mxu0 0.0
    %875 = vmatpush1.msra.mxu0 0.0
    %876 = vmatprep.subr.mxu0 0.0
    %877 = vmatpush1.msra.mxu0 0.0
    %878 = vmatprep.mubr.f32.mxu0 0.0
    %879 = vmatmul.mubr.f32.gmra.mrb[0].mxu0 %v686
    %v880 = vpop.f32.mrb[0].mxu0
    %v881 = vadd.f32 %v776, %v880
    %v882 = vpop.f32.mrb[0].mxu0
    %883 = vmatprep.mubr.f32.mxu0 0.0
    %884 = vmatmul.mubr.f32.gmra.mrb[0].mxu0 %v689
    %v885 = vpop.f32.mrb[0].mxu0
    %v886 = vadd.f32 %v781, %v885
    %v887 = vpop.f32.mrb[0].mxu0
    %888 = vmatprep.mubr.f32.mxu0 0.0
    %889 = vmatmul.mubr.f32.gmra.mrb[0].mxu0 %v692
    %v890 = vpop.f32.mrb[0].mxu0
    %v891 = vadd.f32 %v786, %v890
    %v892 = vpop.f32.mrb[0].mxu0
    %893 = vmatprep.mubr.f32.mxu0 0.0
    %894 = vmatmul.mubr.f32.gmra.mrb[0].mxu0 %v695
    %v895 = vpop.f32.mrb[0].mxu0
    %v896 = vadd.f32 %v791, %v895
    %v897 = vpop.f32.mrb[0].mxu0
    %898 = vmatprep.mubr.f32.mxu0 0.0
    %899 = vmatmul.mubr.f32.gmra.mrb[0].mxu0 %v698
    %v900 = vpop.f32.mrb[0].mxu0
    %v901 = vadd.f32 %v796, %v900
    %v902 = vpop.f32.mrb[0].mxu0
    %903 = vmatprep.mubr.f32.mxu0 0.0
    %904 = vmatmul.mubr.f32.gmra.mrb[0].mxu0 %v701
    %v905 = vpop.f32.mrb[0].mxu0
    %v906 = vadd.f32 %v801, %v905
    %v907 = vpop.f32.mrb[0].mxu0
    %908 = vmatprep.mubr.f32.mxu0 0.0
    %909 = vmatmul.mubr.f32.gmra.mrb[0].mxu0 %v704
    %v910 = vpop.f32.mrb[0].mxu0
    %v911 = vadd.f32 %v806, %v910
    %v912 = vpop.f32.mrb[0].mxu0
    %913 = vmatprep.mubr.f32.mxu0 0.0
    %914 = vmatmul.mubr.f32.gmra.mrb[0].mxu0 %v707
    %v915 = vpop.f32.mrb[0].mxu0
    %v916 = vadd.f32 %v811, %v915
    %v917 = vpop.f32.mrb[0].mxu0
    %918 = vdwg.mxu0
    %v919 = vld [vmem:[%s7] sm:$0xff]
    %v920 = vld [vmem:[%s7 + $0x8] sm:$0xff]
    %v921 = vld [vmem:[%s8] sm:$0xff]
    %v922 = vld [vmem:[%s8 + $0x8] sm:$0xff]
    %v923 = vadd.f32 %v881, %v891
    %v924 = vadd.f32 %v923, %v901
    %v925 = vadd.f32 %v924, %v911
    %926 = vadd.xlane.f32.xlu0 %v925
    %v927 = vpop.xlane.xlu0 %926
    %v928 = vadd.f32 %v886, %v896
    %v929 = vadd.f32 %v928, %v906
    %v930 = vadd.f32 %v929, %v916
    %931 = vadd.xlane.f32.xlu0 %v930
    %v932 = vpop.xlane.xlu0 %931
    %v933 = vmul.f32 %v927, 0.0078125
    %v934 = vmul.f32 %v932, 0.0078125
    %v935 = vmul.f32 %v881, %v881
    %v936 = vmul.f32 %v891, %v891
    %v937 = vmul.f32 %v901, %v901
    %v938 = vmul.f32 %v911, %v911
    %v939 = vmul.f32 %v886, %v886
    %v940 = vmul.f32 %v896, %v896
    %v941 = vmul.f32 %v906, %v906
    %v942 = vmul.f32 %v916, %v916
    %v943 = vadd.f32 %v935, %v936
    %v944 = vadd.f32 %v943, %v937
    %v945 = vadd.f32 %v944, %v938
    %946 = vadd.xlane.f32.xlu0 %v945
    %v947 = vpop.xlane.xlu0 %946
    %v948 = vadd.f32 %v939, %v940
    %v949 = vadd.f32 %v948, %v941
    %v950 = vadd.f32 %v949, %v942
    %951 = vadd.xlane.f32.xlu0 %v950
    %v952 = vpop.xlane.xlu0 %951
    %v953 = vmul.f32 %v947, 0.0078125
    %v954 = vmul.f32 %v952, 0.0078125
    %v955 = vmul.f32 %v933, %v933
    %v956 = vmul.f32 %v934, %v934
    %v957 = vsub.f32 %v953, %v955
    %v958 = vsub.f32 %v954, %v956
    %v959 = vadd.f32 %v957, 1e-05
    %v960 = vadd.f32 %v958, 1e-05
    %v961 = vrsqrt.pop %v959
    %v962 = vrsqrt.pop %v960
    %v963 = vmul.f32 %v919, %v961
    %v964 = vmul.f32 %v920, %v962
    %v965 = vmul.f32 %v933, %v963
    %v966 = vmul.f32 %v934, %v964
    %v967 = vsub.f32 %v921, %v965
    %v968 = vsub.f32 %v922, %v966
    %970 = vset.pattern.permute.xlu0 0
    %971 = vperm.xlu0 %970, %v963
    %v972 = vpop.permute.xlu0 %971
    %975 = vset.pattern.permute.xlu0 0
    %976 = vperm.xlu0 %975, %v964
    %v977 = vpop.permute.xlu0 %976
    %v979 = vmul.f32 %v881, %v972
    %v980 = vmul.f32 %v891, %v972
    %v981 = vmul.f32 %v901, %v972
    %v982 = vmul.f32 %v911, %v972
    %v983 = vmul.f32 %v886, %v977
    %v984 = vmul.f32 %v896, %v977
    %v985 = vmul.f32 %v906, %v977
    %v986 = vmul.f32 %v916, %v977
    %988 = vset.pattern.permute.xlu0 0
    %989 = vperm.xlu0 %988, %v967
    %v990 = vpop.permute.xlu0 %989
    %993 = vset.pattern.permute.xlu0 0
    %994 = vperm.xlu0 %993, %v968
    %v995 = vpop.permute.xlu0 %994
    %v997 = vadd.f32 %v979, %v990
    %v998 = vadd.f32 %v980, %v990
    %v999 = vadd.f32 %v981, %v990
    %v1000 = vadd.f32 %v982, %v990
    %v1001 = vadd.f32 %v983, %v995
    %v1002 = vadd.f32 %v984, %v995
    %v1003 = vadd.f32 %v985, %v995
    %v1004 = vadd.f32 %v986, %v995
    %v1005 = vmax.f32 %v997, 0.0
    %v1006 = vmax.f32 %v998, 0.0
    %v1007 = vmax.f32 %v999, 0.0
    %v1008 = vmax.f32 %v1000, 0.0
    %v1009 = vmax.f32 %v1001, 0.0
    %v1010 = vmax.f32 %v1002, 0.0
    %v1011 = vmax.f32 %v1003, 0.0
    %v1012 = vmax.f32 %v1004, 0.0
    %v1013 = vpack.c.bf16 %v1009, %v1005
    %v1014 = vpack.c.bf16 %v1010, %v1006
    %v1015 = vpack.c.bf16 %v1011, %v1007
    %v1016 = vpack.c.bf16 %v1012, %v1008
    %v1017 = vld [vmem:[#allocation10] sm:$0xf]
    %v1018 = vld [vmem:[#allocation10 + $0x4] sm:$0xf]
    %v1019 = vld [vmem:[#allocation10 + $0x8] sm:$0xf]
    %v1020 = vld [vmem:[#allocation10 + $0xc] sm:$0xf]
    %v1021 = vld [vmem:[#allocation10 + $0x10] sm:$0xf]
    %v1022 = vld [vmem:[#allocation10 + $0x14] sm:$0xf]
    %v1023 = vld [vmem:[#allocation10 + $0x18] sm:$0xf]
    %v1024 = vld [vmem:[#allocation10 + $0x1c] sm:$0xf]
    %v1025 = vld [vmem:[#allocation10 + $0x20] sm:$0xf]
    %v1026 = vld [vmem:[#allocation10 + $0x24] sm:$0xf]
    %v1027 = vld [vmem:[#allocation10 + $0x28] sm:$0xf]
    %v1028 = vld [vmem:[#allocation10 + $0x2c] sm:$0xf]
    %v1029 = vld [vmem:[#allocation10 + $0x30] sm:$0xf]
    %v1030 = vld [vmem:[#allocation10 + $0x34] sm:$0xf]
    %v1031 = vld [vmem:[#allocation10 + $0x38] sm:$0xf]
    %v1032 = vld [vmem:[#allocation10 + $0x3c] sm:$0xf]
    %v1033 = vld [vmem:[#allocation10 + $0x40] sm:$0xf]
    %v1034 = vld [vmem:[#allocation10 + $0x44] sm:$0xf]
    %v1035 = vld [vmem:[#allocation10 + $0x48] sm:$0xf]
    %v1036 = vld [vmem:[#allocation10 + $0x4c] sm:$0xf]
    %v1037 = vld [vmem:[#allocation10 + $0x50] sm:$0xf]
    %v1038 = vld [vmem:[#allocation10 + $0x54] sm:$0xf]
    %v1039 = vld [vmem:[#allocation10 + $0x58] sm:$0xf]
    %v1040 = vld [vmem:[#allocation10 + $0x5c] sm:$0xf]
    %v1041 = vld [vmem:[#allocation10 + $0x60] sm:$0xf]
    %v1042 = vld [vmem:[#allocation10 + $0x64] sm:$0xf]
    %v1043 = vld [vmem:[#allocation10 + $0x68] sm:$0xf]
    %v1044 = vld [vmem:[#allocation10 + $0x6c] sm:$0xf]
    %v1045 = vld [vmem:[#allocation10 + $0x70] sm:$0xf]
    %v1046 = vld [vmem:[#allocation10 + $0x74] sm:$0xf]
    %v1047 = vld [vmem:[#allocation10 + $0x78] sm:$0xf]
    %v1048 = vld [vmem:[#allocation10 + $0x7c] sm:$0xf]
    %v1049 = vld [vmem:[#allocation10 + $0x80] sm:$0xf]
    %v1050 = vld [vmem:[#allocation10 + $0x84] sm:$0xf]
    %v1051 = vld [vmem:[#allocation10 + $0x88] sm:$0xf]
    %v1052 = vld [vmem:[#allocation10 + $0x8c] sm:$0xf]
    %v1053 = vld [vmem:[#allocation10 + $0x90] sm:$0xf]
    %v1054 = vld [vmem:[#allocation10 + $0x94] sm:$0xf]
    %v1055 = vld [vmem:[#allocation10 + $0x98] sm:$0xf]
    %v1056 = vld [vmem:[#allocation10 + $0x9c] sm:$0xf]
    %v1057 = vld [vmem:[#allocation10 + $0xa0] sm:$0xf]
    %v1058 = vld [vmem:[#allocation10 + $0xa4] sm:$0xf]
    %v1059 = vld [vmem:[#allocation10 + $0xa8] sm:$0xf]
    %v1060 = vld [vmem:[#allocation10 + $0xac] sm:$0xf]
    %v1061 = vld [vmem:[#allocation10 + $0xb0] sm:$0xf]
    %v1062 = vld [vmem:[#allocation10 + $0xb4] sm:$0xf]
    %v1063 = vld [vmem:[#allocation10 + $0xb8] sm:$0xf]
    %v1064 = vld [vmem:[#allocation10 + $0xbc] sm:$0xf]
    %v1065 = vld [vmem:[#allocation10 + $0xc0] sm:$0xf]
    %v1066 = vld [vmem:[#allocation10 + $0xc4] sm:$0xf]
    %v1067 = vld [vmem:[#allocation10 + $0xc8] sm:$0xf]
    %v1068 = vld [vmem:[#allocation10 + $0xcc] sm:$0xf]
    %v1069 = vld [vmem:[#allocation10 + $0xd0] sm:$0xf]
    %v1070 = vld [vmem:[#allocation10 + $0xd4] sm:$0xf]
    %v1071 = vld [vmem:[#allocation10 + $0xd8] sm:$0xf]
    %v1072 = vld [vmem:[#allocation10 + $0xdc] sm:$0xf]
    %v1073 = vld [vmem:[#allocation10 + $0xe0] sm:$0xf]
    %v1074 = vld [vmem:[#allocation10 + $0xe4] sm:$0xf]
    %v1075 = vld [vmem:[#allocation10 + $0xe8] sm:$0xf]
    %v1076 = vld [vmem:[#allocation10 + $0xec] sm:$0xf]
    %v1077 = vld [vmem:[#allocation10 + $0xf0] sm:$0xf]
    %v1078 = vld [vmem:[#allocation10 + $0xf4] sm:$0xf]
    %v1079 = vld [vmem:[#allocation10 + $0xf8] sm:$0xf]
    %v1080 = vld [vmem:[#allocation10 + $0xfc] sm:$0xf]
    %v1145 = vunpack.c.l.b16 %v1017
    %v1146 = vunpack.c.l.b16 %v1018
    %v1147 = vunpack.c.l.b16 %v1019
    %v1148 = vunpack.c.l.b16 %v1020
    %v1149 = vunpack.c.l.b16 %v1021
    %v1150 = vunpack.c.l.b16 %v1022
    %v1151 = vunpack.c.l.b16 %v1023
    %v1152 = vunpack.c.l.b16 %v1024
    %v1153 = vunpack.c.l.b16 %v1025
    %v1154 = vunpack.c.l.b16 %v1026
    %v1155 = vunpack.c.l.b16 %v1027
    %v1156 = vunpack.c.l.b16 %v1028
    %v1157 = vunpack.c.l.b16 %v1029
    %v1158 = vunpack.c.l.b16 %v1030
    %v1159 = vunpack.c.l.b16 %v1031
    %v1160 = vunpack.c.l.b16 %v1032
    %v1161 = vunpack.c.l.b16 %v1033
    %v1162 = vunpack.c.l.b16 %v1034
    %v1163 = vunpack.c.l.b16 %v1035
    %v1164 = vunpack.c.l.b16 %v1036
    %v1165 = vunpack.c.l.b16 %v1037
    %v1166 = vunpack.c.l.b16 %v1038
    %v1167 = vunpack.c.l.b16 %v1039
    %v1168 = vunpack.c.l.b16 %v1040
    %v1169 = vunpack.c.l.b16 %v1041
    %v1170 = vunpack.c.l.b16 %v1042
    %v1171 = vunpack.c.l.b16 %v1043
    %v1172 = vunpack.c.l.b16 %v1044
    %v1173 = vunpack.c.l.b16 %v1045
    %v1174 = vunpack.c.l.b16 %v1046
    %v1175 = vunpack.c.l.b16 %v1047
    %v1176 = vunpack.c.l.b16 %v1048
    %v1177 = vunpack.c.l.b16 %v1049
    %v1178 = vunpack.c.l.b16 %v1050
    %v1179 = vunpack.c.l.b16 %v1051
    %v1180 = vunpack.c.l.b16 %v1052
    %v1181 = vunpack.c.l.b16 %v1053
    %v1182 = vunpack.c.l.b16 %v1054
    %v1183 = vunpack.c.l.b16 %v1055
    %v1184 = vunpack.c.l.b16 %v1056
    %v1185 = vunpack.c.l.b16 %v1057
    %v1186 = vunpack.c.l.b16 %v1058
    %v1187 = vunpack.c.l.b16 %v1059
    %v1188 = vunpack.c.l.b16 %v1060
    %v1189 = vunpack.c.l.b16 %v1061
    %v1190 = vunpack.c.l.b16 %v1062
    %v1191 = vunpack.c.l.b16 %v1063
    %v1192 = vunpack.c.l.b16 %v1064
    %v1193 = vunpack.c.l.b16 %v1065
    %v1194 = vunpack.c.l.b16 %v1066
    %v1195 = vunpack.c.l.b16 %v1067
    %v1196 = vunpack.c.l.b16 %v1068
    %v1197 = vunpack.c.l.b16 %v1069
    %v1198 = vunpack.c.l.b16 %v1070
    %v1199 = vunpack.c.l.b16 %v1071
    %v1200 = vunpack.c.l.b16 %v1072
    %v1201 = vunpack.c.l.b16 %v1073
    %v1202 = vunpack.c.l.b16 %v1074
    %v1203 = vunpack.c.l.b16 %v1075
    %v1204 = vunpack.c.l.b16 %v1076
    %v1205 = vunpack.c.l.b16 %v1077
    %v1206 = vunpack.c.l.b16 %v1078
    %v1207 = vunpack.c.l.b16 %v1079
    %v1208 = vunpack.c.l.b16 %v1080
    %v1209 = vpack.c.b16 %v1146, %v1145
    %v1210 = vpack.c.b16 %v1148, %v1147
    %v1211 = vpack.c.b16 %v1150, %v1149
    %v1212 = vpack.c.b16 %v1152, %v1151
    %v1213 = vpack.c.b16 %v1154, %v1153
    %v1214 = vpack.c.b16 %v1156, %v1155
    %v1215 = vpack.c.b16 %v1158, %v1157
    %v1216 = vpack.c.b16 %v1160, %v1159
    %v1217 = vpack.c.b16 %v1162, %v1161
    %v1218 = vpack.c.b16 %v1164, %v1163
    %v1219 = vpack.c.b16 %v1166, %v1165
    %v1220 = vpack.c.b16 %v1168, %v1167
    %v1221 = vpack.c.b16 %v1170, %v1169
    %v1222 = vpack.c.b16 %v1172, %v1171
    %v1223 = vpack.c.b16 %v1174, %v1173
    %v1224 = vpack.c.b16 %v1176, %v1175
    %v1225 = vpack.c.b16 %v1178, %v1177
    %v1226 = vpack.c.b16 %v1180, %v1179
    %v1227 = vpack.c.b16 %v1182, %v1181
    %v1228 = vpack.c.b16 %v1184, %v1183
    %v1229 = vpack.c.b16 %v1186, %v1185
    %v1230 = vpack.c.b16 %v1188, %v1187
    %v1231 = vpack.c.b16 %v1190, %v1189
    %v1232 = vpack.c.b16 %v1192, %v1191
    %v1233 = vpack.c.b16 %v1194, %v1193
    %v1234 = vpack.c.b16 %v1196, %v1195
    %v1235 = vpack.c.b16 %v1198, %v1197
    %v1236 = vpack.c.b16 %v1200, %v1199
    %v1237 = vpack.c.b16 %v1202, %v1201
    %v1238 = vpack.c.b16 %v1204, %v1203
    %v1239 = vpack.c.b16 %v1206, %v1205
    %v1240 = vpack.c.b16 %v1208, %v1207
    %1273 = vmatprep.subr.bf16.mxu0 0
    %1274 = vmatpush1.bf16.msra.mxu0 %v1209
    %1275 = vmatprep.subr.bf16.mxu0 0
    %1276 = vmatpush1.bf16.msra.mxu0 %v1210
    %1277 = vmatprep.subr.bf16.mxu0 0
    %1278 = vmatpush1.bf16.msra.mxu0 %v1211
    %1279 = vmatprep.subr.bf16.mxu0 0
    %1280 = vmatpush1.bf16.msra.mxu0 %v1212
    %1281 = vmatprep.subr.bf16.mxu0 0
    %1282 = vmatpush1.bf16.msra.mxu0 %v1213
    %1283 = vmatprep.subr.bf16.mxu0 0
    %1284 = vmatpush1.bf16.msra.mxu0 %v1214
    %1285 = vmatprep.subr.bf16.mxu0 0
    %1286 = vmatpush1.bf16.msra.mxu0 %v1215
    %1287 = vmatprep.subr.bf16.mxu0 0
    %1288 = vmatpush1.bf16.msra.mxu0 %v1216
    %1289 = vmatprep.subr.bf16.mxu0 0
    %1290 = vmatpush1.bf16.msra.mxu0 %v1217
    %1291 = vmatprep.subr.bf16.mxu0 0
    %1292 = vmatpush1.bf16.msra.mxu0 %v1218
    %1293 = vmatprep.subr.bf16.mxu0 0
    %1294 = vmatpush1.bf16.msra.mxu0 %v1219
    %1295 = vmatprep.subr.bf16.mxu0 0
    %1296 = vmatpush1.bf16.msra.mxu0 %v1220
    %1297 = vmatprep.subr.bf16.mxu0 0
    %1298 = vmatpush1.bf16.msra.mxu0 %v1221
    %1299 = vmatprep.subr.bf16.mxu0 0
    %1300 = vmatpush1.bf16.msra.mxu0 %v1222
    %1301 = vmatprep.subr.bf16.mxu0 0
    %1302 = vmatpush1.bf16.msra.mxu0 %v1223
    %1303 = vmatprep.subr.bf16.mxu0 0
    %1304 = vmatpush1.bf16.msra.mxu0 %v1224
    %1305 = vmatprep.mubr.bf16.mxu0 %v1014
    %1306 = vmatmul.mubr.bf16.gmra.mrb[0].mxu0 %v1013
    %v1307 = vpop.f32.mrb[0].mxu0
    %v1308 = vadd.f32 0.0, %v1307
    %v1309 = vpop.f32.mrb[0].mxu0
    %v1310 = vpop.f32.mrb[0].mxu0
    %v1311 = vadd.f32 0.0, %v1310
    %v1312 = vpop.f32.mrb[0].mxu0
    %1313 = vdwg.mxu0
    %1314 = vmatprep.subr.bf16.mxu0 0
    %1315 = vmatpush1.bf16.msra.mxu0 %v1225
    %1316 = vmatprep.subr.bf16.mxu0 0
    %1317 = vmatpush1.bf16.msra.mxu0 %v1226
    %1318 = vmatprep.subr.bf16.mxu0 0
    %1319 = vmatpush1.bf16.msra.mxu0 %v1227
    %1320 = vmatprep.subr.bf16.mxu0 0
    %1321 = vmatpush1.bf16.msra.mxu0 %v1228
    %1322 = vmatprep.subr.bf16.mxu0 0
    %1323 = vmatpush1.bf16.msra.mxu0 %v1229
    %1324 = vmatprep.subr.bf16.mxu0 0
    %1325 = vmatpush1.bf16.msra.mxu0 %v1230
    %1326 = vmatprep.subr.bf16.mxu0 0
    %1327 = vmatpush1.bf16.msra.mxu0 %v1231
    %1328 = vmatprep.subr.bf16.mxu0 0
    %1329 = vmatpush1.bf16.msra.mxu0 %v1232
    %1330 = vmatprep.subr.bf16.mxu0 0
    %1331 = vmatpush1.bf16.msra.mxu0 %v1233
    %1332 = vmatprep.subr.bf16.mxu0 0
    %1333 = vmatpush1.bf16.msra.mxu0 %v1234
    %1334 = vmatprep.subr.bf16.mxu0 0
    %1335 = vmatpush1.bf16.msra.mxu0 %v1235
    %1336 = vmatprep.subr.bf16.mxu0 0
    %1337 = vmatpush1.bf16.msra.mxu0 %v1236
    %1338 = vmatprep.subr.bf16.mxu0 0
    %1339 = vmatpush1.bf16.msra.mxu0 %v1237
    %1340 = vmatprep.subr.bf16.mxu0 0
    %1341 = vmatpush1.bf16.msra.mxu0 %v1238
    %1342 = vmatprep.subr.bf16.mxu0 0
    %1343 = vmatpush1.bf16.msra.mxu0 %v1239
    %1344 = vmatprep.subr.bf16.mxu0 0
    %1345 = vmatpush1.bf16.msra.mxu0 %v1240
    %1346 = vmatprep.mubr.bf16.mxu0 %v1016
    %1347 = vmatmul.mubr.bf16.gmra.mrb[0].mxu0 %v1015
    %v1348 = vpop.f32.mrb[0].mxu0
    %v1349 = vadd.f32 %v1308, %v1348
    %v1350 = vpop.f32.mrb[0].mxu0
    %v1351 = vpop.f32.mrb[0].mxu0
    %v1352 = vadd.f32 %v1311, %v1351
    %v1353 = vpop.f32.mrb[0].mxu0
    %1354 = vdwg.mxu0
    %1355 = vrot.lane.b32.xlu0 %v1349, 9
    %v1356 = vpop.permute.xlu0 %1355
    %1357 = vrot.lane.b32.xlu0 %v1352, 9
    %v1358 = vpop.permute.xlu0 %1357
    %v1359 = vld [vmem:[#allocation13] sm:$0x1]
    %v1361 = vlaneseq
    %v1362 = vshrl.u32 %v1361, 7
    %v1363 = vsub.s32 0, %v1362
    %v1364 = vrot.slane %v1359, %v1363
    %v1366 = vmul.f32 %v1356, %v1364
    %v1367 = vmul.f32 %v1358, %v1364
    %1368 = vst [vmem:[#allocation3] sm:$0xff] %v1366
    %1369 = vst [vmem:[#allocation3 + $0x8] sm:$0xff] %v1367
    %1370 = vrot.lane.b32.xlu0 %v1349, 8
    %v1371 = vpop.permute.xlu0 %1370
    %1372 = vrot.lane.b32.xlu0 %v1352, 8
    %v1373 = vpop.permute.xlu0 %1372
    %s1374 = scalar_lea.vmem [#allocation13], 1
    %v1375 = vld [vmem:[%s1374] sm:$0x1]
    %v1377 = vlaneseq
    %v1378 = vshrl.u32 %v1377, 7
    %v1379 = vsub.s32 0, %v1378
    %v1380 = vrot.slane %v1375, %v1379
    %v1382 = vmul.f32 %v1371, %v1380
    %v1383 = vmul.f32 %v1373, %v1380
    %1384 = vst [vmem:[#allocation3 + $0x10] sm:$0xff] %v1382
    %1385 = vst [vmem:[#allocation3 + $0x18] sm:$0xff] %v1383
    %1386 = vrot.lane.b32.xlu0 %v1349, 7
    %v1387 = vpop.permute.xlu0 %1386
    %1388 = vrot.lane.b32.xlu0 %v1352, 7
    %v1389 = vpop.permute.xlu0 %1388
    %s1390 = scalar_lea.vmem [#allocation13], 2
    %v1391 = vld [vmem:[%s1390] sm:$0x1]
    %v1393 = vlaneseq
    %v1394 = vshrl.u32 %v1393, 7
    %v1395 = vsub.s32 0, %v1394
    %v1396 = vrot.slane %v1391, %v1395
    %v1398 = vmul.f32 %v1387, %v1396
    %v1399 = vmul.f32 %v1389, %v1396
    %1400 = vst [vmem:[#allocation3 + $0x20] sm:$0xff] %v1398
    %1401 = vst [vmem:[#allocation3 + $0x28] sm:$0xff] %v1399
    %1402 = vrot.lane.b32.xlu0 %v1349, 1
    %v1403 = vpop.permute.xlu0 %1402
    %1404 = vrot.lane.b32.xlu0 %v1352, 1
    %v1405 = vpop.permute.xlu0 %1404
    %s1406 = scalar_lea.vmem [#allocation13], 3
    %v1407 = vld [vmem:[%s1406] sm:$0x1]
    %v1409 = vlaneseq
    %v1410 = vshrl.u32 %v1409, 7
    %v1411 = vsub.s32 0, %v1410
    %v1412 = vrot.slane %v1407, %v1411
    %v1414 = vmul.f32 %v1403, %v1412
    %v1415 = vmul.f32 %v1405, %v1412
    %1416 = vst [vmem:[#allocation3 + $0x30] sm:$0xff] %v1414
    %1417 = vst [vmem:[#allocation3 + $0x38] sm:$0xff] %v1415
    %1418 = vst [vmem:[#allocation3 + $0x40] sm:$0xff] %v1349
    %1419 = vst [vmem:[#allocation3 + $0x48] sm:$0xff] %v1352
    %1420 = vrot.lane.b32.xlu0 %v1349, 127
    %v1421 = vpop.permute.xlu0 %1420
    %1422 = vrot.lane.b32.xlu0 %v1352, 127
    %v1423 = vpop.permute.xlu0 %1422
    %s1424 = scalar_lea.vmem [#allocation13], 5
    %v1425 = vld [vmem:[%s1424] sm:$0x1]
    %v1427 = vlaneseq
    %v1428 = vshrl.u32 %v1427, 7
    %v1429 = vsub.s32 0, %v1428
    %v1430 = vrot.slane %v1425, %v1429
    %v1432 = vmul.f32 %v1421, %v1430
    %v1433 = vmul.f32 %v1423, %v1430
    %1434 = vst [vmem:[#allocation3 + $0x50] sm:$0xff] %v1432
    %1435 = vst [vmem:[#allocation3 + $0x58] sm:$0xff] %v1433
    %1436 = vrot.lane.b32.xlu0 %v1349, 121
    %v1437 = vpop.permute.xlu0 %1436
    %1438 = vrot.lane.b32.xlu0 %v1352, 121
    %v1439 = vpop.permute.xlu0 %1438
    %s1440 = scalar_lea.vmem [#allocation13], 6
    %v1441 = vld [vmem:[%s1440] sm:$0x1]
    %v1443 = vlaneseq
    %v1444 = vshrl.u32 %v1443, 7
    %v1445 = vsub.s32 0, %v1444
    %v1446 = vrot.slane %v1441, %v1445
    %v1448 = vmul.f32 %v1437, %v1446
    %v1449 = vmul.f32 %v1439, %v1446
    %1450 = vst [vmem:[#allocation3 + $0x60] sm:$0xff] %v1448
    %1451 = vst [vmem:[#allocation3 + $0x68] sm:$0xff] %v1449
    %1452 = vrot.lane.b32.xlu0 %v1349, 120
    %v1453 = vpop.permute.xlu0 %1452
    %1454 = vrot.lane.b32.xlu0 %v1352, 120
    %v1455 = vpop.permute.xlu0 %1454
    %s1456 = scalar_lea.vmem [#allocation13], 7
    %v1457 = vld [vmem:[%s1456] sm:$0x1]
    %v1459 = vlaneseq
    %v1460 = vshrl.u32 %v1459, 7
    %v1461 = vsub.s32 0, %v1460
    %v1462 = vrot.slane %v1457, %v1461
    %v1464 = vmul.f32 %v1453, %v1462
    %v1465 = vmul.f32 %v1455, %v1462
    %1466 = vst [vmem:[#allocation3 + $0x70] sm:$0xff] %v1464
    %1467 = vst [vmem:[#allocation3 + $0x78] sm:$0xff] %v1465
    %1468 = vrot.lane.b32.xlu0 %v1349, 119
    %v1469 = vpop.permute.xlu0 %1468
    %1470 = vrot.lane.b32.xlu0 %v1352, 119
    %v1471 = vpop.permute.xlu0 %1470
    %s1472 = scalar_lea.vmem [#allocation13], 8
    %v1473 = vld [vmem:[%s1472] sm:$0x1]
    %v1475 = vlaneseq
    %v1476 = vshrl.u32 %v1475, 7
    %v1477 = vsub.s32 0, %v1476
    %v1478 = vrot.slane %v1473, %v1477
    %v1480 = vmul.f32 %v1469, %v1478
    %v1481 = vmul.f32 %v1471, %v1478
    %1482 = vst [vmem:[#allocation3 + $0x80] sm:$0xff] %v1480
    %1483 = vst [vmem:[#allocation3 + $0x88] sm:$0xff] %v1481
    %v1484 = vld [vmem:[#allocation12] sm:$0xff]
    %v1485 = vld [vmem:[#allocation12 + $0x8] sm:$0xff]
    %v1486 = vld [vmem:[#allocation12 + $0x10] sm:$0xff]
    %v1487 = vld [vmem:[#allocation12 + $0x18] sm:$0xff]
    %v1488 = vld [vmem:[#allocation12 + $0x20] sm:$0xff]
    %v1489 = vld [vmem:[#allocation12 + $0x28] sm:$0xff]
    %v1490 = vld [vmem:[#allocation12 + $0x30] sm:$0xff]
    %v1491 = vld [vmem:[#allocation12 + $0x38] sm:$0xff]
    %v1492 = vld [vmem:[#allocation3] sm:$0xff]
    %v1493 = vld [vmem:[#allocation3 + $0x8] sm:$0xff]
    %v1494 = vld [vmem:[#allocation3 + $0x10] sm:$0xff]
    %v1495 = vld [vmem:[#allocation3 + $0x18] sm:$0xff]
    %v1496 = vld [vmem:[#allocation3 + $0x20] sm:$0xff]
    %v1497 = vld [vmem:[#allocation3 + $0x28] sm:$0xff]
    %v1498 = vld [vmem:[#allocation3 + $0x30] sm:$0xff]
    %v1499 = vld [vmem:[#allocation3 + $0x38] sm:$0xff]
    %v1500 = vld [vmem:[#allocation3 + $0x40] sm:$0xff]
    %v1501 = vld [vmem:[#allocation3 + $0x48] sm:$0xff]
    %v1502 = vld [vmem:[#allocation3 + $0x50] sm:$0xff]
    %v1503 = vld [vmem:[#allocation3 + $0x58] sm:$0xff]
    %v1504 = vld [vmem:[#allocation3 + $0x60] sm:$0xff]
    %v1505 = vld [vmem:[#allocation3 + $0x68] sm:$0xff]
    %v1506 = vld [vmem:[#allocation3 + $0x70] sm:$0xff]
    %v1507 = vld [vmem:[#allocation3 + $0x78] sm:$0xff]
    %v1508 = vld [vmem:[#allocation3 + $0x80] sm:$0xff]
    %v1509 = vld [vmem:[#allocation3 + $0x88] sm:$0xff]
    %vm1510 = vcmask 130048
    %v1512 = vsel %vm1510, %v1485, 0
    %v1515 = vsel %vm1510, %v1487, 0
    %v1518 = vsel %vm1510, %v1489, 0
    %v1521 = vsel %vm1510, %v1491, 0
    %1523 = vmatprep.subr.mxu0 0.0
    %1524 = vmatpush1.msra.mxu0 %v1492
    %1525 = vmatprep.subr.mxu0 0.0
    %1526 = vmatpush1.msra.mxu0 %v1493
    %1527 = vmatprep.subr.mxu0 0.0
    %1528 = vmatpush1.msra.mxu0 %v1494
    %1529 = vmatprep.subr.mxu0 0.0
    %1530 = vmatpush1.msra.mxu0 %v1495
    %1531 = vmatprep.subr.mxu0 0.0
    %1532 = vmatpush1.msra.mxu0 %v1496
    %1533 = vmatprep.subr.mxu0 0.0
    %1534 = vmatpush1.msra.mxu0 %v1497
    %1535 = vmatprep.subr.mxu0 0.0
    %1536 = vmatpush1.msra.mxu0 %v1498
    %1537 = vmatprep.subr.mxu0 0.0
    %1538 = vmatpush1.msra.mxu0 %v1499
    %1539 = vmatprep.subr.mxu0 0.0
    %1540 = vmatpush1.msra.mxu0 %v1500
    %1541 = vmatprep.subr.mxu0 0.0
    %1542 = vmatpush1.msra.mxu0 %v1501
    %1543 = vmatprep.subr.mxu0 0.0
    %1544 = vmatpush1.msra.mxu0 %v1502
    %1545 = vmatprep.subr.mxu0 0.0
    %1546 = vmatpush1.msra.mxu0 %v1503
    %1547 = vmatprep.subr.mxu0 0.0
    %1548 = vmatpush1.msra.mxu0 %v1504
    %1549 = vmatprep.subr.mxu0 0.0
    %1550 = vmatpush1.msra.mxu0 %v1505
    %1551 = vmatprep.subr.mxu0 0.0
    %1552 = vmatpush1.msra.mxu0 %v1506
    %1553 = vmatprep.subr.mxu0 0.0
    %1554 = vmatpush1.msra.mxu0 %v1507
    %1555 = vmatprep.subr.mxu0 0.0
    %1556 = vmatpush1.msra.mxu0 %v1508
    %1557 = vmatprep.subr.mxu0 0.0
    %1558 = vmatpush1.msra.mxu0 %v1509
    %1559 = vmatprep.subr.mxu0 0.0
    %1560 = vmatpush1.msra.mxu0 0.0
    %1561 = vmatprep.subr.mxu0 0.0
    %1562 = vmatpush1.msra.mxu0 0.0
    %1563 = vmatprep.subr.mxu0 0.0
    %1564 = vmatpush1.msra.mxu0 0.0
    %1565 = vmatprep.subr.mxu0 0.0
    %1566 = vmatpush1.msra.mxu0 0.0
    %1567 = vmatprep.subr.mxu0 0.0
    %1568 = vmatpush1.msra.mxu0 0.0
    %1569 = vmatprep.subr.mxu0 0.0
    %1570 = vmatpush1.msra.mxu0 0.0
    %1571 = vmatprep.subr.mxu0 0.0
    %1572 = vmatpush1.msra.mxu0 0.0
    %1573 = vmatprep.subr.mxu0 0.0
    %1574 = vmatpush1.msra.mxu0 0.0
    %1575 = vmatprep.subr.mxu0 0.0
    %1576 = vmatpush1.msra.mxu0 0.0
    %1577 = vmatprep.subr.mxu0 0.0
    %1578 = vmatpush1.msra.mxu0 0.0
    %1579 = vmatprep.subr.mxu0 0.0
    %1580 = vmatpush1.msra.mxu0 0.0
    %1581 = vmatprep.subr.mxu0 0.0
    %1582 = vmatpush1.msra.mxu0 0.0
    %1583 = vmatprep.subr.mxu0 0.0
    %1584 = vmatpush1.msra.mxu0 0.0
    %1585 = vmatprep.subr.mxu0 0.0
    %1586 = vmatpush1.msra.mxu0 0.0
    %1587 = vmatprep.mubr.f32.mxu0 %v1512
    %1588 = vmatmul.mubr.f32.gmra.mrb[0].mxu0 %v1484
    %v1589 = vpop.f32.mrb[0].mxu0
    %v1590 = vadd.f32 0.0, %v1589
    %v1591 = vpop.f32.mrb[0].mxu0
    %1592 = vmatprep.mubr.f32.mxu0 %v1515
    %1593 = vmatmul.mubr.f32.gmra.mrb[0].mxu0 %v1486
    %v1594 = vpop.f32.mrb[0].mxu0
    %v1595 = vadd.f32 0.0, %v1594
    %v1596 = vpop.f32.mrb[0].mxu0
    %1597 = vmatprep.mubr.f32.mxu0 %v1518
    %1598 = vmatmul.mubr.f32.gmra.mrb[0].mxu0 %v1488
    %v1599 = vpop.f32.mrb[0].mxu0
    %v1600 = vadd.f32 0.0, %v1599
    %v1601 = vpop.f32.mrb[0].mxu0
    %1602 = vmatprep.mubr.f32.mxu0 %v1521
    %1603 = vmatmul.mubr.f32.gmra.mrb[0].mxu0 %v1490
    %v1604 = vpop.f32.mrb[0].mxu0
    %v1605 = vadd.f32 0.0, %v1604
    %v1606 = vpop.f32.mrb[0].mxu0
    %1607 = vdwg.mxu0
    %v1608 = vld [vmem:[%s12] sm:$0xff]
    %v1609 = vld [vmem:[%s13] sm:$0xff]
    %v1610 = vadd.f32 %v1590, %v1595
    %v1611 = vadd.f32 %v1610, %v1600
    %v1612 = vadd.f32 %v1611, %v1605
    %1613 = vadd.xlane.f32.xlu0 %v1612
    %v1614 = vpop.xlane.xlu0 %1613
    %v1615 = vmul.f32 %v1614, 0.001953125
    %v1616 = vmul.f32 %v1590, %v1590
    %v1617 = vmul.f32 %v1595, %v1595
    %v1618 = vmul.f32 %v1600, %v1600
    %v1619 = vmul.f32 %v1605, %v1605
    %v1620 = vadd.f32 %v1616, %v1617
    %v1621 = vadd.f32 %v1620, %v1618
    %v1622 = vadd.f32 %v1621, %v1619
    %1623 = vadd.xlane.f32.xlu0 %v1622
    %v1624 = vpop.xlane.xlu0 %1623
    %v1625 = vmul.f32 %v1624, 0.001953125
    %v1626 = vmul.f32 %v1615, %v1615
    %v1627 = vsub.f32 %v1625, %v1626
    %v1628 = vadd.f32 %v1627, 1e-05
    %v1629 = vrsqrt.pop %v1628
    %v1630 = vmul.f32 %v1608, %v1629
    %v1631 = vmul.f32 %v1615, %v1630
    %v1632 = vsub.f32 %v1609, %v1631
    %1634 = vset.pattern.permute.xlu0 0
    %1635 = vperm.xlu0 %1634, %v1630
    %v1636 = vpop.permute.xlu0 %1635
    %v1638 = vmul.f32 %v1590, %v1636
    %v1639 = vmul.f32 %v1595, %v1636
    %v1640 = vmul.f32 %v1600, %v1636
    %v1641 = vmul.f32 %v1605, %v1636
    %1643 = vset.pattern.permute.xlu0 0
    %1644 = vperm.xlu0 %1643, %v1632
    %v1645 = vpop.permute.xlu0 %1644
    %v1647 = vadd.f32 %v1638, %v1645
    %v1648 = vadd.f32 %v1639, %v1645
    %v1649 = vadd.f32 %v1640, %v1645
    %v1650 = vadd.f32 %v1641, %v1645
    %v1651 = vmax.f32 %v1647, 0.0
    %v1652 = vmax.f32 %v1648, 0.0
    %v1653 = vmax.f32 %v1649, 0.0
    %v1654 = vmax.f32 %v1650, 0.0
    %v1655 = vpack.c.bf16 %v1651, %v1651
    %v1656 = vpack.c.bf16 %v1652, %v1652
    %v1657 = vpack.c.bf16 %v1653, %v1653
    %v1658 = vpack.c.bf16 %v1654, %v1654
    %v1659 = vld [vmem:[#allocation15] sm:$0xff]
    %v1660 = vld [vmem:[#allocation15 + $0x8] sm:$0xff]
    %v1661 = vld [vmem:[#allocation15 + $0x10] sm:$0xff]
    %v1662 = vld [vmem:[#allocation15 + $0x18] sm:$0xff]
    %v1663 = vld [vmem:[#allocation15 + $0x20] sm:$0xff]
    %v1664 = vld [vmem:[#allocation15 + $0x28] sm:$0xff]
    %v1665 = vld [vmem:[#allocation15 + $0x30] sm:$0xff]
    %v1666 = vld [vmem:[#allocation15 + $0x38] sm:$0xff]
    %v1667 = vld [vmem:[#allocation15 + $0x40] sm:$0xff]
    %v1668 = vld [vmem:[#allocation15 + $0x48] sm:$0xff]
    %v1669 = vld [vmem:[#allocation15 + $0x50] sm:$0xff]
    %v1670 = vld [vmem:[#allocation15 + $0x58] sm:$0xff]
    %v1671 = vld [vmem:[#allocation15 + $0x60] sm:$0xff]
    %v1672 = vld [vmem:[#allocation15 + $0x68] sm:$0xff]
    %v1673 = vld [vmem:[#allocation15 + $0x70] sm:$0xff]
    %v1674 = vld [vmem:[#allocation15 + $0x78] sm:$0xff]
    %v1675 = vld [vmem:[#allocation15 + $0x80] sm:$0xff]
    %v1676 = vld [vmem:[#allocation15 + $0x88] sm:$0xff]
    %v1677 = vld [vmem:[#allocation15 + $0x90] sm:$0xff]
    %v1678 = vld [vmem:[#allocation15 + $0x98] sm:$0xff]
    %v1679 = vld [vmem:[#allocation15 + $0xa0] sm:$0xff]
    %v1680 = vld [vmem:[#allocation15 + $0xa8] sm:$0xff]
    %v1681 = vld [vmem:[#allocation15 + $0xb0] sm:$0xff]
    %v1682 = vld [vmem:[#allocation15 + $0xb8] sm:$0xff]
    %v1683 = vld [vmem:[#allocation15 + $0xc0] sm:$0xff]
    %v1684 = vld [vmem:[#allocation15 + $0xc8] sm:$0xff]
    %v1685 = vld [vmem:[#allocation15 + $0xd0] sm:$0xff]
    %v1686 = vld [vmem:[#allocation15 + $0xd8] sm:$0xff]
    %v1687 = vld [vmem:[#allocation15 + $0xe0] sm:$0xff]
    %v1688 = vld [vmem:[#allocation15 + $0xe8] sm:$0xff]
    %v1689 = vld [vmem:[#allocation15 + $0xf0] sm:$0xff]
    %v1690 = vld [vmem:[#allocation15 + $0xf8] sm:$0xff]
    %v1691 = vld [vmem:[#allocation15 + $0x100] sm:$0xff]
    %v1692 = vld [vmem:[#allocation15 + $0x108] sm:$0xff]
    %v1693 = vld [vmem:[#allocation15 + $0x110] sm:$0xff]
    %v1694 = vld [vmem:[#allocation15 + $0x118] sm:$0xff]
    %v1695 = vld [vmem:[#allocation15 + $0x120] sm:$0xff]
    %v1696 = vld [vmem:[#allocation15 + $0x128] sm:$0xff]
    %v1697 = vld [vmem:[#allocation15 + $0x130] sm:$0xff]
    %v1698 = vld [vmem:[#allocation15 + $0x138] sm:$0xff]
    %v1699 = vld [vmem:[#allocation15 + $0x140] sm:$0xff]
    %v1700 = vld [vmem:[#allocation15 + $0x148] sm:$0xff]
    %v1701 = vld [vmem:[#allocation15 + $0x150] sm:$0xff]
    %v1702 = vld [vmem:[#allocation15 + $0x158] sm:$0xff]
    %v1703 = vld [vmem:[#allocation15 + $0x160] sm:$0xff]
    %v1704 = vld [vmem:[#allocation15 + $0x168] sm:$0xff]
    %v1705 = vld [vmem:[#allocation15 + $0x170] sm:$0xff]
    %v1706 = vld [vmem:[#allocation15 + $0x178] sm:$0xff]
    %v1707 = vld [vmem:[#allocation15 + $0x180] sm:$0xff]
    %v1708 = vld [vmem:[#allocation15 + $0x188] sm:$0xff]
    %v1709 = vld [vmem:[#allocation15 + $0x190] sm:$0xff]
    %v1710 = vld [vmem:[#allocation15 + $0x198] sm:$0xff]
    %v1711 = vld [vmem:[#allocation15 + $0x1a0] sm:$0xff]
    %v1712 = vld [vmem:[#allocation15 + $0x1a8] sm:$0xff]
    %v1713 = vld [vmem:[#allocation15 + $0x1b0] sm:$0xff]
    %v1714 = vld [vmem:[#allocation15 + $0x1b8] sm:$0xff]
    %v1715 = vld [vmem:[#allocation15 + $0x1c0] sm:$0xff]
    %v1716 = vld [vmem:[#allocation15 + $0x1c8] sm:$0xff]
    %v1717 = vld [vmem:[#allocation15 + $0x1d0] sm:$0xff]
    %v1718 = vld [vmem:[#allocation15 + $0x1d8] sm:$0xff]
    %v1719 = vld [vmem:[#allocation15 + $0x1e0] sm:$0xff]
    %v1720 = vld [vmem:[#allocation15 + $0x1e8] sm:$0xff]
    %v1721 = vld [vmem:[#allocation15 + $0x1f0] sm:$0xff]
    %v1722 = vld [vmem:[#allocation15 + $0x1f8] sm:$0xff]
    %v1723 = vld [vmem:[#allocation15 + $0x200] sm:$0xff]
    %v1724 = vld [vmem:[#allocation15 + $0x208] sm:$0xff]
    %v1725 = vld [vmem:[#allocation15 + $0x210] sm:$0xff]
    %v1726 = vld [vmem:[#allocation15 + $0x218] sm:$0xff]
    %v1727 = vld [vmem:[#allocation15 + $0x220] sm:$0xff]
    %v1728 = vld [vmem:[#allocation15 + $0x228] sm:$0xff]
    %v1729 = vld [vmem:[#allocation15 + $0x230] sm:$0xff]
    %v1730 = vld [vmem:[#allocation15 + $0x238] sm:$0xff]
    %v1731 = vld [vmem:[#allocation15 + $0x240] sm:$0xff]
    %v1732 = vld [vmem:[#allocation15 + $0x248] sm:$0xff]
    %v1733 = vld [vmem:[#allocation15 + $0x250] sm:$0xff]
    %v1734 = vld [vmem:[#allocation15 + $0x258] sm:$0xff]
    %v1735 = vld [vmem:[#allocation15 + $0x260] sm:$0xff]
    %v1736 = vld [vmem:[#allocation15 + $0x268] sm:$0xff]
    %v1737 = vld [vmem:[#allocation15 + $0x270] sm:$0xff]
    %v1738 = vld [vmem:[#allocation15 + $0x278] sm:$0xff]
    %v1739 = vld [vmem:[#allocation15 + $0x280] sm:$0xff]
    %v1740 = vld [vmem:[#allocation15 + $0x288] sm:$0xff]
    %v1741 = vld [vmem:[#allocation15 + $0x290] sm:$0xff]
    %v1742 = vld [vmem:[#allocation15 + $0x298] sm:$0xff]
    %v1743 = vld [vmem:[#allocation15 + $0x2a0] sm:$0xff]
    %v1744 = vld [vmem:[#allocation15 + $0x2a8] sm:$0xff]
    %v1745 = vld [vmem:[#allocation15 + $0x2b0] sm:$0xff]
    %v1746 = vld [vmem:[#allocation15 + $0x2b8] sm:$0xff]
    %v1747 = vld [vmem:[#allocation15 + $0x2c0] sm:$0xff]
    %v1748 = vld [vmem:[#allocation15 + $0x2c8] sm:$0xff]
    %v1749 = vld [vmem:[#allocation15 + $0x2d0] sm:$0xff]
    %v1750 = vld [vmem:[#allocation15 + $0x2d8] sm:$0xff]
    %v1751 = vld [vmem:[#allocation15 + $0x2e0] sm:$0xff]
    %v1752 = vld [vmem:[#allocation15 + $0x2e8] sm:$0xff]
    %v1753 = vld [vmem:[#allocation15 + $0x2f0] sm:$0xff]
    %v1754 = vld [vmem:[#allocation15 + $0x2f8] sm:$0xff]
    %v1755 = vld [vmem:[#allocation15 + $0x300] sm:$0xff]
    %v1756 = vld [vmem:[#allocation15 + $0x308] sm:$0xff]
    %v1757 = vld [vmem:[#allocation15 + $0x310] sm:$0xff]
    %v1758 = vld [vmem:[#allocation15 + $0x318] sm:$0xff]
    %v1759 = vld [vmem:[#allocation15 + $0x320] sm:$0xff]
    %v1760 = vld [vmem:[#allocation15 + $0x328] sm:$0xff]
    %v1761 = vld [vmem:[#allocation15 + $0x330] sm:$0xff]
    %v1762 = vld [vmem:[#allocation15 + $0x338] sm:$0xff]
    %v1763 = vld [vmem:[#allocation15 + $0x340] sm:$0xff]
    %v1764 = vld [vmem:[#allocation15 + $0x348] sm:$0xff]
    %v1765 = vld [vmem:[#allocation15 + $0x350] sm:$0xff]
    %v1766 = vld [vmem:[#allocation15 + $0x358] sm:$0xff]
    %v1767 = vld [vmem:[#allocation15 + $0x360] sm:$0xff]
    %v1768 = vld [vmem:[#allocation15 + $0x368] sm:$0xff]
    %v1769 = vld [vmem:[#allocation15 + $0x370] sm:$0xff]
    %v1770 = vld [vmem:[#allocation15 + $0x378] sm:$0xff]
    %v1771 = vld [vmem:[#allocation15 + $0x380] sm:$0xff]
    %v1772 = vld [vmem:[#allocation15 + $0x388] sm:$0xff]
    %v1773 = vld [vmem:[#allocation15 + $0x390] sm:$0xff]
    %v1774 = vld [vmem:[#allocation15 + $0x398] sm:$0xff]
    %v1775 = vld [vmem:[#allocation15 + $0x3a0] sm:$0xff]
    %v1776 = vld [vmem:[#allocation15 + $0x3a8] sm:$0xff]
    %v1777 = vld [vmem:[#allocation15 + $0x3b0] sm:$0xff]
    %v1778 = vld [vmem:[#allocation15 + $0x3b8] sm:$0xff]
    %v1779 = vld [vmem:[#allocation15 + $0x3c0] sm:$0xff]
    %v1780 = vld [vmem:[#allocation15 + $0x3c8] sm:$0xff]
    %v1781 = vld [vmem:[#allocation15 + $0x3d0] sm:$0xff]
    %v1782 = vld [vmem:[#allocation15 + $0x3d8] sm:$0xff]
    %v1783 = vld [vmem:[#allocation15 + $0x3e0] sm:$0xff]
    %v1784 = vld [vmem:[#allocation15 + $0x3e8] sm:$0xff]
    %v1785 = vld [vmem:[#allocation15 + $0x3f0] sm:$0xff]
    %v1786 = vld [vmem:[#allocation15 + $0x3f8] sm:$0xff]
    %v1915 = vunpack.c.l.b16 %v1659
    %v1916 = vunpack.c.h.b16 %v1659
    %v1917 = vunpack.c.l.b16 %v1660
    %v1918 = vunpack.c.h.b16 %v1660
    %v1919 = vunpack.c.l.b16 %v1661
    %v1920 = vunpack.c.h.b16 %v1661
    %v1921 = vunpack.c.l.b16 %v1662
    %v1922 = vunpack.c.h.b16 %v1662
    %v1923 = vunpack.c.l.b16 %v1663
    %v1924 = vunpack.c.h.b16 %v1663
    %v1925 = vunpack.c.l.b16 %v1664
    %v1926 = vunpack.c.h.b16 %v1664
    %v1927 = vunpack.c.l.b16 %v1665
    %v1928 = vunpack.c.h.b16 %v1665
    %v1929 = vunpack.c.l.b16 %v1666
    %v1930 = vunpack.c.h.b16 %v1666
    %v1931 = vunpack.c.l.b16 %v1667
    %v1932 = vunpack.c.h.b16 %v1667
    %v1933 = vunpack.c.l.b16 %v1668
    %v1934 = vunpack.c.h.b16 %v1668
    %v1935 = vunpack.c.l.b16 %v1669
    %v1936 = vunpack.c.h.b16 %v1669
    %v1937 = vunpack.c.l.b16 %v1670
    %v1938 = vunpack.c.h.b16 %v1670
    %v1939 = vunpack.c.l.b16 %v1671
    %v1940 = vunpack.c.h.b16 %v1671
    %v1941 = vunpack.c.l.b16 %v1672
    %v1942 = vunpack.c.h.b16 %v1672
    %v1943 = vunpack.c.l.b16 %v1673
    %v1944 = vunpack.c.h.b16 %v1673
    %v1945 = vunpack.c.l.b16 %v1674
    %v1946 = vunpack.c.h.b16 %v1674
    %v1947 = vunpack.c.l.b16 %v1675
    %v1948 = vunpack.c.h.b16 %v1675
    %v1949 = vunpack.c.l.b16 %v1676
    %v1950 = vunpack.c.h.b16 %v1676
    %v1951 = vunpack.c.l.b16 %v1677
    %v1952 = vunpack.c.h.b16 %v1677
    %v1953 = vunpack.c.l.b16 %v1678
    %v1954 = vunpack.c.h.b16 %v1678
    %v1955 = vunpack.c.l.b16 %v1679
    %v1956 = vunpack.c.h.b16 %v1679
    %v1957 = vunpack.c.l.b16 %v1680
    %v1958 = vunpack.c.h.b16 %v1680
    %v1959 = vunpack.c.l.b16 %v1681
    %v1960 = vunpack.c.h.b16 %v1681
    %v1961 = vunpack.c.l.b16 %v1682
    %v1962 = vunpack.c.h.b16 %v1682
    %v1963 = vunpack.c.l.b16 %v1683
    %v1964 = vunpack.c.h.b16 %v1683
    %v1965 = vunpack.c.l.b16 %v1684
    %v1966 = vunpack.c.h.b16 %v1684
    %v1967 = vunpack.c.l.b16 %v1685
    %v1968 = vunpack.c.h.b16 %v1685
    %v1969 = vunpack.c.l.b16 %v1686
    %v1970 = vunpack.c.h.b16 %v1686
    %v1971 = vunpack.c.l.b16 %v1687
    %v1972 = vunpack.c.h.b16 %v1687
    %v1973 = vunpack.c.l.b16 %v1688
    %v1974 = vunpack.c.h.b16 %v1688
    %v1975 = vunpack.c.l.b16 %v1689
    %v1976 = vunpack.c.h.b16 %v1689
    %v1977 = vunpack.c.l.b16 %v1690
    %v1978 = vunpack.c.h.b16 %v1690
    %v1979 = vunpack.c.l.b16 %v1691
    %v1980 = vunpack.c.h.b16 %v1691
    %v1981 = vunpack.c.l.b16 %v1692
    %v1982 = vunpack.c.h.b16 %v1692
    %v1983 = vunpack.c.l.b16 %v1693
    %v1984 = vunpack.c.h.b16 %v1693
    %v1985 = vunpack.c.l.b16 %v1694
    %v1986 = vunpack.c.h.b16 %v1694
    %v1987 = vunpack.c.l.b16 %v1695
    %v1988 = vunpack.c.h.b16 %v1695
    %v1989 = vunpack.c.l.b16 %v1696
    %v1990 = vunpack.c.h.b16 %v1696
    %v1991 = vunpack.c.l.b16 %v1697
    %v1992 = vunpack.c.h.b16 %v1697
    %v1993 = vunpack.c.l.b16 %v1698
    %v1994 = vunpack.c.h.b16 %v1698
    %v1995 = vunpack.c.l.b16 %v1699
    %v1996 = vunpack.c.h.b16 %v1699
    %v1997 = vunpack.c.l.b16 %v1700
    %v1998 = vunpack.c.h.b16 %v1700
    %v1999 = vunpack.c.l.b16 %v1701
    %v2000 = vunpack.c.h.b16 %v1701
    %v2001 = vunpack.c.l.b16 %v1702
    %v2002 = vunpack.c.h.b16 %v1702
    %v2003 = vunpack.c.l.b16 %v1703
    %v2004 = vunpack.c.h.b16 %v1703
    %v2005 = vunpack.c.l.b16 %v1704
    %v2006 = vunpack.c.h.b16 %v1704
    %v2007 = vunpack.c.l.b16 %v1705
    %v2008 = vunpack.c.h.b16 %v1705
    %v2009 = vunpack.c.l.b16 %v1706
    %v2010 = vunpack.c.h.b16 %v1706
    %v2011 = vunpack.c.l.b16 %v1707
    %v2012 = vunpack.c.h.b16 %v1707
    %v2013 = vunpack.c.l.b16 %v1708
    %v2014 = vunpack.c.h.b16 %v1708
    %v2015 = vunpack.c.l.b16 %v1709
    %v2016 = vunpack.c.h.b16 %v1709
    %v2017 = vunpack.c.l.b16 %v1710
    %v2018 = vunpack.c.h.b16 %v1710
    %v2019 = vunpack.c.l.b16 %v1711
    %v2020 = vunpack.c.h.b16 %v1711
    %v2021 = vunpack.c.l.b16 %v1712
    %v2022 = vunpack.c.h.b16 %v1712
    %v2023 = vunpack.c.l.b16 %v1713
    %v2024 = vunpack.c.h.b16 %v1713
    %v2025 = vunpack.c.l.b16 %v1714
    %v2026 = vunpack.c.h.b16 %v1714
    %v2027 = vunpack.c.l.b16 %v1715
    %v2028 = vunpack.c.h.b16 %v1715
    %v2029 = vunpack.c.l.b16 %v1716
    %v2030 = vunpack.c.h.b16 %v1716
    %v2031 = vunpack.c.l.b16 %v1717
    %v2032 = vunpack.c.h.b16 %v1717
    %v2033 = vunpack.c.l.b16 %v1718
    %v2034 = vunpack.c.h.b16 %v1718
    %v2035 = vunpack.c.l.b16 %v1719
    %v2036 = vunpack.c.h.b16 %v1719
    %v2037 = vunpack.c.l.b16 %v1720
    %v2038 = vunpack.c.h.b16 %v1720
    %v2039 = vunpack.c.l.b16 %v1721
    %v2040 = vunpack.c.h.b16 %v1721
    %v2041 = vunpack.c.l.b16 %v1722
    %v2042 = vunpack.c.h.b16 %v1722
    %v2043 = vunpack.c.l.b16 %v1723
    %v2044 = vunpack.c.h.b16 %v1723
    %v2045 = vunpack.c.l.b16 %v1724
    %v2046 = vunpack.c.h.b16 %v1724
    %v2047 = vunpack.c.l.b16 %v1725
    %v2048 = vunpack.c.h.b16 %v1725
    %v2049 = vunpack.c.l.b16 %v1726
    %v2050 = vunpack.c.h.b16 %v1726
    %v2051 = vunpack.c.l.b16 %v1727
    %v2052 = vunpack.c.h.b16 %v1727
    %v2053 = vunpack.c.l.b16 %v1728
    %v2054 = vunpack.c.h.b16 %v1728
    %v2055 = vunpack.c.l.b16 %v1729
    %v2056 = vunpack.c.h.b16 %v1729
    %v2057 = vunpack.c.l.b16 %v1730
    %v2058 = vunpack.c.h.b16 %v1730
    %v2059 = vunpack.c.l.b16 %v1731
    %v2060 = vunpack.c.h.b16 %v1731
    %v2061 = vunpack.c.l.b16 %v1732
    %v2062 = vunpack.c.h.b16 %v1732
    %v2063 = vunpack.c.l.b16 %v1733
    %v2064 = vunpack.c.h.b16 %v1733
    %v2065 = vunpack.c.l.b16 %v1734
    %v2066 = vunpack.c.h.b16 %v1734
    %v2067 = vunpack.c.l.b16 %v1735
    %v2068 = vunpack.c.h.b16 %v1735
    %v2069 = vunpack.c.l.b16 %v1736
    %v2070 = vunpack.c.h.b16 %v1736
    %v2071 = vunpack.c.l.b16 %v1737
    %v2072 = vunpack.c.h.b16 %v1737
    %v2073 = vunpack.c.l.b16 %v1738
    %v2074 = vunpack.c.h.b16 %v1738
    %v2075 = vunpack.c.l.b16 %v1739
    %v2076 = vunpack.c.h.b16 %v1739
    %v2077 = vunpack.c.l.b16 %v1740
    %v2078 = vunpack.c.h.b16 %v1740
    %v2079 = vunpack.c.l.b16 %v1741
    %v2080 = vunpack.c.h.b16 %v1741
    %v2081 = vunpack.c.l.b16 %v1742
    %v2082 = vunpack.c.h.b16 %v1742
    %v2083 = vunpack.c.l.b16 %v1743
    %v2084 = vunpack.c.h.b16 %v1743
    %v2085 = vunpack.c.l.b16 %v1744
    %v2086 = vunpack.c.h.b16 %v1744
    %v2087 = vunpack.c.l.b16 %v1745
    %v2088 = vunpack.c.h.b16 %v1745
    %v2089 = vunpack.c.l.b16 %v1746
    %v2090 = vunpack.c.h.b16 %v1746
    %v2091 = vunpack.c.l.b16 %v1747
    %v2092 = vunpack.c.h.b16 %v1747
    %v2093 = vunpack.c.l.b16 %v1748
    %v2094 = vunpack.c.h.b16 %v1748
    %v2095 = vunpack.c.l.b16 %v1749
    %v2096 = vunpack.c.h.b16 %v1749
    %v2097 = vunpack.c.l.b16 %v1750
    %v2098 = vunpack.c.h.b16 %v1750
    %v2099 = vunpack.c.l.b16 %v1751
    %v2100 = vunpack.c.h.b16 %v1751
    %v2101 = vunpack.c.l.b16 %v1752
    %v2102 = vunpack.c.h.b16 %v1752
    %v2103 = vunpack.c.l.b16 %v1753
    %v2104 = vunpack.c.h.b16 %v1753
    %v2105 = vunpack.c.l.b16 %v1754
    %v2106 = vunpack.c.h.b16 %v1754
    %v2107 = vunpack.c.l.b16 %v1755
    %v2108 = vunpack.c.h.b16 %v1755
    %v2109 = vunpack.c.l.b16 %v1756
    %v2110 = vunpack.c.h.b16 %v1756
    %v2111 = vunpack.c.l.b16 %v1757
    %v2112 = vunpack.c.h.b16 %v1757
    %v2113 = vunpack.c.l.b16 %v1758
    %v2114 = vunpack.c.h.b16 %v1758
    %v2115 = vunpack.c.l.b16 %v1759
    %v2116 = vunpack.c.h.b16 %v1759
    %v2117 = vunpack.c.l.b16 %v1760
    %v2118 = vunpack.c.h.b16 %v1760
    %v2119 = vunpack.c.l.b16 %v1761
    %v2120 = vunpack.c.h.b16 %v1761
    %v2121 = vunpack.c.l.b16 %v1762
    %v2122 = vunpack.c.h.b16 %v1762
    %v2123 = vunpack.c.l.b16 %v1763
    %v2124 = vunpack.c.h.b16 %v1763
    %v2125 = vunpack.c.l.b16 %v1764
    %v2126 = vunpack.c.h.b16 %v1764
    %v2127 = vunpack.c.l.b16 %v1765
    %v2128 = vunpack.c.h.b16 %v1765
    %v2129 = vunpack.c.l.b16 %v1766
    %v2130 = vunpack.c.h.b16 %v1766
    %v2131 = vunpack.c.l.b16 %v1767
    %v2132 = vunpack.c.h.b16 %v1767
    %v2133 = vunpack.c.l.b16 %v1768
    %v2134 = vunpack.c.h.b16 %v1768
    %v2135 = vunpack.c.l.b16 %v1769
    %v2136 = vunpack.c.h.b16 %v1769
    %v2137 = vunpack.c.l.b16 %v1770
    %v2138 = vunpack.c.h.b16 %v1770
    %v2139 = vunpack.c.l.b16 %v1771
    %v2140 = vunpack.c.h.b16 %v1771
    %v2141 = vunpack.c.l.b16 %v1772
    %v2142 = vunpack.c.h.b16 %v1772
    %v2143 = vunpack.c.l.b16 %v1773
    %v2144 = vunpack.c.h.b16 %v1773
    %v2145 = vunpack.c.l.b16 %v1774
    %v2146 = vunpack.c.h.b16 %v1774
    %v2147 = vunpack.c.l.b16 %v1775
    %v2148 = vunpack.c.h.b16 %v1775
    %v2149 = vunpack.c.l.b16 %v1776
    %v2150 = vunpack.c.h.b16 %v1776
    %v2151 = vunpack.c.l.b16 %v1777
    %v2152 = vunpack.c.h.b16 %v1777
    %v2153 = vunpack.c.l.b16 %v1778
    %v2154 = vunpack.c.h.b16 %v1778
    %v2155 = vunpack.c.l.b16 %v1779
    %v2156 = vunpack.c.h.b16 %v1779
    %v2157 = vunpack.c.l.b16 %v1780
    %v2158 = vunpack.c.h.b16 %v1780
    %v2159 = vunpack.c.l.b16 %v1781
    %v2160 = vunpack.c.h.b16 %v1781
    %v2161 = vunpack.c.l.b16 %v1782
    %v2162 = vunpack.c.h.b16 %v1782
    %v2163 = vunpack.c.l.b16 %v1783
    %v2164 = vunpack.c.h.b16 %v1783
    %v2165 = vunpack.c.l.b16 %v1784
    %v2166 = vunpack.c.h.b16 %v1784
    %v2167 = vunpack.c.l.b16 %v1785
    %v2168 = vunpack.c.h.b16 %v1785
    %v2169 = vunpack.c.l.b16 %v1786
    %v2170 = vunpack.c.h.b16 %v1786
    %v2171 = vpack.c.b16 %v1919, %v1915
    %v2172 = vpack.c.b16 %v1920, %v1916
    %v2173 = vpack.c.b16 %v1921, %v1917
    %v2174 = vpack.c.b16 %v1922, %v1918
    %v2175 = vpack.c.b16 %v1927, %v1923
    %v2176 = vpack.c.b16 %v1928, %v1924
    %v2177 = vpack.c.b16 %v1929, %v1925
    %v2178 = vpack.c.b16 %v1930, %v1926
    %v2179 = vpack.c.b16 %v1935, %v1931
    %v2180 = vpack.c.b16 %v1936, %v1932
    %v2181 = vpack.c.b16 %v1937, %v1933
    %v2182 = vpack.c.b16 %v1938, %v1934
    %v2183 = vpack.c.b16 %v1943, %v1939
    %v2184 = vpack.c.b16 %v1944, %v1940
    %v2185 = vpack.c.b16 %v1945, %v1941
    %v2186 = vpack.c.b16 %v1946, %v1942
    %v2187 = vpack.c.b16 %v1951, %v1947
    %v2188 = vpack.c.b16 %v1952, %v1948
    %v2189 = vpack.c.b16 %v1953, %v1949
    %v2190 = vpack.c.b16 %v1954, %v1950
    %v2191 = vpack.c.b16 %v1959, %v1955
    %v2192 = vpack.c.b16 %v1960, %v1956
    %v2193 = vpack.c.b16 %v1961, %v1957
    %v2194 = vpack.c.b16 %v1962, %v1958
    %v2195 = vpack.c.b16 %v1967, %v1963
    %v2196 = vpack.c.b16 %v1968, %v1964
    %v2197 = vpack.c.b16 %v1969, %v1965
    %v2198 = vpack.c.b16 %v1970, %v1966
    %v2199 = vpack.c.b16 %v1975, %v1971
    %v2200 = vpack.c.b16 %v1976, %v1972
    %v2201 = vpack.c.b16 %v1977, %v1973
    %v2202 = vpack.c.b16 %v1978, %v1974
    %v2203 = vpack.c.b16 %v1983, %v1979
    %v2204 = vpack.c.b16 %v1984, %v1980
    %v2205 = vpack.c.b16 %v1985, %v1981
    %v2206 = vpack.c.b16 %v1986, %v1982
    %v2207 = vpack.c.b16 %v1991, %v1987
    %v2208 = vpack.c.b16 %v1992, %v1988
    %v2209 = vpack.c.b16 %v1993, %v1989
    %v2210 = vpack.c.b16 %v1994, %v1990
    %v2211 = vpack.c.b16 %v1999, %v1995
    %v2212 = vpack.c.b16 %v2000, %v1996
    %v2213 = vpack.c.b16 %v2001, %v1997
    %v2214 = vpack.c.b16 %v2002, %v1998
    %v2215 = vpack.c.b16 %v2007, %v2003
    %v2216 = vpack.c.b16 %v2008, %v2004
    %v2217 = vpack.c.b16 %v2009, %v2005
    %v2218 = vpack.c.b16 %v2010, %v2006
    %v2219 = vpack.c.b16 %v2015, %v2011
    %v2220 = vpack.c.b16 %v2016, %v2012
    %v2221 = vpack.c.b16 %v2017, %v2013
    %v2222 = vpack.c.b16 %v2018, %v2014
    %v2223 = vpack.c.b16 %v2023, %v2019
    %v2224 = vpack.c.b16 %v2024, %v2020
    %v2225 = vpack.c.b16 %v2025, %v2021
    %v2226 = vpack.c.b16 %v2026, %v2022
    %v2227 = vpack.c.b16 %v2031, %v2027
    %v2228 = vpack.c.b16 %v2032, %v2028
    %v2229 = vpack.c.b16 %v2033, %v2029
    %v2230 = vpack.c.b16 %v2034, %v2030
    %v2231 = vpack.c.b16 %v2039, %v2035
    %v2232 = vpack.c.b16 %v2040, %v2036
    %v2233 = vpack.c.b16 %v2041, %v2037
    %v2234 = vpack.c.b16 %v2042, %v2038
    %v2235 = vpack.c.b16 %v2047, %v2043
    %v2236 = vpack.c.b16 %v2048, %v2044
    %v2237 = vpack.c.b16 %v2049, %v2045
    %v2238 = vpack.c.b16 %v2050, %v2046
    %v2239 = vpack.c.b16 %v2055, %v2051
    %v2240 = vpack.c.b16 %v2056, %v2052
    %v2241 = vpack.c.b16 %v2057, %v2053
    %v2242 = vpack.c.b16 %v2058, %v2054
    %v2243 = vpack.c.b16 %v2063, %v2059
    %v2244 = vpack.c.b16 %v2064, %v2060
    %v2245 = vpack.c.b16 %v2065, %v2061
    %v2246 = vpack.c.b16 %v2066, %v2062
    %v2247 = vpack.c.b16 %v2071, %v2067
    %v2248 = vpack.c.b16 %v2072, %v2068
    %v2249 = vpack.c.b16 %v2073, %v2069
    %v2250 = vpack.c.b16 %v2074, %v2070
    %v2251 = vpack.c.b16 %v2079, %v2075
    %v2252 = vpack.c.b16 %v2080, %v2076
    %v2253 = vpack.c.b16 %v2081, %v2077
    %v2254 = vpack.c.b16 %v2082, %v2078
    %v2255 = vpack.c.b16 %v2087, %v2083
    %v2256 = vpack.c.b16 %v2088, %v2084
    %v2257 = vpack.c.b16 %v2089, %v2085
    %v2258 = vpack.c.b16 %v2090, %v2086
    %v2259 = vpack.c.b16 %v2095, %v2091
    %v2260 = vpack.c.b16 %v2096, %v2092
    %v2261 = vpack.c.b16 %v2097, %v2093
    %v2262 = vpack.c.b16 %v2098, %v2094
    %v2263 = vpack.c.b16 %v2103, %v2099
    %v2264 = vpack.c.b16 %v2104, %v2100
    %v2265 = vpack.c.b16 %v2105, %v2101
    %v2266 = vpack.c.b16 %v2106, %v2102
    %v2267 = vpack.c.b16 %v2111, %v2107
    %v2268 = vpack.c.b16 %v2112, %v2108
    %v2269 = vpack.c.b16 %v2113, %v2109
    %v2270 = vpack.c.b16 %v2114, %v2110
    %v2271 = vpack.c.b16 %v2119, %v2115
    %v2272 = vpack.c.b16 %v2120, %v2116
    %v2273 = vpack.c.b16 %v2121, %v2117
    %v2274 = vpack.c.b16 %v2122, %v2118
    %v2275 = vpack.c.b16 %v2127, %v2123
    %v2276 = vpack.c.b16 %v2128, %v2124
    %v2277 = vpack.c.b16 %v2129, %v2125
    %v2278 = vpack.c.b16 %v2130, %v2126
    %v2279 = vpack.c.b16 %v2135, %v2131
    %v2280 = vpack.c.b16 %v2136, %v2132
    %v2281 = vpack.c.b16 %v2137, %v2133
    %v2282 = vpack.c.b16 %v2138, %v2134
    %v2283 = vpack.c.b16 %v2143, %v2139
    %v2284 = vpack.c.b16 %v2144, %v2140
    %v2285 = vpack.c.b16 %v2145, %v2141
    %v2286 = vpack.c.b16 %v2146, %v2142
    %v2287 = vpack.c.b16 %v2151, %v2147
    %v2288 = vpack.c.b16 %v2152, %v2148
    %v2289 = vpack.c.b16 %v2153, %v2149
    %v2290 = vpack.c.b16 %v2154, %v2150
    %v2291 = vpack.c.b16 %v2159, %v2155
    %v2292 = vpack.c.b16 %v2160, %v2156
    %v2293 = vpack.c.b16 %v2161, %v2157
    %v2294 = vpack.c.b16 %v2162, %v2158
    %v2295 = vpack.c.b16 %v2167, %v2163
    %v2296 = vpack.c.b16 %v2168, %v2164
    %v2297 = vpack.c.b16 %v2169, %v2165
    %v2298 = vpack.c.b16 %v2170, %v2166
    %2427 = vmatprep.subr.bf16.mxu0 %v2172
    %2428 = vmatpush1.bf16.msra.mxu0 %v2171
    %2429 = vmatprep.subr.bf16.mxu0 %v2176
    %2430 = vmatpush1.bf16.msra.mxu0 %v2175
    %2431 = vmatprep.subr.bf16.mxu0 %v2180
    %2432 = vmatpush1.bf16.msra.mxu0 %v2179
    %2433 = vmatprep.subr.bf16.mxu0 %v2184
    %2434 = vmatpush1.bf16.msra.mxu0 %v2183
    %2435 = vmatprep.subr.bf16.mxu0 %v2188
    %2436 = vmatpush1.bf16.msra.mxu0 %v2187
    %2437 = vmatprep.subr.bf16.mxu0 %v2192
    %2438 = vmatpush1.bf16.msra.mxu0 %v2191
    %2439 = vmatprep.subr.bf16.mxu0 %v2196
    %2440 = vmatpush1.bf16.msra.mxu0 %v2195
    %2441 = vmatprep.subr.bf16.mxu0 %v2200
    %2442 = vmatpush1.bf16.msra.mxu0 %v2199
    %2443 = vmatprep.subr.bf16.mxu0 %v2204
    %2444 = vmatpush1.bf16.msra.mxu0 %v2203
    %2445 = vmatprep.subr.bf16.mxu0 %v2208
    %2446 = vmatpush1.bf16.msra.mxu0 %v2207
    %2447 = vmatprep.subr.bf16.mxu0 %v2212
    %2448 = vmatpush1.bf16.msra.mxu0 %v2211
    %2449 = vmatprep.subr.bf16.mxu0 %v2216
    %2450 = vmatpush1.bf16.msra.mxu0 %v2215
    %2451 = vmatprep.subr.bf16.mxu0 %v2220
    %2452 = vmatpush1.bf16.msra.mxu0 %v2219
    %2453 = vmatprep.subr.bf16.mxu0 %v2224
    %2454 = vmatpush1.bf16.msra.mxu0 %v2223
    %2455 = vmatprep.subr.bf16.mxu0 %v2228
    %2456 = vmatpush1.bf16.msra.mxu0 %v2227
    %2457 = vmatprep.subr.bf16.mxu0 %v2232
    %2458 = vmatpush1.bf16.msra.mxu0 %v2231
    %2459 = vmatprep.mubr.bf16.mxu0 %v1656
    %2460 = vmatmul.mubr.bf16.gmra.mrb[0].mxu0 %v1655
    %v2461 = vpop.f32.mrb[0].mxu0
    %v2462 = vadd.f32 0.0, %v2461
    %v2463 = vpop.f32.mrb[0].mxu0
    %v2464 = vadd.f32 0.0, %v2463
    %v2465 = vpop.f32.mrb[0].mxu0
    %v2466 = vpop.f32.mrb[0].mxu0
    %2467 = vdwg.mxu0
    %2468 = vmatprep.subr.bf16.mxu0 %v2236
    %2469 = vmatpush1.bf16.msra.mxu0 %v2235
    %2470 = vmatprep.subr.bf16.mxu0 %v2240
    %2471 = vmatpush1.bf16.msra.mxu0 %v2239
    %2472 = vmatprep.subr.bf16.mxu0 %v2244
    %2473 = vmatpush1.bf16.msra.mxu0 %v2243
    %2474 = vmatprep.subr.bf16.mxu0 %v2248
    %2475 = vmatpush1.bf16.msra.mxu0 %v2247
    %2476 = vmatprep.subr.bf16.mxu0 %v2252
    %2477 = vmatpush1.bf16.msra.mxu0 %v2251
    %2478 = vmatprep.subr.bf16.mxu0 %v2256
    %2479 = vmatpush1.bf16.msra.mxu0 %v2255
    %2480 = vmatprep.subr.bf16.mxu0 %v2260
    %2481 = vmatpush1.bf16.msra.mxu0 %v2259
    %2482 = vmatprep.subr.bf16.mxu0 %v2264
    %2483 = vmatpush1.bf16.msra.mxu0 %v2263
    %2484 = vmatprep.subr.bf16.mxu0 %v2268
    %2485 = vmatpush1.bf16.msra.mxu0 %v2267
    %2486 = vmatprep.subr.bf16.mxu0 %v2272
    %2487 = vmatpush1.bf16.msra.mxu0 %v2271
    %2488 = vmatprep.subr.bf16.mxu0 %v2276
    %2489 = vmatpush1.bf16.msra.mxu0 %v2275
    %2490 = vmatprep.subr.bf16.mxu0 %v2280
    %2491 = vmatpush1.bf16.msra.mxu0 %v2279
    %2492 = vmatprep.subr.bf16.mxu0 %v2284
    %2493 = vmatpush1.bf16.msra.mxu0 %v2283
    %2494 = vmatprep.subr.bf16.mxu0 %v2288
    %2495 = vmatpush1.bf16.msra.mxu0 %v2287
    %2496 = vmatprep.subr.bf16.mxu0 %v2292
    %2497 = vmatpush1.bf16.msra.mxu0 %v2291
    %2498 = vmatprep.subr.bf16.mxu0 %v2296
    %2499 = vmatpush1.bf16.msra.mxu0 %v2295
    %2500 = vmatprep.mubr.bf16.mxu0 %v1658
    %2501 = vmatmul.mubr.bf16.gmra.mrb[0].mxu0 %v1657
    %v2502 = vpop.f32.mrb[0].mxu0
    %v2503 = vadd.f32 %v2462, %v2502
    %v2504 = vpop.f32.mrb[0].mxu0
    %v2505 = vadd.f32 %v2464, %v2504
    %v2506 = vpop.f32.mrb[0].mxu0
    %v2507 = vpop.f32.mrb[0].mxu0
    %2508 = vdwg.mxu0
    %2509 = vmatprep.subr.bf16.mxu0 %v2174
    %2510 = vmatpush1.bf16.msra.mxu0 %v2173
    %2511 = vmatprep.subr.bf16.mxu0 %v2178
    %2512 = vmatpush1.bf16.msra.mxu0 %v2177
    %2513 = vmatprep.subr.bf16.mxu0 %v2182
    %2514 = vmatpush1.bf16.msra.mxu0 %v2181
    %2515 = vmatprep.subr.bf16.mxu0 %v2186
    %2516 = vmatpush1.bf16.msra.mxu0 %v2185
    %2517 = vmatprep.subr.bf16.mxu0 %v2190
    %2518 = vmatpush1.bf16.msra.mxu0 %v2189
    %2519 = vmatprep.subr.bf16.mxu0 %v2194
    %2520 = vmatpush1.bf16.msra.mxu0 %v2193
    %2521 = vmatprep.subr.bf16.mxu0 %v2198
    %2522 = vmatpush1.bf16.msra.mxu0 %v2197
    %2523 = vmatprep.subr.bf16.mxu0 %v2202
    %2524 = vmatpush1.bf16.msra.mxu0 %v2201
    %2525 = vmatprep.subr.bf16.mxu0 %v2206
    %2526 = vmatpush1.bf16.msra.mxu0 %v2205
    %2527 = vmatprep.subr.bf16.mxu0 %v2210
    %2528 = vmatpush1.bf16.msra.mxu0 %v2209
    %2529 = vmatprep.subr.bf16.mxu0 %v2214
    %2530 = vmatpush1.bf16.msra.mxu0 %v2213
    %2531 = vmatprep.subr.bf16.mxu0 %v2218
    %2532 = vmatpush1.bf16.msra.mxu0 %v2217
    %2533 = vmatprep.subr.bf16.mxu0 %v2222
    %2534 = vmatpush1.bf16.msra.mxu0 %v2221
    %2535 = vmatprep.subr.bf16.mxu0 %v2226
    %2536 = vmatpush1.bf16.msra.mxu0 %v2225
    %2537 = vmatprep.subr.bf16.mxu0 %v2230
    %2538 = vmatpush1.bf16.msra.mxu0 %v2229
    %2539 = vmatprep.subr.bf16.mxu0 %v2234
    %2540 = vmatpush1.bf16.msra.mxu0 %v2233
    %2541 = vmatprep.mubr.bf16.mxu0 %v1656
    %2542 = vmatmul.mubr.bf16.gmra.mrb[0].mxu0 %v1655
    %v2543 = vpop.f32.mrb[0].mxu0
    %v2544 = vadd.f32 0.0, %v2543
    %v2545 = vpop.f32.mrb[0].mxu0
    %v2546 = vadd.f32 0.0, %v2545
    %v2547 = vpop.f32.mrb[0].mxu0
    %v2548 = vpop.f32.mrb[0].mxu0
    %2549 = vdwg.mxu0
    %2550 = vmatprep.subr.bf16.mxu0 %v2238
    %2551 = vmatpush1.bf16.msra.mxu0 %v2237
    %2552 = vmatprep.subr.bf16.mxu0 %v2242
    %2553 = vmatpush1.bf16.msra.mxu0 %v2241
    %2554 = vmatprep.subr.bf16.mxu0 %v2246
    %2555 = vmatpush1.bf16.msra.mxu0 %v2245
    %2556 = vmatprep.subr.bf16.mxu0 %v2250
    %2557 = vmatpush1.bf16.msra.mxu0 %v2249
    %2558 = vmatprep.subr.bf16.mxu0 %v2254
    %2559 = vmatpush1.bf16.msra.mxu0 %v2253
    %2560 = vmatprep.subr.bf16.mxu0 %v2258
    %2561 = vmatpush1.bf16.msra.mxu0 %v2257
    %2562 = vmatprep.subr.bf16.mxu0 %v2262
    %2563 = vmatpush1.bf16.msra.mxu0 %v2261
    %2564 = vmatprep.subr.bf16.mxu0 %v2266
    %2565 = vmatpush1.bf16.msra.mxu0 %v2265
    %2566 = vmatprep.subr.bf16.mxu0 %v2270
    %2567 = vmatpush1.bf16.msra.mxu0 %v2269
    %2568 = vmatprep.subr.bf16.mxu0 %v2274
    %2569 = vmatpush1.bf16.msra.mxu0 %v2273
    %2570 = vmatprep.subr.bf16.mxu0 %v2278
    %2571 = vmatpush1.bf16.msra.mxu0 %v2277
    %2572 = vmatprep.subr.bf16.mxu0 %v2282
    %2573 = vmatpush1.bf16.msra.mxu0 %v2281
    %2574 = vmatprep.subr.bf16.mxu0 %v2286
    %2575 = vmatpush1.bf16.msra.mxu0 %v2285
    %2576 = vmatprep.subr.bf16.mxu0 %v2290
    %2577 = vmatpush1.bf16.msra.mxu0 %v2289
    %2578 = vmatprep.subr.bf16.mxu0 %v2294
    %2579 = vmatpush1.bf16.msra.mxu0 %v2293
    %2580 = vmatprep.subr.bf16.mxu0 %v2298
    %2581 = vmatpush1.bf16.msra.mxu0 %v2297
    %2582 = vmatprep.mubr.bf16.mxu0 %v1658
    %2583 = vmatmul.mubr.bf16.gmra.mrb[0].mxu0 %v1657
    %v2584 = vpop.f32.mrb[0].mxu0
    %v2585 = vadd.f32 %v2544, %v2584
    %v2586 = vpop.f32.mrb[0].mxu0
    %v2587 = vadd.f32 %v2546, %v2586
    %v2588 = vpop.f32.mrb[0].mxu0
    %v2589 = vpop.f32.mrb[0].mxu0
    %2590 = vdwg.mxu0
    %2591 = vrot.lane.b32.xlu0 %v2503, 17
    %v2592 = vpop.permute.xlu0 %2591
    %2593 = vrot.lane.b32.xlu0 %v2505, 17
    %v2594 = vpop.permute.xlu0 %2593
    %2595 = vrot.lane.b32.xlu0 %v2585, 17
    %v2596 = vpop.permute.xlu0 %2595
    %2597 = vrot.lane.b32.xlu0 %v2587, 17
    %v2598 = vpop.permute.xlu0 %2597
    %v2599 = vlaneseq
    %v2600 = vand.u32 %v2599, 127
    %vm2601 = vcmp.lt.s32.totalorder %v2600, 17
    %v2602 = vsel %vm2601, %v2596, %v2598
    %v2603 = vsel %vm2601, %v2594, %v2596
    %v2604 = vsel %vm2601, %v2592, %v2594
    %v2605 = vsel %vm2601, %v2598, %v2592
    %v2606 = vld [vmem:[#allocation18] sm:$0xf]
    %v2608 = vlaneseq
    %v2609 = vshrl.u32 %v2608, 7
    %v2610 = vsub.s32 0, %v2609
    %v2611 = vrot.slane %v2606, %v2610
    %v2612 = vlaneseq
    %v2613 = vshrl.u32 %v2612, 7
    %v2614 = vsub.s32 1, %v2613
    %v2615 = vrot.slane %v2606, %v2614
    %v2616 = vlaneseq
    %v2617 = vshrl.u32 %v2616, 7
    %v2618 = vsub.s32 2, %v2617
    %v2619 = vrot.slane %v2606, %v2618
    %v2620 = vlaneseq
    %v2621 = vshrl.u32 %v2620, 7
    %v2622 = vsub.s32 3, %v2621
    %v2623 = vrot.slane %v2606, %v2622
    %v2628 = vmul.f32 %v2605, %v2611
    %v2629 = vmul.f32 %v2604, %v2615
    %v2630 = vmul.f32 %v2603, %v2619
    %v2631 = vmul.f32 %v2602, %v2623
    %2632 = vst [vmem:[#allocation4] sm:$0xff] %v2628
    %2633 = vst [vmem:[#allocation4 + $0x8] sm:$0xff] %v2629
    %2634 = vst [vmem:[#allocation4 + $0x10] sm:$0xff] %v2630
    %2635 = vst [vmem:[#allocation4 + $0x18] sm:$0xff] %v2631
    %2636 = vrot.lane.b32.xlu0 %v2503, 16
    %v2637 = vpop.permute.xlu0 %2636
    %2638 = vrot.lane.b32.xlu0 %v2505, 16
    %v2639 = vpop.permute.xlu0 %2638
    %2640 = vrot.lane.b32.xlu0 %v2585, 16
    %v2641 = vpop.permute.xlu0 %2640
    %2642 = vrot.lane.b32.xlu0 %v2587, 16
    %v2643 = vpop.permute.xlu0 %2642
    %vm2644 = vcmp.lt.s32.totalorder %v2600, 16
    %v2645 = vsel %vm2644, %v2641, %v2643
    %v2646 = vsel %vm2644, %v2639, %v2641
    %v2647 = vsel %vm2644, %v2637, %v2639
    %v2648 = vsel %vm2644, %v2643, %v2637
    %s2649 = scalar_lea.vmem [#allocation18], 4
    %v2650 = vld [vmem:[%s2649] sm:$0xf]
    %v2652 = vlaneseq
    %v2653 = vshrl.u32 %v2652, 7
    %v2654 = vsub.s32 0, %v2653
    %v2655 = vrot.slane %v2650, %v2654
    %v2656 = vlaneseq
    %v2657 = vshrl.u32 %v2656, 7
    %v2658 = vsub.s32 1, %v2657
    %v2659 = vrot.slane %v2650, %v2658
    %v2660 = vlaneseq
    %v2661 = vshrl.u32 %v2660, 7
    %v2662 = vsub.s32 2, %v2661
    %v2663 = vrot.slane %v2650, %v2662
    %v2664 = vlaneseq
    %v2665 = vshrl.u32 %v2664, 7
    %v2666 = vsub.s32 3, %v2665
    %v2667 = vrot.slane %v2650, %v2666
    %v2672 = vmul.f32 %v2648, %v2655
    %v2673 = vmul.f32 %v2647, %v2659
    %v2674 = vmul.f32 %v2646, %v2663
    %v2675 = vmul.f32 %v2645, %v2667
    %2676 = vst [vmem:[#allocation4 + $0x20] sm:$0xff] %v2672
    %2677 = vst [vmem:[#allocation4 + $0x28] sm:$0xff] %v2673
    %2678 = vst [vmem:[#allocation4 + $0x30] sm:$0xff] %v2674
    %2679 = vst [vmem:[#allocation4 + $0x38] sm:$0xff] %v2675
    %2680 = vrot.lane.b32.xlu0 %v2503, 15
    %v2681 = vpop.permute.xlu0 %2680
    %2682 = vrot.lane.b32.xlu0 %v2505, 15
    %v2683 = vpop.permute.xlu0 %2682
    %2684 = vrot.lane.b32.xlu0 %v2585, 15
    %v2685 = vpop.permute.xlu0 %2684
    %2686 = vrot.lane.b32.xlu0 %v2587, 15
    %v2687 = vpop.permute.xlu0 %2686
    %vm2688 = vcmp.lt.s32.totalorder %v2600, 15
    %v2689 = vsel %vm2688, %v2685, %v2687
    %v2690 = vsel %vm2688, %v2683, %v2685
    %v2691 = vsel %vm2688, %v2681, %v2683
    %v2692 = vsel %vm2688, %v2687, %v2681
    %s2693 = scalar_lea.vmem [#allocation18], 8
    %v2694 = vld [vmem:[%s2693] sm:$0xf]
    %v2696 = vlaneseq
    %v2697 = vshrl.u32 %v2696, 7
    %v2698 = vsub.s32 0, %v2697
    %v2699 = vrot.slane %v2694, %v2698
    %v2700 = vlaneseq
    %v2701 = vshrl.u32 %v2700, 7
    %v2702 = vsub.s32 1, %v2701
    %v2703 = vrot.slane %v2694, %v2702
    %v2704 = vlaneseq
    %v2705 = vshrl.u32 %v2704, 7
    %v2706 = vsub.s32 2, %v2705
    %v2707 = vrot.slane %v2694, %v2706
    %v2708 = vlaneseq
    %v2709 = vshrl.u32 %v2708, 7
    %v2710 = vsub.s32 3, %v2709
    %v2711 = vrot.slane %v2694, %v2710
    %v2716 = vmul.f32 %v2692, %v2699
    %v2717 = vmul.f32 %v2691, %v2703
    %v2718 = vmul.f32 %v2690, %v2707
    %v2719 = vmul.f32 %v2689, %v2711
    %2720 = vst [vmem:[#allocation4 + $0x40] sm:$0xff] %v2716
    %2721 = vst [vmem:[#allocation4 + $0x48] sm:$0xff] %v2717
    %2722 = vst [vmem:[#allocation4 + $0x50] sm:$0xff] %v2718
    %2723 = vst [vmem:[#allocation4 + $0x58] sm:$0xff] %v2719
    %2724 = vrot.lane.b32.xlu0 %v2503, 1
    %v2725 = vpop.permute.xlu0 %2724
    %2726 = vrot.lane.b32.xlu0 %v2505, 1
    %v2727 = vpop.permute.xlu0 %2726
    %2728 = vrot.lane.b32.xlu0 %v2585, 1
    %v2729 = vpop.permute.xlu0 %2728
    %2730 = vrot.lane.b32.xlu0 %v2587, 1
    %v2731 = vpop.permute.xlu0 %2730
    %vm2732 = vcmp.lt.s32.totalorder %v2600, 1
    %v2733 = vsel %vm2732, %v2729, %v2731
    %v2734 = vsel %vm2732, %v2727, %v2729
    %v2735 = vsel %vm2732, %v2725, %v2727
    %v2736 = vsel %vm2732, %v2731, %v2725
    %s2737 = scalar_lea.vmem [#allocation18], 12
    %v2738 = vld [vmem:[%s2737] sm:$0xf]
    %v2740 = vlaneseq
    %v2741 = vshrl.u32 %v2740, 7
    %v2742 = vsub.s32 0, %v2741
    %v2743 = vrot.slane %v2738, %v2742
    %v2744 = vlaneseq
    %v2745 = vshrl.u32 %v2744, 7
    %v2746 = vsub.s32 1, %v2745
    %v2747 = vrot.slane %v2738, %v2746
    %v2748 = vlaneseq
    %v2749 = vshrl.u32 %v2748, 7
    %v2750 = vsub.s32 2, %v2749
    %v2751 = vrot.slane %v2738, %v2750
    %v2752 = vlaneseq
    %v2753 = vshrl.u32 %v2752, 7
    %v2754 = vsub.s32 3, %v2753
    %v2755 = vrot.slane %v2738, %v2754
    %v2760 = vmul.f32 %v2736, %v2743
    %v2761 = vmul.f32 %v2735, %v2747
    %v2762 = vmul.f32 %v2734, %v2751
    %v2763 = vmul.f32 %v2733, %v2755
    %2764 = vst [vmem:[#allocation4 + $0x60] sm:$0xff] %v2760
    %2765 = vst [vmem:[#allocation4 + $0x68] sm:$0xff] %v2761
    %2766 = vst [vmem:[#allocation4 + $0x70] sm:$0xff] %v2762
    %2767 = vst [vmem:[#allocation4 + $0x78] sm:$0xff] %v2763
    %2768 = vst [vmem:[#allocation4 + $0x80] sm:$0xff] %v2503
    %2769 = vst [vmem:[#allocation4 + $0x88] sm:$0xff] %v2505
    %2770 = vst [vmem:[#allocation4 + $0x90] sm:$0xff] %v2585
    %2771 = vst [vmem:[#allocation4 + $0x98] sm:$0xff] %v2587
    %2772 = vrot.lane.b32.xlu0 %v2503, 127
    %v2773 = vpop.permute.xlu0 %2772
    %2774 = vrot.lane.b32.xlu0 %v2505, 127
    %v2775 = vpop.permute.xlu0 %2774
    %2776 = vrot.lane.b32.xlu0 %v2585, 127
    %v2777 = vpop.permute.xlu0 %2776
    %2778 = vrot.lane.b32.xlu0 %v2587, 127
    %v2779 = vpop.permute.xlu0 %2778
    %vm2780 = vcmp.lt.s32.totalorder %v2600, 127
    %v2781 = vsel %vm2780, %v2777, %v2779
    %v2782 = vsel %vm2780, %v2775, %v2777
    %v2783 = vsel %vm2780, %v2773, %v2775
    %v2784 = vsel %vm2780, %v2779, %v2773
    %s2785 = scalar_lea.vmem [#allocation18], 20
    %v2786 = vld [vmem:[%s2785] sm:$0xf]
    %v2788 = vlaneseq
    %v2789 = vshrl.u32 %v2788, 7
    %v2790 = vsub.s32 0, %v2789
    %v2791 = vrot.slane %v2786, %v2790
    %v2792 = vlaneseq
    %v2793 = vshrl.u32 %v2792, 7
    %v2794 = vsub.s32 1, %v2793
    %v2795 = vrot.slane %v2786, %v2794
    %v2796 = vlaneseq
    %v2797 = vshrl.u32 %v2796, 7
    %v2798 = vsub.s32 2, %v2797
    %v2799 = vrot.slane %v2786, %v2798
    %v2800 = vlaneseq
    %v2801 = vshrl.u32 %v2800, 7
    %v2802 = vsub.s32 3, %v2801
    %v2803 = vrot.slane %v2786, %v2802
    %v2808 = vmul.f32 %v2783, %v2791
    %v2809 = vmul.f32 %v2782, %v2795
    %v2810 = vmul.f32 %v2781, %v2799
    %v2811 = vmul.f32 %v2784, %v2803
    %2812 = vst [vmem:[#allocation4 + $0xa0] sm:$0xff] %v2808
    %2813 = vst [vmem:[#allocation4 + $0xa8] sm:$0xff] %v2809
    %2814 = vst [vmem:[#allocation4 + $0xb0] sm:$0xff] %v2810
    %2815 = vst [vmem:[#allocation4 + $0xb8] sm:$0xff] %v2811
    %2816 = vrot.lane.b32.xlu0 %v2503, 113
    %v2817 = vpop.permute.xlu0 %2816
    %2818 = vrot.lane.b32.xlu0 %v2505, 113
    %v2819 = vpop.permute.xlu0 %2818
    %2820 = vrot.lane.b32.xlu0 %v2585, 113
    %v2821 = vpop.permute.xlu0 %2820
    %2822 = vrot.lane.b32.xlu0 %v2587, 113
    %v2823 = vpop.permute.xlu0 %2822
    %vm2824 = vcmp.lt.s32.totalorder %v2600, 113
    %v2825 = vsel %vm2824, %v2821, %v2823
    %v2826 = vsel %vm2824, %v2819, %v2821
    %v2827 = vsel %vm2824, %v2817, %v2819
    %v2828 = vsel %vm2824, %v2823, %v2817
    %s2829 = scalar_lea.vmem [#allocation18], 24
    %v2830 = vld [vmem:[%s2829] sm:$0xf]
    %v2832 = vlaneseq
    %v2833 = vshrl.u32 %v2832, 7
    %v2834 = vsub.s32 0, %v2833
    %v2835 = vrot.slane %v2830, %v2834
    %v2836 = vlaneseq
    %v2837 = vshrl.u32 %v2836, 7
    %v2838 = vsub.s32 1, %v2837
    %v2839 = vrot.slane %v2830, %v2838
    %v2840 = vlaneseq
    %v2841 = vshrl.u32 %v2840, 7
    %v2842 = vsub.s32 2, %v2841
    %v2843 = vrot.slane %v2830, %v2842
    %v2844 = vlaneseq
    %v2845 = vshrl.u32 %v2844, 7
    %v2846 = vsub.s32 3, %v2845
    %v2847 = vrot.slane %v2830, %v2846
    %v2852 = vmul.f32 %v2827, %v2835
    %v2853 = vmul.f32 %v2826, %v2839
    %v2854 = vmul.f32 %v2825, %v2843
    %v2855 = vmul.f32 %v2828, %v2847
    %2856 = vst [vmem:[#allocation4 + $0xc0] sm:$0xff] %v2852
    %2857 = vst [vmem:[#allocation4 + $0xc8] sm:$0xff] %v2853
    %2858 = vst [vmem:[#allocation4 + $0xd0] sm:$0xff] %v2854
    %2859 = vst [vmem:[#allocation4 + $0xd8] sm:$0xff] %v2855
    %2860 = vrot.lane.b32.xlu0 %v2503, 112
    %v2861 = vpop.permute.xlu0 %2860
    %2862 = vrot.lane.b32.xlu0 %v2505, 112
    %v2863 = vpop.permute.xlu0 %2862
    %2864 = vrot.lane.b32.xlu0 %v2585, 112
    %v2865 = vpop.permute.xlu0 %2864
    %2866 = vrot.lane.b32.xlu0 %v2587, 112
    %v2867 = vpop.permute.xlu0 %2866
    %vm2868 = vcmp.lt.s32.totalorder %v2600, 112
    %v2869 = vsel %vm2868, %v2865, %v2867
    %v2870 = vsel %vm2868, %v2863, %v2865
    %v2871 = vsel %vm2868, %v2861, %v2863
    %v2872 = vsel %vm2868, %v2867, %v2861
    %s2873 = scalar_lea.vmem [#allocation18], 28
    %v2874 = vld [vmem:[%s2873] sm:$0xf]
    %v2876 = vlaneseq
    %v2877 = vshrl.u32 %v2876, 7
    %v2878 = vsub.s32 0, %v2877
    %v2879 = vrot.slane %v2874, %v2878
    %v2880 = vlaneseq
    %v2881 = vshrl.u32 %v2880, 7
    %v2882 = vsub.s32 1, %v2881
    %v2883 = vrot.slane %v2874, %v2882
    %v2884 = vlaneseq
    %v2885 = vshrl.u32 %v2884, 7
    %v2886 = vsub.s32 2, %v2885
    %v2887 = vrot.slane %v2874, %v2886
    %v2888 = vlaneseq
    %v2889 = vshrl.u32 %v2888, 7
    %v2890 = vsub.s32 3, %v2889
    %v2891 = vrot.slane %v2874, %v2890
    %v2896 = vmul.f32 %v2871, %v2879
    %v2897 = vmul.f32 %v2870, %v2883
    %v2898 = vmul.f32 %v2869, %v2887
    %v2899 = vmul.f32 %v2872, %v2891
    %2900 = vst [vmem:[#allocation4 + $0xe0] sm:$0xff] %v2896
    %2901 = vst [vmem:[#allocation4 + $0xe8] sm:$0xff] %v2897
    %2902 = vst [vmem:[#allocation4 + $0xf0] sm:$0xff] %v2898
    %2903 = vst [vmem:[#allocation4 + $0xf8] sm:$0xff] %v2899
    %2904 = vrot.lane.b32.xlu0 %v2503, 111
    %v2905 = vpop.permute.xlu0 %2904
    %2906 = vrot.lane.b32.xlu0 %v2505, 111
    %v2907 = vpop.permute.xlu0 %2906
    %2908 = vrot.lane.b32.xlu0 %v2585, 111
    %v2909 = vpop.permute.xlu0 %2908
    %2910 = vrot.lane.b32.xlu0 %v2587, 111
    %v2911 = vpop.permute.xlu0 %2910
    %vm2912 = vcmp.lt.s32.totalorder %v2600, 111
    %v2913 = vsel %vm2912, %v2909, %v2911
    %v2914 = vsel %vm2912, %v2907, %v2909
    %v2915 = vsel %vm2912, %v2905, %v2907
    %v2916 = vsel %vm2912, %v2911, %v2905
    %s2917 = scalar_lea.vmem [#allocation18], 32
    %v2918 = vld [vmem:[%s2917] sm:$0xf]
    %v2920 = vlaneseq
    %v2921 = vshrl.u32 %v2920, 7
    %v2922 = vsub.s32 0, %v2921
    %v2923 = vrot.slane %v2918, %v2922
    %v2924 = vlaneseq
    %v2925 = vshrl.u32 %v2924, 7
    %v2926 = vsub.s32 1, %v2925
    %v2927 = vrot.slane %v2918, %v2926
    %v2928 = vlaneseq
    %v2929 = vshrl.u32 %v2928, 7
    %v2930 = vsub.s32 2, %v2929
    %v2931 = vrot.slane %v2918, %v2930
    %v2932 = vlaneseq
    %v2933 = vshrl.u32 %v2932, 7
    %v2934 = vsub.s32 3, %v2933
    %v2935 = vrot.slane %v2918, %v2934
    %v2940 = vmul.f32 %v2915, %v2923
    %v2941 = vmul.f32 %v2914, %v2927
    %v2942 = vmul.f32 %v2913, %v2931
    %v2943 = vmul.f32 %v2916, %v2935
    %2944 = vst [vmem:[#allocation4 + $0x100] sm:$0xff] %v2940
    %2945 = vst [vmem:[#allocation4 + $0x108] sm:$0xff] %v2941
    %2946 = vst [vmem:[#allocation4 + $0x110] sm:$0xff] %v2942
    %2947 = vst [vmem:[#allocation4 + $0x118] sm:$0xff] %v2943
    %v2948 = vld [vmem:[#allocation16] sm:$0xff]
    %v2949 = vld [vmem:[#allocation16 + $0x8] sm:$0xff]
    %v2950 = vld [vmem:[#allocation16 + $0x10] sm:$0xff]
    %v2951 = vld [vmem:[#allocation16 + $0x18] sm:$0xff]
    %v2952 = vld [vmem:[#allocation4] sm:$0xff]
    %v2953 = vld [vmem:[#allocation4 + $0x8] sm:$0xff]
    %v2954 = vld [vmem:[#allocation4 + $0x10] sm:$0xff]
    %v2955 = vld [vmem:[#allocation4 + $0x18] sm:$0xff]
    %v2956 = vld [vmem:[#allocation4 + $0x20] sm:$0xff]
    %v2957 = vld [vmem:[#allocation4 + $0x28] sm:$0xff]
    %v2958 = vld [vmem:[#allocation4 + $0x30] sm:$0xff]
    %v2959 = vld [vmem:[#allocation4 + $0x38] sm:$0xff]
    %v2960 = vld [vmem:[#allocation4 + $0x40] sm:$0xff]
    %v2961 = vld [vmem:[#allocation4 + $0x48] sm:$0xff]
    %v2962 = vld [vmem:[#allocation4 + $0x50] sm:$0xff]
    %v2963 = vld [vmem:[#allocation4 + $0x58] sm:$0xff]
    %v2964 = vld [vmem:[#allocation4 + $0x60] sm:$0xff]
    %v2965 = vld [vmem:[#allocation4 + $0x68] sm:$0xff]
    %v2966 = vld [vmem:[#allocation4 + $0x70] sm:$0xff]
    %v2967 = vld [vmem:[#allocation4 + $0x78] sm:$0xff]
    %v2968 = vld [vmem:[#allocation4 + $0x80] sm:$0xff]
    %v2969 = vld [vmem:[#allocation4 + $0x88] sm:$0xff]
    %v2970 = vld [vmem:[#allocation4 + $0x90] sm:$0xff]
    %v2971 = vld [vmem:[#allocation4 + $0x98] sm:$0xff]
    %v2972 = vld [vmem:[#allocation4 + $0xa0] sm:$0xff]
    %v2973 = vld [vmem:[#allocation4 + $0xa8] sm:$0xff]
    %v2974 = vld [vmem:[#allocation4 + $0xb0] sm:$0xff]
    %v2975 = vld [vmem:[#allocation4 + $0xb8] sm:$0xff]
    %v2976 = vld [vmem:[#allocation4 + $0xc0] sm:$0xff]
    %v2977 = vld [vmem:[#allocation4 + $0xc8] sm:$0xff]
    %v2978 = vld [vmem:[#allocation4 + $0xd0] sm:$0xff]
    %v2979 = vld [vmem:[#allocation4 + $0xd8] sm:$0xff]
    %v2980 = vld [vmem:[#allocation4 + $0xe0] sm:$0xff]
    %v2981 = vld [vmem:[#allocation4 + $0xe8] sm:$0xff]
    %v2982 = vld [vmem:[#allocation4 + $0xf0] sm:$0xff]
    %v2983 = vld [vmem:[#allocation4 + $0xf8] sm:$0xff]
    %v2984 = vld [vmem:[#allocation4 + $0x100] sm:$0xff]
    %v2985 = vld [vmem:[#allocation4 + $0x108] sm:$0xff]
    %v2986 = vld [vmem:[#allocation4 + $0x110] sm:$0xff]
    %v2987 = vld [vmem:[#allocation4 + $0x118] sm:$0xff]
    %vm2988 = vcmask 588800
    %v2990 = vsel %vm2988, %v2948, 0
    %v2993 = vsel %vm2988, %v2949, 0
    %v2996 = vsel %vm2988, %v2950, 0
    %v2999 = vsel %vm2988, %v2951, 0
    %3001 = vmatprep.subr.mxu0 %v2953
    %3002 = vmatpush1.msra.mxu0 %v2952
    %3003 = vmatprep.subr.mxu0 %v2957
    %3004 = vmatpush1.msra.mxu0 %v2956
    %3005 = vmatprep.subr.mxu0 %v2961
    %3006 = vmatpush1.msra.mxu0 %v2960
    %3007 = vmatprep.subr.mxu0 %v2965
    %3008 = vmatpush1.msra.mxu0 %v2964
    %3009 = vmatprep.subr.mxu0 %v2969
    %3010 = vmatpush1.msra.mxu0 %v2968
    %3011 = vmatprep.subr.mxu0 %v2973
    %3012 = vmatpush1.msra.mxu0 %v2972
    %3013 = vmatprep.subr.mxu0 %v2977
    %3014 = vmatpush1.msra.mxu0 %v2976
    %3015 = vmatprep.subr.mxu0 %v2981
    %3016 = vmatpush1.msra.mxu0 %v2980
    %3017 = vmatprep.subr.mxu0 %v2985
    %3018 = vmatpush1.msra.mxu0 %v2984
    %3019 = vmatprep.subr.mxu0 0.0
    %3020 = vmatpush1.msra.mxu0 0.0
    %3021 = vmatprep.subr.mxu0 0.0
    %3022 = vmatpush1.msra.mxu0 0.0
    %3023 = vmatprep.subr.mxu0 0.0
    %3024 = vmatpush1.msra.mxu0 0.0
    %3025 = vmatprep.subr.mxu0 0.0
    %3026 = vmatpush1.msra.mxu0 0.0
    %3027 = vmatprep.subr.mxu0 0.0
    %3028 = vmatpush1.msra.mxu0 0.0
    %3029 = vmatprep.subr.mxu0 0.0
    %3030 = vmatpush1.msra.mxu0 0.0
    %3031 = vmatprep.subr.mxu0 0.0
    %3032 = vmatpush1.msra.mxu0 0.0
    %3033 = vmatprep.subr.mxu0 0.0
    %3034 = vmatpush1.msra.mxu0 0.0
    %3035 = vmatprep.subr.mxu0 0.0
    %3036 = vmatpush1.msra.mxu0 0.0
    %3037 = vmatprep.subr.mxu0 0.0
    %3038 = vmatpush1.msra.mxu0 0.0
    %3039 = vmatprep.subr.mxu0 0.0
    %3040 = vmatpush1.msra.mxu0 0.0
    %3041 = vmatprep.subr.mxu0 0.0
    %3042 = vmatpush1.msra.mxu0 0.0
    %3043 = vmatprep.subr.mxu0 0.0
    %3044 = vmatpush1.msra.mxu0 0.0
    %3045 = vmatprep.subr.mxu0 0.0
    %3046 = vmatpush1.msra.mxu0 0.0
    %3047 = vmatprep.subr.mxu0 0.0
    %3048 = vmatpush1.msra.mxu0 0.0
    %3049 = vmatprep.subr.mxu0 0.0
    %3050 = vmatpush1.msra.mxu0 0.0
    %3051 = vmatprep.subr.mxu0 0.0
    %3052 = vmatpush1.msra.mxu0 0.0
    %3053 = vmatprep.subr.mxu0 0.0
    %3054 = vmatpush1.msra.mxu0 0.0
    %3055 = vmatprep.subr.mxu0 0.0
    %3056 = vmatpush1.msra.mxu0 0.0
    %3057 = vmatprep.subr.mxu0 0.0
    %3058 = vmatpush1.msra.mxu0 0.0
    %3059 = vmatprep.subr.mxu0 0.0
    %3060 = vmatpush1.msra.mxu0 0.0
    %3061 = vmatprep.subr.mxu0 0.0
    %3062 = vmatpush1.msra.mxu0 0.0
    %3063 = vmatprep.subr.mxu0 0.0
    %3064 = vmatpush1.msra.mxu0 0.0
    %3065 = vmatprep.mubr.f32.mxu0 0.0
    %3066 = vmatmul.mubr.f32.gmra.mrb[0].mxu0 %v2990
    %v3067 = vpop.f32.mrb[0].mxu0
    %v3068 = vadd.f32 0.0, %v3067
    %v3069 = vpop.f32.mrb[0].mxu0
    %v3070 = vadd.f32 0.0, %v3069
    %3071 = vmatprep.mubr.f32.mxu0 0.0
    %3072 = vmatmul.mubr.f32.gmra.mrb[0].mxu0 %v2993
    %v3073 = vpop.f32.mrb[0].mxu0
    %v3074 = vadd.f32 0.0, %v3073
    %v3075 = vpop.f32.mrb[0].mxu0
    %v3076 = vadd.f32 0.0, %v3075
    %3077 = vmatprep.mubr.f32.mxu0 0.0
    %3078 = vmatmul.mubr.f32.gmra.mrb[0].mxu0 %v2996
    %v3079 = vpop.f32.mrb[0].mxu0
    %v3080 = vadd.f32 0.0, %v3079
    %v3081 = vpop.f32.mrb[0].mxu0
    %v3082 = vadd.f32 0.0, %v3081
    %3083 = vmatprep.mubr.f32.mxu0 0.0
    %3084 = vmatmul.mubr.f32.gmra.mrb[0].mxu0 %v2999
    %v3085 = vpop.f32.mrb[0].mxu0
    %v3086 = vadd.f32 0.0, %v3085
    %v3087 = vpop.f32.mrb[0].mxu0
    %v3088 = vadd.f32 0.0, %v3087
    %3089 = vdwg.mxu0
    %3090 = vmatprep.subr.mxu0 %v2955
    %3091 = vmatpush1.msra.mxu0 %v2954
    %3092 = vmatprep.subr.mxu0 %v2959
    %3093 = vmatpush1.msra.mxu0 %v2958
    %3094 = vmatprep.subr.mxu0 %v2963
    %3095 = vmatpush1.msra.mxu0 %v2962
    %3096 = vmatprep.subr.mxu0 %v2967
    %3097 = vmatpush1.msra.mxu0 %v2966
    %3098 = vmatprep.subr.mxu0 %v2971
    %3099 = vmatpush1.msra.mxu0 %v2970
    %3100 = vmatprep.subr.mxu0 %v2975
    %3101 = vmatpush1.msra.mxu0 %v2974
    %3102 = vmatprep.subr.mxu0 %v2979
    %3103 = vmatpush1.msra.mxu0 %v2978
    %3104 = vmatprep.subr.mxu0 %v2983
    %3105 = vmatpush1.msra.mxu0 %v2982
    %3106 = vmatprep.subr.mxu0 %v2987
    %3107 = vmatpush1.msra.mxu0 %v2986
    %3108 = vmatprep.subr.mxu0 0.0
    %3109 = vmatpush1.msra.mxu0 0.0
    %3110 = vmatprep.subr.mxu0 0.0
    %3111 = vmatpush1.msra.mxu0 0.0
    %3112 = vmatprep.subr.mxu0 0.0
    %3113 = vmatpush1.msra.mxu0 0.0
    %3114 = vmatprep.subr.mxu0 0.0
    %3115 = vmatpush1.msra.mxu0 0.0
    %3116 = vmatprep.subr.mxu0 0.0
    %3117 = vmatpush1.msra.mxu0 0.0
    %3118 = vmatprep.subr.mxu0 0.0
    %3119 = vmatpush1.msra.mxu0 0.0
    %3120 = vmatprep.subr.mxu0 0.0
    %3121 = vmatpush1.msra.mxu0 0.0
    %3122 = vmatprep.subr.mxu0 0.0
    %3123 = vmatpush1.msra.mxu0 0.0
    %3124 = vmatprep.subr.mxu0 0.0
    %3125 = vmatpush1.msra.mxu0 0.0
    %3126 = vmatprep.subr.mxu0 0.0
    %3127 = vmatpush1.msra.mxu0 0.0
    %3128 = vmatprep.subr.mxu0 0.0
    %3129 = vmatpush1.msra.mxu0 0.0
    %3130 = vmatprep.subr.mxu0 0.0
    %3131 = vmatpush1.msra.mxu0 0.0
    %3132 = vmatprep.subr.mxu0 0.0
    %3133 = vmatpush1.msra.mxu0 0.0
    %3134 = vmatprep.subr.mxu0 0.0
    %3135 = vmatpush1.msra.mxu0 0.0
    %3136 = vmatprep.subr.mxu0 0.0
    %3137 = vmatpush1.msra.mxu0 0.0
    %3138 = vmatprep.subr.mxu0 0.0
    %3139 = vmatpush1.msra.mxu0 0.0
    %3140 = vmatprep.subr.mxu0 0.0
    %3141 = vmatpush1.msra.mxu0 0.0
    %3142 = vmatprep.subr.mxu0 0.0
    %3143 = vmatpush1.msra.mxu0 0.0
    %3144 = vmatprep.subr.mxu0 0.0
    %3145 = vmatpush1.msra.mxu0 0.0
    %3146 = vmatprep.subr.mxu0 0.0
    %3147 = vmatpush1.msra.mxu0 0.0
    %3148 = vmatprep.subr.mxu0 0.0
    %3149 = vmatpush1.msra.mxu0 0.0
    %3150 = vmatprep.subr.mxu0 0.0
    %3151 = vmatpush1.msra.mxu0 0.0
    %3152 = vmatprep.subr.mxu0 0.0
    %3153 = vmatpush1.msra.mxu0 0.0
    %3154 = vmatprep.mubr.f32.mxu0 0.0
    %3155 = vmatmul.mubr.f32.gmra.mrb[0].mxu0 %v2990
    %v3156 = vpop.f32.mrb[0].mxu0
    %v3157 = vadd.f32 0.0, %v3156
    %v3158 = vpop.f32.mrb[0].mxu0
    %v3159 = vadd.f32 0.0, %v3158
    %3160 = vmatprep.mubr.f32.mxu0 0.0
    %3161 = vmatmul.mubr.f32.gmra.mrb[0].mxu0 %v2993
    %v3162 = vpop.f32.mrb[0].mxu0
    %v3163 = vadd.f32 0.0, %v3162
    %v3164 = vpop.f32.mrb[0].mxu0
    %v3165 = vadd.f32 0.0, %v3164
    %3166 = vmatprep.mubr.f32.mxu0 0.0
    %3167 = vmatmul.mubr.f32.gmra.mrb[0].mxu0 %v2996
    %v3168 = vpop.f32.mrb[0].mxu0
    %v3169 = vadd.f32 0.0, %v3168
    %v3170 = vpop.f32.mrb[0].mxu0
    %v3171 = vadd.f32 0.0, %v3170
    %3172 = vmatprep.mubr.f32.mxu0 0.0
    %3173 = vmatmul.mubr.f32.gmra.mrb[0].mxu0 %v2999
    %v3174 = vpop.f32.mrb[0].mxu0
    %v3175 = vadd.f32 0.0, %v3174
    %v3176 = vpop.f32.mrb[0].mxu0
    %v3177 = vadd.f32 0.0, %v3176
    %3178 = vdwg.mxu0
    %v3179 = vtanh.pop %v3068
    %v3180 = vtanh.pop %v3070
    %v3181 = vtanh.pop %v3157
    %v3182 = vtanh.pop %v3159
    %v3183 = vtanh.pop %v3074
    %v3184 = vtanh.pop %v3076
    %v3185 = vtanh.pop %v3163
    %v3186 = vtanh.pop %v3165
    %v3187 = vtanh.pop %v3080
    %v3188 = vtanh.pop %v3082
    %v3189 = vtanh.pop %v3169
    %v3190 = vtanh.pop %v3171
    %v3191 = vtanh.pop %v3086
    %v3192 = vtanh.pop %v3088
    %v3193 = vtanh.pop %v3175
    %v3194 = vtanh.pop %v3177
    %3195 = vst [vmem:[%s16] sm:$0xff] %v3179
    %3196 = vst [vmem:[%s16 + $0x8] sm:$0xff] %v3180
    %3197 = vst [vmem:[%s16 + $0x10] sm:$0xff] %v3181
    %3198 = vst [vmem:[%s16 + $0x18] sm:$0xff] %v3182
    %s3199 = scalar_lea.vmem %s16, 32
    %3200 = vst [vmem:[%s3199] sm:$0xff] %v3183
    %3201 = vst [vmem:[%s3199 + $0x8] sm:$0xff] %v3184
    %3202 = vst [vmem:[%s3199 + $0x10] sm:$0xff] %v3185
    %3203 = vst [vmem:[%s3199 + $0x18] sm:$0xff] %v3186
    %s3204 = scalar_lea.vmem %s16, 64
    %3205 = vst [vmem:[%s3204] sm:$0xff] %v3187
    %3206 = vst [vmem:[%s3204 + $0x8] sm:$0xff] %v3188
    %3207 = vst [vmem:[%s3204 + $0x10] sm:$0xff] %v3189
    %3208 = vst [vmem:[%s3204 + $0x18] sm:$0xff] %v3190
    %s3209 = scalar_lea.vmem %s16, 96
    %3210 = vst [vmem:[%s3209] sm:$0xff] %v3191
    %3211 = vst [vmem:[%s3209 + $0x8] sm:$0xff] %v3192
    %3212 = vst [vmem:[%s3209 + $0x10] sm:$0xff] %v3193
    %3213 = vst [vmem:[%s3209 + $0x18] sm:$0xff] %v3194
    // Predicated region
    $region102: #{generator_forward.1} parent=1 // pred_check
      _
    $region103: #{generator_forward.1} parent=1 // pred_check_branch
      %3215 = sbr.rel (0) target = $region105
    $region104: #{generator_forward.1} parent=1 // pred_region
      _
    $region105: #{generator_forward.1} parent=1 // pred_fallthru
      _
    // Predicated region
    $region106: #{generator_forward.1} parent=1 // pred_check
      _
    $region107: #{generator_forward.1} parent=1 // pred_check_branch
      %3217 = sbr.rel (0) target = $region109
    $region108: #{generator_forward.1} parent=1 // pred_region
      _
    $region109: #{generator_forward.1} parent=1 // pred_fallthru
      _
    %3218 = vsyncpa [#allocation6], 1
    %3219 = vsyncpa [#allocation8], 1
    %3220 = vsyncpa [#allocation11], 1
    %3221 = vsyncpa [#allocation14], 1
    %3222 = vsyncpa [#allocation17], 1

</llo_original>
